<compile_context>
chip_gen: v6e
topology: v6e:2x2x1
jax: 0.10.0
libtpu: 0.0.40
codegen_flags: <defaults>
</compile_context>

<pallas_src>
import functools
import math

import jax
import jax.numpy as jnp
from jax import lax
from jax.experimental import pallas as pl
from jax.experimental.pallas import tpu as pltpu


def _bilstm_kernel(len_ref, gf_ref, gb_ref, whhf_ref, whhb_ref,
                   outf_ref, outb_ref, embf_ref, embb_ref,
                   hf, cf, hb, cb, pf, pb, *, Tc, H, unroll):
    """One time-chunk per grid step; both LSTM directions interleaved.

    len_ref   : (B, 1)        int32 sequence lengths
    gf_ref    : (Tc, B, 4H)   bf16 forward gates (x@W_ih+b), chunk c
    gb_ref    : (Tc, B, 4H)   bf16 backward gates, chunk nc-1-c
    whh*_ref  : (H, 4H)       bf16 recurrent weights (resident across chunks)
    outf_ref  : (Tc, B, H)    forward hidden states, chunk c
    outb_ref  : (Tc, B, H)    backward hidden states, chunk nc-1-c
    emb*_ref  : (B, H)        per-direction max pool (written on last chunk)
    hf..pb    : (B, H) f32 VMEM scratch: h_f, c_f, h_b, c_b, pool_f, pool_b
    """
    c_idx = pl.program_id(0)
    nc = pl.num_programs(0)

    @pl.when(c_idx == 0)
    def _init():
        hf[...] = jnp.zeros_like(hf)
        cf[...] = jnp.zeros_like(cf)
        hb[...] = jnp.zeros_like(hb)
        cb[...] = jnp.zeros_like(cb)
        pf[...] = jnp.full_like(pf, -100.0)   # pad_packed_sequence(padding_value=-100)
        pb[...] = jnp.full_like(pb, -100.0)

    lens = len_ref[...]                       # (B, 1) int32, one vreg

    t0_f = c_idx * Tc                         # forward chunk start (real time)
    t0_b = (nc - 1 - c_idx) * Tc              # backward chunk start (real time)

    def lstm_cell(g, c_prev):
        # gate columns pre-permuted offline to (i, f, o, g_cell); the 3 sigmoids
        # are one tanh over the contiguous (B, 3H) slice: sigmoid(x)=0.5*tanh(x/2)+0.5
        s = 0.5 * jnp.tanh(0.5 * g[:, :3 * H]) + 0.5
        i_g = s[:, 0:H]
        f_g = s[:, H:2 * H]
        o_g = s[:, 2 * H:3 * H]
        c_g = jnp.tanh(g[:, 3 * H:4 * H])
        c_new = f_g * c_prev + i_g * c_g
        h_new = o_g * jnp.tanh(c_new)
        return h_new, c_new

    def step(j, carry):
        jb = Tc - 1 - j                       # backward walks its chunk in reverse
        t_f = t0_f + j
        t_b = t0_b + jb

        # Only these matmuls sit on the serial dependency chain; bf16 operands
        # with f32 accumulate -> single MXU pass. The two directions' chains are
        # independent, so their MXU/EUP latencies overlap on a single TC.
        rec_f = jnp.dot(hf[...].astype(jnp.bfloat16), whhf_ref[...],
                        preferred_element_type=jnp.float32)
        rec_b = jnp.dot(hb[...].astype(jnp.bfloat16), whhb_ref[...],
                        preferred_element_type=jnp.float32)

        g_f = gf_ref[j].astype(jnp.float32) + rec_f     # (B, 4H), 128-lane aligned
        g_b = gb_ref[jb].astype(jnp.float32) + rec_b

        h_f_new, c_f_new = lstm_cell(g_f, cf[...])
        h_b_new, c_b_new = lstm_cell(g_b, cb[...])

        m_f = (t_f < lens).astype(jnp.float32)          # (B, 1) validity masks
        m_b = (t_b < lens).astype(jnp.float32)

        # packed-sequence semantics: state only advances on valid timesteps
        hf[...] = m_f * h_f_new + (1.0 - m_f) * hf[...]
        cf[...] = m_f * c_f_new + (1.0 - m_f) * cf[...]
        hb[...] = m_b * h_b_new + (1.0 - m_b) * hb[...]
        cb[...] = m_b * c_b_new + (1.0 - m_b) * cb[...]

        outf_ref[j] = m_f * h_f_new                     # pad_packed(padding=0)
        outb_ref[jb] = m_b * h_b_new
        pf[...] = jnp.maximum(pf[...], jnp.where(m_f > 0.0, h_f_new, -100.0))
        pb[...] = jnp.maximum(pb[...], jnp.where(m_b > 0.0, h_b_new, -100.0))
        return carry

    lax.fori_loop(0, Tc, step, 0, unroll=unroll)

    @pl.when(c_idx == nc - 1)
    def _finalize():
        embf_ref[...] = pf[...]
        embb_ref[...] = pb[...]


def prepare_params(torch_params, H):
    """Convert PyTorch nn.LSTM(bidirectional=True) parameters to kernel layout.

    PyTorch stores weight_ih_l0 (4H, E), weight_hh_l0 (4H, H), bias_ih/hh (4H,)
    with gate order (i, f, g, o); '_reverse' (here suffix '_b') for backward.
    The kernel wants: transposed weights, the two biases folded together, gate
    columns permuted to (i, f, o, g) (contiguous sigmoid block), both
    directions' input projections fused along the gate axis into one (E, 8H)
    matrix, and W_hh stored in bfloat16 for single-pass MXU on the serial path.
    """
    perm = jnp.concatenate([jnp.arange(0, 2 * H),
                            jnp.arange(3 * H, 4 * H),
                            jnp.arange(2 * H, 3 * H)])

    def one_dir(sfx):
        w_ih = torch_params["w_ih_" + sfx].T[:, perm]                 # (E, 4H)
        w_hh = torch_params["w_hh_" + sfx].T[:, perm]                 # (H, 4H)
        b = (torch_params["b_ih_" + sfx] + torch_params["b_hh_" + sfx])[perm]
        return w_ih, w_hh, b

    w_ih_f, w_hh_f, b_f = one_dir("f")
    w_ih_b, w_hh_b, b_b = one_dir("b")
    return {
        "w_ih": jnp.concatenate([w_ih_f, w_ih_b], axis=1),            # (E, 8H) f32
        "b": jnp.concatenate([b_f, b_b]).reshape(1, 8 * H),           # (1, 8H) f32
        "w_hh_f": w_hh_f.astype(jnp.bfloat16),                        # (H, 4H) bf16
        "w_hh_b": w_hh_b.astype(jnp.bfloat16),
    }


def blstm_encoder_forward(sent, sent_len, params, max_T_encoder,
                          pool_type="max", time_chunk=None):
    """Pallas implementation of BLSTMEncoder.forward((sent, sent_len))."""
    assert pool_type == "max"
    # TODO(synk): pool_type='mean' branch (divides by *sorted* lengths in the
    # original torch code) is not implemented; this config uses 'max'.
    T, B, E = sent.shape
    H = params["w_hh_f"].shape[0]
    assert B % 8 == 0 and H % 128 == 0, "pad B to a multiple of 8, H to a multiple of 128"

    if time_chunk is None:
        time_chunk = T
        for cand in (64, 32, 16, 8):
            if T >= cand and T % cand == 0:
                time_chunk = cand
                break
    elif T % time_chunk != 0:
        time_chunk = T          # TODO(synk): support a ragged final time chunk
    Tc = time_chunk
    nc = T // Tc

    # Fused input projection: one (T*B, E) @ (E, 8H) matmul for both directions
    # (no per-direction activation concat). Gates streamed to the kernel in bf16.
    x2d = sent.reshape(T * B, E).astype(jnp.float32)
    gates = (x2d @ params["w_ih"] + params["b"]).astype(jnp.bfloat16)
    gates = gates.reshape(T, B, 8 * H)

    lens = sent_len.astype(jnp.int32).reshape(B, 1)
    whh_f = params["w_hh_f"].astype(jnp.bfloat16)
    whh_b = params["w_hh_b"].astype(jnp.bfloat16)

    unroll = True if Tc <= 8 else 4

    # VMEM budget: ~double-buffered blocks + scratch + margin, clamped well
    # below v7x's 64 MiB physical VMEM (fine vs 128 MiB on v5e/v6e).
    block_bytes = (2 * Tc * B * 4 * H * 2        # fwd + bwd gate chunks (bf16)
                   + 2 * H * 4 * H * 2           # W_hh fwd + bwd (bf16)
                   + 2 * Tc * B * H * 4          # fwd + bwd output chunks (f32)
                   + 2 * B * H * 4)              # emb outputs (f32)
    vmem_limit = int(min(max(2 * block_bytes + 6 * B * H * 4 + (8 << 20), 16 << 20),
                         48 << 20))

    out_f, out_b, emb_f, emb_b = pl.pallas_call(
        functools.partial(_bilstm_kernel, Tc=Tc, H=H, unroll=unroll),
        out_shape=(
            jax.ShapeDtypeStruct((T, B, H), jnp.float32),   # forward hidden states
            jax.ShapeDtypeStruct((T, B, H), jnp.float32),   # backward hidden states
            jax.ShapeDtypeStruct((B, H), jnp.float32),      # forward max pool
            jax.ShapeDtypeStruct((B, H), jnp.float32),      # backward max pool
        ),
        grid_spec=pltpu.PrefetchScalarGridSpec(
            num_scalar_prefetch=0,
            grid=(nc,),                                     # time-chunk axis (carries h/c)
            in_specs=[
                pl.BlockSpec((B, 1), lambda c: (0, 0)),                      # lengths
                pl.BlockSpec((Tc, B, 4 * H), lambda c: (c, 0, 0)),           # fwd gates
                pl.BlockSpec((Tc, B, 4 * H), lambda c: (nc - 1 - c, 0, 1)),  # bwd gates (reversed chunks)
                pl.BlockSpec((H, 4 * H), lambda c: (0, 0)),                  # W_hh fwd (resident)
                pl.BlockSpec((H, 4 * H), lambda c: (0, 0)),                  # W_hh bwd (resident)
            ],
            out_specs=[
                pl.BlockSpec((Tc, B, H), lambda c: (c, 0, 0)),
                pl.BlockSpec((Tc, B, H), lambda c: (nc - 1 - c, 0, 0)),
                pl.BlockSpec((B, H), lambda c: (0, 0)),
                pl.BlockSpec((B, H), lambda c: (0, 0)),
            ],
            scratch_shapes=[pltpu.VMEM((B, H), jnp.float32)] * 6,  # h_f,c_f,h_b,c_b,pool_f,pool_b
        ),
        compiler_params=pltpu.CompilerParams(
            dimension_semantics=("arbitrary",),   # sequential: state carried across chunks
            vmem_limit_bytes=vmem_limit,
        ),
    )(lens, gates, gates, whh_f, whh_b)

    # [forward | backward] concat + zero-pad to max_T_encoder (cheap XLA epilogue)
    sent_output = jnp.concatenate([out_f, out_b], axis=-1)
    if T < max_T_encoder:
        pad = jnp.zeros((max_T_encoder - T, B, 2 * H), jnp.float32)
        sent_output = jnp.concatenate([sent_output, pad], axis=0)
    emb = jnp.concatenate([emb_f, emb_b], axis=-1)
    return sent_output, emb


def _ref_forward(sent, sent_len, torch_params, max_T_encoder):
    """Pure-JAX f32 reference using the raw PyTorch-layout parameters (i,f,g,o)."""
    T, B, E = sent.shape
    H = torch_params["w_hh_f"].shape[1]
    mask = (jnp.arange(T)[:, None] < sent_len[None, :]).astype(jnp.float32)[:, :, None]

    def run(x_seq, m_seq, w_ih, w_hh, b_ih, b_hh):
        def step(carry, inp):
            h, c = carry
            xt, mt = inp
            gates = xt @ w_ih.T + h @ w_hh.T + b_ih + b_hh
            i = jax.nn.sigmoid(gates[:, :H])
            f = jax.nn.sigmoid(gates[:, H:2 * H])
            g = jnp.tanh(gates[:, 2 * H:3 * H])
            o = jax.nn.sigmoid(gates[:, 3 * H:])
            c_new = f * c + i * g
            h_new = o * jnp.tanh(c_new)
            carry_out = (mt * h_new + (1 - mt) * h, mt * c_new + (1 - mt) * c)
            return carry_out, (mt * h_new, jnp.where(mt > 0, h_new, -100.0))

        init = (jnp.zeros((B, H), jnp.float32), jnp.zeros((B, H), jnp.float32))
        _, (out, padded) = lax.scan(step, init, (x_seq, m_seq))
        return out, padded

    of, pfx = run(sent, mask, torch_params["w_ih_f"], torch_params["w_hh_f"],
                  torch_params["b_ih_f"], torch_params["b_hh_f"])
    ob, pbx = run(sent[::-1], mask[::-1], torch_params["w_ih_b"], torch_params["w_hh_b"],
                  torch_params["b_ih_b"], torch_params["b_hh_b"])
    ob, pbx = ob[::-1], pbx[::-1]
    sent_output = jnp.concatenate([of, ob], axis=-1)
    emb = jnp.concatenate([pfx.max(0), pbx.max(0)], axis=-1)
    if T < max_T_encoder:
        sent_output = jnp.concatenate(
            [sent_output, jnp.zeros((max_T_encoder - T, B, 2 * H), jnp.float32)], 0)
    return sent_output, emb


if __name__ == "__main__":
    # small, lane/sublane-dense shapes consistent with the module's forward
    T, B, E, H = 8, 8, 64, 128      # seq, batch, word_emb_dim, enc_rnn_dim
    max_T_encoder = 12

    key = jax.random.PRNGKey(0)
    ks = jax.random.split(key, 10)
    stdv = 1.0 / math.sqrt(H)
    u = lambda k, shape: jax.random.uniform(k, shape, jnp.float32, -stdv, stdv)

    # PyTorch nn.LSTM parameter layout, gate order (i, f, g, o); '_b' = reverse dir.
    torch_params = {
        "w_ih_f": u(ks[0], (4 * H, E)), "w_hh_f": u(ks[1], (4 * H, H)),
        "b_ih_f": u(ks[2], (4 * H,)),   "b_hh_f": u(ks[3], (4 * H,)),
        "w_ih_b": u(ks[4], (4 * H, E)), "w_hh_b": u(ks[5], (4 * H, H)),
        "b_ih_b": u(ks[6], (4 * H,)),   "b_hh_b": u(ks[7], (4 * H,)),
    }
    params = prepare_params(torch_params, H)

    sent_len = jnp.array([8, 5, 3, 6, 8, 1, 7, 4], dtype=jnp.int32)
    sent = jax.random.normal(ks[8], (T, B, E), jnp.float32)
    # zero out padded positions (irrelevant to packed semantics, but tidy)
    valid = (jnp.arange(T)[:, None] < sent_len[None, :]).astype(jnp.float32)
    sent = sent * valid[:, :, None]

    sent_output, emb = blstm_encoder_forward(
        sent, sent_len, params, max_T_encoder, pool_type="max", time_chunk=4)
    jax.block_until_ready((sent_output, emb))

    ref_out, ref_emb = _ref_forward(sent, sent_len, torch_params, max_T_encoder)
    assert sent_output.shape == (max_T_encoder, B, 2 * H)
    assert emb.shape == (B, 2 * H)
    # bf16 gates + bf16 recurrent matmul vs the pure-f32 reference.
    assert jnp.allclose(sent_output, ref_out, atol=2e-2, rtol=2e-2), \
        float(jnp.max(jnp.abs(sent_output - ref_out)))
    assert jnp.allclose(emb, ref_emb, atol=2e-2, rtol=2e-2), \
        float(jnp.max(jnp.abs(emb - ref_emb)))

    print("KERNEL_OK")
</pallas_src>

<mosaic_0001>
module attributes {stable_mosaic.version = 11 : i64} {
  func.func @_bilstm_kernel(%arg0: i32, %arg1: memref<8x1xi32, #tpu.memory_space<vmem>>, %arg2: memref<4x8x512xbf16, #tpu.memory_space<vmem>>, %arg3: memref<4x8x512xbf16, #tpu.memory_space<vmem>>, %arg4: memref<128x512xbf16, #tpu.memory_space<vmem>>, %arg5: memref<128x512xbf16, #tpu.memory_space<vmem>>, %arg6: memref<4x8x128xf32, #tpu.memory_space<vmem>>, %arg7: memref<4x8x128xf32, #tpu.memory_space<vmem>>, %arg8: memref<8x128xf32, #tpu.memory_space<vmem>>, %arg9: memref<8x128xf32, #tpu.memory_space<vmem>>, %arg10: memref<8x128xf32, #tpu.memory_space<vmem>>, %arg11: memref<8x128xf32, #tpu.memory_space<vmem>>, %arg12: memref<8x128xf32, #tpu.memory_space<vmem>>, %arg13: memref<8x128xf32, #tpu.memory_space<vmem>>, %arg14: memref<8x128xf32, #tpu.memory_space<vmem>>, %arg15: memref<8x128xf32, #tpu.memory_space<vmem>>) attributes {dimension_semantics = [#tpu.dimension_semantics<arbitrary>], iteration_bounds = array<i64: 2>, scalar_prefetch = 0 : i64, scratch_operands = 6 : i64, tpu.core_type = #tpu.core_type<tc>, window_params = [{pipeline_mode = #tpu.pipeline_mode<synchronous>, transform_indices = @transform_0, window_bounds = array<i64: 8, 1>}, {transform_indices = @transform_1, window_bounds = array<i64: 4, 8, 512>}, {transform_indices = @transform_2, window_bounds = array<i64: 4, 8, 512>}, {pipeline_mode = #tpu.pipeline_mode<synchronous>, transform_indices = @transform_3, window_bounds = array<i64: 128, 512>}, {pipeline_mode = #tpu.pipeline_mode<synchronous>, transform_indices = @transform_4, window_bounds = array<i64: 128, 512>}, {transform_indices = @transform_5, window_bounds = array<i64: 4, 8, 128>}, {transform_indices = @transform_6, window_bounds = array<i64: 4, 8, 128>}, {pipeline_mode = #tpu.pipeline_mode<synchronous>, transform_indices = @transform_7, window_bounds = array<i64: 8, 128>}, {pipeline_mode = #tpu.pipeline_mode<synchronous>, transform_indices = @transform_8, window_bounds = array<i64: 8, 128>}]} {
    %c0_i32 = arith.constant 0 : i32
    %0 = arith.cmpi eq, %arg0, %c0_i32 : i32
    %1 = arith.extui %0 : i1 to i32
    %c0_i32_0 = arith.constant 0 : i32
    %2 = arith.cmpi ne, %1, %c0_i32_0 : i32
    scf.if %2 {
      %cst_251 = arith.constant 0.000000e+00 : f32
      %542 = vector.broadcast %cst_251 : f32 to vector<8x128xf32>
      %c0_252 = arith.constant 0 : index
      %c0_253 = arith.constant 0 : index
      %543 = vector.load %arg10[%c0_252, %c0_253] : memref<8x128xf32, #tpu.memory_space<vmem>>, vector<8x128xf32>
      tpu.vector_store %arg10[%c0_252, %c0_253], %542 {strides = array<i32>} : memref<8x128xf32, #tpu.memory_space<vmem>>, vector<8x128xf32>,
      %cst_254 = arith.constant 0.000000e+00 : f32
      %544 = vector.broadcast %cst_254 : f32 to vector<8x128xf32>
      %c0_255 = arith.constant 0 : index
      %c0_256 = arith.constant 0 : index
      %545 = vector.load %arg11[%c0_255, %c0_256] : memref<8x128xf32, #tpu.memory_space<vmem>>, vector<8x128xf32>
      tpu.vector_store %arg11[%c0_255, %c0_256], %544 {strides = array<i32>} : memref<8x128xf32, #tpu.memory_space<vmem>>, vector<8x128xf32>,
      %cst_257 = arith.constant 0.000000e+00 : f32
      %546 = vector.broadcast %cst_257 : f32 to vector<8x128xf32>
      %c0_258 = arith.constant 0 : index
      %c0_259 = arith.constant 0 : index
      %547 = vector.load %arg12[%c0_258, %c0_259] : memref<8x128xf32, #tpu.memory_space<vmem>>, vector<8x128xf32>
      tpu.vector_store %arg12[%c0_258, %c0_259], %546 {strides = array<i32>} : memref<8x128xf32, #tpu.memory_space<vmem>>, vector<8x128xf32>,
      %cst_260 = arith.constant 0.000000e+00 : f32
      %548 = vector.broadcast %cst_260 : f32 to vector<8x128xf32>
      %c0_261 = arith.constant 0 : index
      %c0_262 = arith.constant 0 : index
      %549 = vector.load %arg13[%c0_261, %c0_262] : memref<8x128xf32, #tpu.memory_space<vmem>>, vector<8x128xf32>
      tpu.vector_store %arg13[%c0_261, %c0_262], %548 {strides = array<i32>} : memref<8x128xf32, #tpu.memory_space<vmem>>, vector<8x128xf32>,
      %cst_263 = arith.constant -1.000000e+02 : f32
      %550 = vector.broadcast %cst_263 : f32 to vector<8x128xf32>
      %c0_264 = arith.constant 0 : index
      %c0_265 = arith.constant 0 : index
      %551 = vector.load %arg14[%c0_264, %c0_265] : memref<8x128xf32, #tpu.memory_space<vmem>>, vector<8x128xf32>
      tpu.vector_store %arg14[%c0_264, %c0_265], %550 {strides = array<i32>} : memref<8x128xf32, #tpu.memory_space<vmem>>, vector<8x128xf32>,
      %cst_266 = arith.constant -1.000000e+02 : f32
      %552 = vector.broadcast %cst_266 : f32 to vector<8x128xf32>
      %c0_267 = arith.constant 0 : index
      %c0_268 = arith.constant 0 : index
      %553 = vector.load %arg15[%c0_267, %c0_268] : memref<8x128xf32, #tpu.memory_space<vmem>>, vector<8x128xf32>
      tpu.vector_store %arg15[%c0_267, %c0_268], %552 {strides = array<i32>} : memref<8x128xf32, #tpu.memory_space<vmem>>, vector<8x128xf32>,
    } else {
    }
    %c0 = arith.constant 0 : index
    %c0_1 = arith.constant 0 : index
    %3 = vector.load %arg1[%c0, %c0_1] : memref<8x1xi32, #tpu.memory_space<vmem>>, vector<8x1xi32>
    %c4_i32 = arith.constant 4 : i32
    %4 = arith.muli %arg0, %c4_i32 : i32
    %c1_i32 = arith.constant 1 : i32
    %5 = arith.subi %c1_i32, %arg0 : i32
    %c4_i32_2 = arith.constant 4 : i32
    %6 = arith.muli %5, %c4_i32_2 : i32
    %c0_i32_3 = arith.constant 0 : i32
    %c3_i32 = arith.constant 3 : i32
    %7 = arith.subi %c3_i32, %c0_i32_3 : i32
    %8 = arith.addi %4, %c0_i32_3 : i32
    %9 = arith.addi %6, %7 : i32
    %c0_4 = arith.constant 0 : index
    %c0_5 = arith.constant 0 : index
    %10 = vector.load %arg10[%c0_4, %c0_5] : memref<8x128xf32, #tpu.memory_space<vmem>>, vector<8x128xf32>
    %11 = arith.truncf %10 : vector<8x128xf32> to vector<8x128xbf16>
    %c0_6 = arith.constant 0 : index
    %c0_7 = arith.constant 0 : index
    %12 = vector.load %arg4[%c0_6, %c0_7] : memref<128x512xbf16, #tpu.memory_space<vmem>>, vector<128x512xbf16>
    %cst = arith.constant dense<0.000000e+00> : vector<8x512xf32>
    %13 = tpu.matmul %11, %12, %cst {dimension_numbers = #tpu.dot_dimension_numbers<[1], [0], [0], [1], [0, 0, 1, 1], [], []>} : vector<8x128xbf16>, vector<128x512xbf16>, vector<8x512xf32> -> vector<8x512xf32>
    %c0_8 = arith.constant 0 : index
    %c0_9 = arith.constant 0 : index
    %14 = vector.load %arg12[%c0_8, %c0_9] : memref<8x128xf32, #tpu.memory_space<vmem>>, vector<8x128xf32>
    %15 = arith.truncf %14 : vector<8x128xf32> to vector<8x128xbf16>
    %c0_10 = arith.constant 0 : index
    %c0_11 = arith.constant 0 : index
    %16 = vector.load %arg5[%c0_10, %c0_11] : memref<128x512xbf16, #tpu.memory_space<vmem>>, vector<128x512xbf16>
    %cst_12 = arith.constant dense<0.000000e+00> : vector<8x512xf32>
    %17 = tpu.matmul %15, %16, %cst_12 {dimension_numbers = #tpu.dot_dimension_numbers<[1], [0], [0], [1], [0, 0, 1, 1], [], []>} : vector<8x128xbf16>, vector<128x512xbf16>, vector<8x512xf32> -> vector<8x512xf32>
    %18 = arith.index_cast %c0_i32_3 : i32 to index
    %c0_13 = arith.constant 0 : index
    %c0_14 = arith.constant 0 : index
    %19 = vector.load %arg2[%18, %c0_13, %c0_14] : memref<4x8x512xbf16, #tpu.memory_space<vmem>>, vector<1x8x512xbf16>
    %20 = vector.shape_cast %19 : vector<1x8x512xbf16> to vector<8x512xbf16>
    %21 = arith.extf %20 : vector<8x512xbf16> to vector<8x512xf32>
    %22 = arith.addf %21, %13 : vector<8x512xf32>
    %23 = arith.index_cast %7 : i32 to index
    %c0_15 = arith.constant 0 : index
    %c0_16 = arith.constant 0 : index
    %24 = vector.load %arg3[%23, %c0_15, %c0_16] : memref<4x8x512xbf16, #tpu.memory_space<vmem>>, vector<1x8x512xbf16>
    %25 = vector.shape_cast %24 : vector<1x8x512xbf16> to vector<8x512xbf16>
    %26 = arith.extf %25 : vector<8x512xbf16> to vector<8x512xf32>
    %27 = arith.addf %26, %17 : vector<8x512xf32>
    %c0_17 = arith.constant 0 : index
    %c0_18 = arith.constant 0 : index
    %28 = vector.load %arg11[%c0_17, %c0_18] : memref<8x128xf32, #tpu.memory_space<vmem>>, vector<8x128xf32>
    %29 = vector.extract_strided_slice %22 {offsets = [0, 0], sizes = [8, 384], strides = [1, 1]} : vector<8x512xf32> to vector<8x384xf32>
    %cst_19 = arith.constant 5.000000e-01 : f32
    %30 = vector.broadcast %cst_19 : f32 to vector<8x384xf32>
    %31 = arith.mulf %30, %29 : vector<8x384xf32>
    %32 = math.tanh %31 : vector<8x384xf32>
    %cst_20 = arith.constant 5.000000e-01 : f32
    %33 = vector.broadcast %cst_20 : f32 to vector<8x384xf32>
    %34 = arith.mulf %33, %32 : vector<8x384xf32>
    %cst_21 = arith.constant 5.000000e-01 : f32
    %35 = vector.broadcast %cst_21 : f32 to vector<8x384xf32>
    %36 = arith.addf %34, %35 : vector<8x384xf32>
    %37 = vector.extract_strided_slice %36 {offsets = [0, 0], sizes = [8, 128], strides = [1, 1]} : vector<8x384xf32> to vector<8x128xf32>
    %38 = vector.extract_strided_slice %36 {offsets = [0, 128], sizes = [8, 128], strides = [1, 1]} : vector<8x384xf32> to vector<8x128xf32>
    %39 = vector.extract_strided_slice %36 {offsets = [0, 256], sizes = [8, 128], strides = [1, 1]} : vector<8x384xf32> to vector<8x128xf32>
    %40 = vector.extract_strided_slice %22 {offsets = [0, 384], sizes = [8, 128], strides = [1, 1]} : vector<8x512xf32> to vector<8x128xf32>
    %41 = math.tanh %40 : vector<8x128xf32>
    %42 = arith.mulf %38, %28 : vector<8x128xf32>
    %43 = arith.mulf %37, %41 : vector<8x128xf32>
    %44 = arith.addf %42, %43 : vector<8x128xf32>
    %45 = math.tanh %44 : vector<8x128xf32>
    %46 = arith.mulf %39, %45 : vector<8x128xf32>
    %c0_22 = arith.constant 0 : index
    %c0_23 = arith.constant 0 : index
    %47 = vector.load %arg13[%c0_22, %c0_23] : memref<8x128xf32, #tpu.memory_space<vmem>>, vector<8x128xf32>
    %48 = vector.extract_strided_slice %27 {offsets = [0, 0], sizes = [8, 384], strides = [1, 1]} : vector<8x512xf32> to vector<8x384xf32>
    %cst_24 = arith.constant 5.000000e-01 : f32
    %49 = vector.broadcast %cst_24 : f32 to vector<8x384xf32>
    %50 = arith.mulf %49, %48 : vector<8x384xf32>
    %51 = math.tanh %50 : vector<8x384xf32>
    %cst_25 = arith.constant 5.000000e-01 : f32
    %52 = vector.broadcast %cst_25 : f32 to vector<8x384xf32>
    %53 = arith.mulf %52, %51 : vector<8x384xf32>
    %cst_26 = arith.constant 5.000000e-01 : f32
    %54 = vector.broadcast %cst_26 : f32 to vector<8x384xf32>
    %55 = arith.addf %53, %54 : vector<8x384xf32>
    %56 = vector.extract_strided_slice %55 {offsets = [0, 0], sizes = [8, 128], strides = [1, 1]} : vector<8x384xf32> to vector<8x128xf32>
    %57 = vector.extract_strided_slice %55 {offsets = [0, 128], sizes = [8, 128], strides = [1, 1]} : vector<8x384xf32> to vector<8x128xf32>
    %58 = vector.extract_strided_slice %55 {offsets = [0, 256], sizes = [8, 128], strides = [1, 1]} : vector<8x384xf32> to vector<8x128xf32>
    %59 = vector.extract_strided_slice %27 {offsets = [0, 384], sizes = [8, 128], strides = [1, 1]} : vector<8x512xf32> to vector<8x128xf32>
    %60 = math.tanh %59 : vector<8x128xf32>
    %61 = arith.mulf %57, %47 : vector<8x128xf32>
    %62 = arith.mulf %56, %60 : vector<8x128xf32>
    %63 = arith.addf %61, %62 : vector<8x128xf32>
    %64 = math.tanh %63 : vector<8x128xf32>
    %65 = arith.mulf %58, %64 : vector<8x128xf32>
    %66 = vector.broadcast %8 : i32 to vector<8x1xi32>
    %67 = arith.cmpi slt, %66, %3 : vector<8x1xi32>
    %68 = arith.extui %67 : vector<8x1xi1> to vector<8x1xi32>
    %69 = arith.sitofp %68 : vector<8x1xi32> to vector<8x1xf32>
    %70 = vector.broadcast %9 : i32 to vector<8x1xi32>
    %71 = arith.cmpi slt, %70, %3 : vector<8x1xi32>
    %72 = arith.extui %71 : vector<8x1xi1> to vector<8x1xi32>
    %73 = arith.sitofp %72 : vector<8x1xi32> to vector<8x1xf32>
    %74 = vector.broadcast %69 : vector<8x1xf32> to vector<8x128xf32>
    %75 = arith.mulf %74, %46 : vector<8x128xf32>
    %cst_27 = arith.constant 1.000000e+00 : f32
    %76 = vector.broadcast %cst_27 : f32 to vector<8x1xf32>
    %77 = arith.subf %76, %69 : vector<8x1xf32>
    %c0_28 = arith.constant 0 : index
    %c0_29 = arith.constant 0 : index
    %78 = vector.load %arg10[%c0_28, %c0_29] : memref<8x128xf32, #tpu.memory_space<vmem>>, vector<8x128xf32>
    %79 = vector.broadcast %77 : vector<8x1xf32> to vector<8x128xf32>
    %80 = arith.mulf %79, %78 : vector<8x128xf32>
    %81 = arith.addf %75, %80 : vector<8x128xf32>
    %c0_30 = arith.constant 0 : index
    %c0_31 = arith.constant 0 : index
    %82 = vector.load %arg10[%c0_30, %c0_31] : memref<8x128xf32, #tpu.memory_space<vmem>>, vector<8x128xf32>
    tpu.vector_store %arg10[%c0_30, %c0_31], %81 {strides = array<i32>} : memref<8x128xf32, #tpu.memory_space<vmem>>, vector<8x128xf32>,
    %83 = vector.broadcast %69 : vector<8x1xf32> to vector<8x128xf32>
    %84 = arith.mulf %83, %44 : vector<8x128xf32>
    %cst_32 = arith.constant 1.000000e+00 : f32
    %85 = vector.broadcast %cst_32 : f32 to vector<8x1xf32>
    %86 = arith.subf %85, %69 : vector<8x1xf32>
    %c0_33 = arith.constant 0 : index
    %c0_34 = arith.constant 0 : index
    %87 = vector.load %arg11[%c0_33, %c0_34] : memref<8x128xf32, #tpu.memory_space<vmem>>, vector<8x128xf32>
    %88 = vector.broadcast %86 : vector<8x1xf32> to vector<8x128xf32>
    %89 = arith.mulf %88, %87 : vector<8x128xf32>
    %90 = arith.addf %84, %89 : vector<8x128xf32>
    %c0_35 = arith.constant 0 : index
    %c0_36 = arith.constant 0 : index
    %91 = vector.load %arg11[%c0_35, %c0_36] : memref<8x128xf32, #tpu.memory_space<vmem>>, vector<8x128xf32>
    tpu.vector_store %arg11[%c0_35, %c0_36], %90 {strides = array<i32>} : memref<8x128xf32, #tpu.memory_space<vmem>>, vector<8x128xf32>,
    %92 = vector.broadcast %73 : vector<8x1xf32> to vector<8x128xf32>
    %93 = arith.mulf %92, %65 : vector<8x128xf32>
    %cst_37 = arith.constant 1.000000e+00 : f32
    %94 = vector.broadcast %cst_37 : f32 to vector<8x1xf32>
    %95 = arith.subf %94, %73 : vector<8x1xf32>
    %c0_38 = arith.constant 0 : index
    %c0_39 = arith.constant 0 : index
    %96 = vector.load %arg12[%c0_38, %c0_39] : memref<8x128xf32, #tpu.memory_space<vmem>>, vector<8x128xf32>
    %97 = vector.broadcast %95 : vector<8x1xf32> to vector<8x128xf32>
    %98 = arith.mulf %97, %96 : vector<8x128xf32>
    %99 = arith.addf %93, %98 : vector<8x128xf32>
    %c0_40 = arith.constant 0 : index
    %c0_41 = arith.constant 0 : index
    %100 = vector.load %arg12[%c0_40, %c0_41] : memref<8x128xf32, #tpu.memory_space<vmem>>, vector<8x128xf32>
    tpu.vector_store %arg12[%c0_40, %c0_41], %99 {strides = array<i32>} : memref<8x128xf32, #tpu.memory_space<vmem>>, vector<8x128xf32>,
    %101 = vector.broadcast %73 : vector<8x1xf32> to vector<8x128xf32>
    %102 = arith.mulf %101, %63 : vector<8x128xf32>
    %cst_42 = arith.constant 1.000000e+00 : f32
    %103 = vector.broadcast %cst_42 : f32 to vector<8x1xf32>
    %104 = arith.subf %103, %73 : vector<8x1xf32>
    %c0_43 = arith.constant 0 : index
    %c0_44 = arith.constant 0 : index
    %105 = vector.load %arg13[%c0_43, %c0_44] : memref<8x128xf32, #tpu.memory_space<vmem>>, vector<8x128xf32>
    %106 = vector.broadcast %104 : vector<8x1xf32> to vector<8x128xf32>
    %107 = arith.mulf %106, %105 : vector<8x128xf32>
    %108 = arith.addf %102, %107 : vector<8x128xf32>
    %c0_45 = arith.constant 0 : index
    %c0_46 = arith.constant 0 : index
    %109 = vector.load %arg13[%c0_45, %c0_46] : memref<8x128xf32, #tpu.memory_space<vmem>>, vector<8x128xf32>
    tpu.vector_store %arg13[%c0_45, %c0_46], %108 {strides = array<i32>} : memref<8x128xf32, #tpu.memory_space<vmem>>, vector<8x128xf32>,
    %110 = vector.broadcast %69 : vector<8x1xf32> to vector<8x128xf32>
    %111 = arith.mulf %110, %46 : vector<8x128xf32>
    %112 = arith.index_cast %c0_i32_3 : i32 to index
    %c0_47 = arith.constant 0 : index
    %c0_48 = arith.constant 0 : index
    %113 = vector.load %arg6[%112, %c0_47, %c0_48] : memref<4x8x128xf32, #tpu.memory_space<vmem>>, vector<1x8x128xf32>
    %114 = vector.shape_cast %113 : vector<1x8x128xf32> to vector<8x128xf32>
    %115 = vector.shape_cast %111 : vector<8x128xf32> to vector<1x8x128xf32>
    tpu.vector_store %arg6[%112, %c0_47, %c0_48], %115 {strides = array<i32>} : memref<4x8x128xf32, #tpu.memory_space<vmem>>, vector<1x8x128xf32>,
    %116 = vector.broadcast %73 : vector<8x1xf32> to vector<8x128xf32>
    %117 = arith.mulf %116, %65 : vector<8x128xf32>
    %118 = arith.index_cast %7 : i32 to index
    %c0_49 = arith.constant 0 : index
    %c0_50 = arith.constant 0 : index
    %119 = vector.load %arg7[%118, %c0_49, %c0_50] : memref<4x8x128xf32, #tpu.memory_space<vmem>>, vector<1x8x128xf32>
    %120 = vector.shape_cast %119 : vector<1x8x128xf32> to vector<8x128xf32>
    %121 = vector.shape_cast %117 : vector<8x128xf32> to vector<1x8x128xf32>
    tpu.vector_store %arg7[%118, %c0_49, %c0_50], %121 {strides = array<i32>} : memref<4x8x128xf32, #tpu.memory_space<vmem>>, vector<1x8x128xf32>,
    %c0_51 = arith.constant 0 : index
    %c0_52 = arith.constant 0 : index
    %122 = vector.load %arg14[%c0_51, %c0_52] : memref<8x128xf32, #tpu.memory_space<vmem>>, vector<8x128xf32>
    %cst_53 = arith.constant 0.000000e+00 : f32
    %123 = vector.broadcast %cst_53 : f32 to vector<8x1xf32>
    %124 = arith.cmpf ogt, %69, %123 : vector<8x1xf32>
    %cst_54 = arith.constant -1.000000e+02 : f32
    %125 = vector.shape_cast %124 : vector<8x1xi1> to vector<8x1xi1>
    %126 = vector.broadcast %125 : vector<8x1xi1> to vector<8x128xi1>
    %127 = vector.broadcast %cst_54 : f32 to vector<8x128xf32>
    %128 = arith.select %126, %46, %127 : vector<8x128xi1>, vector<8x128xf32>
    %129 = arith.maximumf %122, %128 : vector<8x128xf32>
    %c0_55 = arith.constant 0 : index
    %c0_56 = arith.constant 0 : index
    %130 = vector.load %arg14[%c0_55, %c0_56] : memref<8x128xf32, #tpu.memory_space<vmem>>, vector<8x128xf32>
    tpu.vector_store %arg14[%c0_55, %c0_56], %129 {strides = array<i32>} : memref<8x128xf32, #tpu.memory_space<vmem>>, vector<8x128xf32>,
    %c0_57 = arith.constant 0 : index
    %c0_58 = arith.constant 0 : index
    %131 = vector.load %arg15[%c0_57, %c0_58] : memref<8x128xf32, #tpu.memory_space<vmem>>, vector<8x128xf32>
    %cst_59 = arith.constant 0.000000e+00 : f32
    %132 = vector.broadcast %cst_59 : f32 to vector<8x1xf32>
    %133 = arith.cmpf ogt, %73, %132 : vector<8x1xf32>
    %cst_60 = arith.constant -1.000000e+02 : f32
    %134 = vector.shape_cast %133 : vector<8x1xi1> to vector<8x1xi1>
    %135 = vector.broadcast %134 : vector<8x1xi1> to vector<8x128xi1>
    %136 = vector.broadcast %cst_60 : f32 to vector<8x128xf32>
    %137 = arith.select %135, %65, %136 : vector<8x128xi1>, vector<8x128xf32>
    %138 = arith.maximumf %131, %137 : vector<8x128xf32>
    %c0_61 = arith.constant 0 : index
    %c0_62 = arith.constant 0 : index
    %139 = vector.load %arg15[%c0_61, %c0_62] : memref<8x128xf32, #tpu.memory_space<vmem>>, vector<8x128xf32>
    tpu.vector_store %arg15[%c0_61, %c0_62], %138 {strides = array<i32>} : memref<8x128xf32, #tpu.memory_space<vmem>>, vector<8x128xf32>,
    %c1_i32_63 = arith.constant 1 : i32
    %c3_i32_64 = arith.constant 3 : i32
    %140 = arith.subi %c3_i32_64, %c1_i32_63 : i32
    %141 = arith.addi %4, %c1_i32_63 : i32
    %142 = arith.addi %6, %140 : i32
    %c0_65 = arith.constant 0 : index
    %c0_66 = arith.constant 0 : index
    %143 = vector.load %arg10[%c0_65, %c0_66] : memref<8x128xf32, #tpu.memory_space<vmem>>, vector<8x128xf32>
    %144 = arith.truncf %143 : vector<8x128xf32> to vector<8x128xbf16>
    %c0_67 = arith.constant 0 : index
    %c0_68 = arith.constant 0 : index
    %145 = vector.load %arg4[%c0_67, %c0_68] : memref<128x512xbf16, #tpu.memory_space<vmem>>, vector<128x512xbf16>
    %cst_69 = arith.constant dense<0.000000e+00> : vector<8x512xf32>
    %146 = tpu.matmul %144, %145, %cst_69 {dimension_numbers = #tpu.dot_dimension_numbers<[1], [0], [0], [1], [0, 0, 1, 1], [], []>} : vector<8x128xbf16>, vector<128x512xbf16>, vector<8x512xf32> -> vector<8x512xf32>
    %c0_70 = arith.constant 0 : index
    %c0_71 = arith.constant 0 : index
    %147 = vector.load %arg12[%c0_70, %c0_71] : memref<8x128xf32, #tpu.memory_space<vmem>>, vector<8x128xf32>
    %148 = arith.truncf %147 : vector<8x128xf32> to vector<8x128xbf16>
    %c0_72 = arith.constant 0 : index
    %c0_73 = arith.constant 0 : index
    %149 = vector.load %arg5[%c0_72, %c0_73] : memref<128x512xbf16, #tpu.memory_space<vmem>>, vector<128x512xbf16>
    %cst_74 = arith.constant dense<0.000000e+00> : vector<8x512xf32>
    %150 = tpu.matmul %148, %149, %cst_74 {dimension_numbers = #tpu.dot_dimension_numbers<[1], [0], [0], [1], [0, 0, 1, 1], [], []>} : vector<8x128xbf16>, vector<128x512xbf16>, vector<8x512xf32> -> vector<8x512xf32>
    %151 = arith.index_cast %c1_i32_63 : i32 to index
    %c0_75 = arith.constant 0 : index
    %c0_76 = arith.constant 0 : index
    %152 = vector.load %arg2[%151, %c0_75, %c0_76] : memref<4x8x512xbf16, #tpu.memory_space<vmem>>, vector<1x8x512xbf16>
    %153 = vector.shape_cast %152 : vector<1x8x512xbf16> to vector<8x512xbf16>
    %154 = arith.extf %153 : vector<8x512xbf16> to vector<8x512xf32>
    %155 = arith.addf %154, %146 : vector<8x512xf32>
    %156 = arith.index_cast %140 : i32 to index
    %c0_77 = arith.constant 0 : index
    %c0_78 = arith.constant 0 : index
    %157 = vector.load %arg3[%156, %c0_77, %c0_78] : memref<4x8x512xbf16, #tpu.memory_space<vmem>>, vector<1x8x512xbf16>
    %158 = vector.shape_cast %157 : vector<1x8x512xbf16> to vector<8x512xbf16>
    %159 = arith.extf %158 : vector<8x512xbf16> to vector<8x512xf32>
    %160 = arith.addf %159, %150 : vector<8x512xf32>
    %c0_79 = arith.constant 0 : index
    %c0_80 = arith.constant 0 : index
    %161 = vector.load %arg11[%c0_79, %c0_80] : memref<8x128xf32, #tpu.memory_space<vmem>>, vector<8x128xf32>
    %162 = vector.extract_strided_slice %155 {offsets = [0, 0], sizes = [8, 384], strides = [1, 1]} : vector<8x512xf32> to vector<8x384xf32>
    %cst_81 = arith.constant 5.000000e-01 : f32
    %163 = vector.broadcast %cst_81 : f32 to vector<8x384xf32>
    %164 = arith.mulf %163, %162 : vector<8x384xf32>
    %165 = math.tanh %164 : vector<8x384xf32>
    %cst_82 = arith.constant 5.000000e-01 : f32
    %166 = vector.broadcast %cst_82 : f32 to vector<8x384xf32>
    %167 = arith.mulf %166, %165 : vector<8x384xf32>
    %cst_83 = arith.constant 5.000000e-01 : f32
    %168 = vector.broadcast %cst_83 : f32 to vector<8x384xf32>
    %169 = arith.addf %167, %168 : vector<8x384xf32>
    %170 = vector.extract_strided_slice %169 {offsets = [0, 0], sizes = [8, 128], strides = [1, 1]} : vector<8x384xf32> to vector<8x128xf32>
    %171 = vector.extract_strided_slice %169 {offsets = [0, 128], sizes = [8, 128], strides = [1, 1]} : vector<8x384xf32> to vector<8x128xf32>
    %172 = vector.extract_strided_slice %169 {offsets = [0, 256], sizes = [8, 128], strides = [1, 1]} : vector<8x384xf32> to vector<8x128xf32>
    %173 = vector.extract_strided_slice %155 {offsets = [0, 384], sizes = [8, 128], strides = [1, 1]} : vector<8x512xf32> to vector<8x128xf32>
    %174 = math.tanh %173 : vector<8x128xf32>
    %175 = arith.mulf %171, %161 : vector<8x128xf32>
    %176 = arith.mulf %170, %174 : vector<8x128xf32>
    %177 = arith.addf %175, %176 : vector<8x128xf32>
    %178 = math.tanh %177 : vector<8x128xf32>
    %179 = arith.mulf %172, %178 : vector<8x128xf32>
    %c0_84 = arith.constant 0 : index
    %c0_85 = arith.constant 0 : index
    %180 = vector.load %arg13[%c0_84, %c0_85] : memref<8x128xf32, #tpu.memory_space<vmem>>, vector<8x128xf32>
    %181 = vector.extract_strided_slice %160 {offsets = [0, 0], sizes = [8, 384], strides = [1, 1]} : vector<8x512xf32> to vector<8x384xf32>
    %cst_86 = arith.constant 5.000000e-01 : f32
    %182 = vector.broadcast %cst_86 : f32 to vector<8x384xf32>
    %183 = arith.mulf %182, %181 : vector<8x384xf32>
    %184 = math.tanh %183 : vector<8x384xf32>
    %cst_87 = arith.constant 5.000000e-01 : f32
    %185 = vector.broadcast %cst_87 : f32 to vector<8x384xf32>
    %186 = arith.mulf %185, %184 : vector<8x384xf32>
    %cst_88 = arith.constant 5.000000e-01 : f32
    %187 = vector.broadcast %cst_88 : f32 to vector<8x384xf32>
    %188 = arith.addf %186, %187 : vector<8x384xf32>
    %189 = vector.extract_strided_slice %188 {offsets = [0, 0], sizes = [8, 128], strides = [1, 1]} : vector<8x384xf32> to vector<8x128xf32>
    %190 = vector.extract_strided_slice %188 {offsets = [0, 128], sizes = [8, 128], strides = [1, 1]} : vector<8x384xf32> to vector<8x128xf32>
    %191 = vector.extract_strided_slice %188 {offsets = [0, 256], sizes = [8, 128], strides = [1, 1]} : vector<8x384xf32> to vector<8x128xf32>
    %192 = vector.extract_strided_slice %160 {offsets = [0, 384], sizes = [8, 128], strides = [1, 1]} : vector<8x512xf32> to vector<8x128xf32>
    %193 = math.tanh %192 : vector<8x128xf32>
    %194 = arith.mulf %190, %180 : vector<8x128xf32>
    %195 = arith.mulf %189, %193 : vector<8x128xf32>
    %196 = arith.addf %194, %195 : vector<8x128xf32>
    %197 = math.tanh %196 : vector<8x128xf32>
    %198 = arith.mulf %191, %197 : vector<8x128xf32>
    %199 = vector.broadcast %141 : i32 to vector<8x1xi32>
    %200 = arith.cmpi slt, %199, %3 : vector<8x1xi32>
    %201 = arith.extui %200 : vector<8x1xi1> to vector<8x1xi32>
    %202 = arith.sitofp %201 : vector<8x1xi32> to vector<8x1xf32>
    %203 = vector.broadcast %142 : i32 to vector<8x1xi32>
    %204 = arith.cmpi slt, %203, %3 : vector<8x1xi32>
    %205 = arith.extui %204 : vector<8x1xi1> to vector<8x1xi32>
    %206 = arith.sitofp %205 : vector<8x1xi32> to vector<8x1xf32>
    %207 = vector.broadcast %202 : vector<8x1xf32> to vector<8x128xf32>
    %208 = arith.mulf %207, %179 : vector<8x128xf32>
    %cst_89 = arith.constant 1.000000e+00 : f32
    %209 = vector.broadcast %cst_89 : f32 to vector<8x1xf32>
    %210 = arith.subf %209, %202 : vector<8x1xf32>
    %c0_90 = arith.constant 0 : index
    %c0_91 = arith.constant 0 : index
    %211 = vector.load %arg10[%c0_90, %c0_91] : memref<8x128xf32, #tpu.memory_space<vmem>>, vector<8x128xf32>
    %212 = vector.broadcast %210 : vector<8x1xf32> to vector<8x128xf32>
    %213 = arith.mulf %212, %211 : vector<8x128xf32>
    %214 = arith.addf %208, %213 : vector<8x128xf32>
    %c0_92 = arith.constant 0 : index
    %c0_93 = arith.constant 0 : index
    %215 = vector.load %arg10[%c0_92, %c0_93] : memref<8x128xf32, #tpu.memory_space<vmem>>, vector<8x128xf32>
    tpu.vector_store %arg10[%c0_92, %c0_93], %214 {strides = array<i32>} : memref<8x128xf32, #tpu.memory_space<vmem>>, vector<8x128xf32>,
    %216 = vector.broadcast %202 : vector<8x1xf32> to vector<8x128xf32>
    %217 = arith.mulf %216, %177 : vector<8x128xf32>
    %cst_94 = arith.constant 1.000000e+00 : f32
    %218 = vector.broadcast %cst_94 : f32 to vector<8x1xf32>
    %219 = arith.subf %218, %202 : vector<8x1xf32>
    %c0_95 = arith.constant 0 : index
    %c0_96 = arith.constant 0 : index
    %220 = vector.load %arg11[%c0_95, %c0_96] : memref<8x128xf32, #tpu.memory_space<vmem>>, vector<8x128xf32>
    %221 = vector.broadcast %219 : vector<8x1xf32> to vector<8x128xf32>
    %222 = arith.mulf %221, %220 : vector<8x128xf32>
    %223 = arith.addf %217, %222 : vector<8x128xf32>
    %c0_97 = arith.constant 0 : index
    %c0_98 = arith.constant 0 : index
    %224 = vector.load %arg11[%c0_97, %c0_98] : memref<8x128xf32, #tpu.memory_space<vmem>>, vector<8x128xf32>
    tpu.vector_store %arg11[%c0_97, %c0_98], %223 {strides = array<i32>} : memref<8x128xf32, #tpu.memory_space<vmem>>, vector<8x128xf32>,
    %225 = vector.broadcast %206 : vector<8x1xf32> to vector<8x128xf32>
    %226 = arith.mulf %225, %198 : vector<8x128xf32>
    %cst_99 = arith.constant 1.000000e+00 : f32
    %227 = vector.broadcast %cst_99 : f32 to vector<8x1xf32>
    %228 = arith.subf %227, %206 : vector<8x1xf32>
    %c0_100 = arith.constant 0 : index
    %c0_101 = arith.constant 0 : index
    %229 = vector.load %arg12[%c0_100, %c0_101] : memref<8x128xf32, #tpu.memory_space<vmem>>, vector<8x128xf32>
    %230 = vector.broadcast %228 : vector<8x1xf32> to vector<8x128xf32>
    %231 = arith.mulf %230, %229 : vector<8x128xf32>
    %232 = arith.addf %226, %231 : vector<8x128xf32>
    %c0_102 = arith.constant 0 : index
    %c0_103 = arith.constant 0 : index
    %233 = vector.load %arg12[%c0_102, %c0_103] : memref<8x128xf32, #tpu.memory_space<vmem>>, vector<8x128xf32>
    tpu.vector_store %arg12[%c0_102, %c0_103], %232 {strides = array<i32>} : memref<8x128xf32, #tpu.memory_space<vmem>>, vector<8x128xf32>,
    %234 = vector.broadcast %206 : vector<8x1xf32> to vector<8x128xf32>
    %235 = arith.mulf %234, %196 : vector<8x128xf32>
    %cst_104 = arith.constant 1.000000e+00 : f32
    %236 = vector.broadcast %cst_104 : f32 to vector<8x1xf32>
    %237 = arith.subf %236, %206 : vector<8x1xf32>
    %c0_105 = arith.constant 0 : index
    %c0_106 = arith.constant 0 : index
    %238 = vector.load %arg13[%c0_105, %c0_106] : memref<8x128xf32, #tpu.memory_space<vmem>>, vector<8x128xf32>
    %239 = vector.broadcast %237 : vector<8x1xf32> to vector<8x128xf32>
    %240 = arith.mulf %239, %238 : vector<8x128xf32>
    %241 = arith.addf %235, %240 : vector<8x128xf32>
    %c0_107 = arith.constant 0 : index
    %c0_108 = arith.constant 0 : index
    %242 = vector.load %arg13[%c0_107, %c0_108] : memref<8x128xf32, #tpu.memory_space<vmem>>, vector<8x128xf32>
    tpu.vector_store %arg13[%c0_107, %c0_108], %241 {strides = array<i32>} : memref<8x128xf32, #tpu.memory_space<vmem>>, vector<8x128xf32>,
    %243 = vector.broadcast %202 : vector<8x1xf32> to vector<8x128xf32>
    %244 = arith.mulf %243, %179 : vector<8x128xf32>
    %245 = arith.index_cast %c1_i32_63 : i32 to index
    %c0_109 = arith.constant 0 : index
    %c0_110 = arith.constant 0 : index
    %246 = vector.load %arg6[%245, %c0_109, %c0_110] : memref<4x8x128xf32, #tpu.memory_space<vmem>>, vector<1x8x128xf32>
    %247 = vector.shape_cast %246 : vector<1x8x128xf32> to vector<8x128xf32>
    %248 = vector.shape_cast %244 : vector<8x128xf32> to vector<1x8x128xf32>
    tpu.vector_store %arg6[%245, %c0_109, %c0_110], %248 {strides = array<i32>} : memref<4x8x128xf32, #tpu.memory_space<vmem>>, vector<1x8x128xf32>,
    %249 = vector.broadcast %206 : vector<8x1xf32> to vector<8x128xf32>
    %250 = arith.mulf %249, %198 : vector<8x128xf32>
    %251 = arith.index_cast %140 : i32 to index
    %c0_111 = arith.constant 0 : index
    %c0_112 = arith.constant 0 : index
    %252 = vector.load %arg7[%251, %c0_111, %c0_112] : memref<4x8x128xf32, #tpu.memory_space<vmem>>, vector<1x8x128xf32>
    %253 = vector.shape_cast %252 : vector<1x8x128xf32> to vector<8x128xf32>
    %254 = vector.shape_cast %250 : vector<8x128xf32> to vector<1x8x128xf32>
    tpu.vector_store %arg7[%251, %c0_111, %c0_112], %254 {strides = array<i32>} : memref<4x8x128xf32, #tpu.memory_space<vmem>>, vector<1x8x128xf32>,
    %c0_113 = arith.constant 0 : index
    %c0_114 = arith.constant 0 : index
    %255 = vector.load %arg14[%c0_113, %c0_114] : memref<8x128xf32, #tpu.memory_space<vmem>>, vector<8x128xf32>
    %cst_115 = arith.constant 0.000000e+00 : f32
    %256 = vector.broadcast %cst_115 : f32 to vector<8x1xf32>
    %257 = arith.cmpf ogt, %202, %256 : vector<8x1xf32>
    %cst_116 = arith.constant -1.000000e+02 : f32
    %258 = vector.shape_cast %257 : vector<8x1xi1> to vector<8x1xi1>
    %259 = vector.broadcast %258 : vector<8x1xi1> to vector<8x128xi1>
    %260 = vector.broadcast %cst_116 : f32 to vector<8x128xf32>
    %261 = arith.select %259, %179, %260 : vector<8x128xi1>, vector<8x128xf32>
    %262 = arith.maximumf %255, %261 : vector<8x128xf32>
    %c0_117 = arith.constant 0 : index
    %c0_118 = arith.constant 0 : index
    %263 = vector.load %arg14[%c0_117, %c0_118] : memref<8x128xf32, #tpu.memory_space<vmem>>, vector<8x128xf32>
    tpu.vector_store %arg14[%c0_117, %c0_118], %262 {strides = array<i32>} : memref<8x128xf32, #tpu.memory_space<vmem>>, vector<8x128xf32>,
    %c0_119 = arith.constant 0 : index
    %c0_120 = arith.constant 0 : index
    %264 = vector.load %arg15[%c0_119, %c0_120] : memref<8x128xf32, #tpu.memory_space<vmem>>, vector<8x128xf32>
    %cst_121 = arith.constant 0.000000e+00 : f32
    %265 = vector.broadcast %cst_121 : f32 to vector<8x1xf32>
    %266 = arith.cmpf ogt, %206, %265 : vector<8x1xf32>
    %cst_122 = arith.constant -1.000000e+02 : f32
    %267 = vector.shape_cast %266 : vector<8x1xi1> to vector<8x1xi1>
    %268 = vector.broadcast %267 : vector<8x1xi1> to vector<8x128xi1>
    %269 = vector.broadcast %cst_122 : f32 to vector<8x128xf32>
    %270 = arith.select %268, %198, %269 : vector<8x128xi1>, vector<8x128xf32>
    %271 = arith.maximumf %264, %270 : vector<8x128xf32>
    %c0_123 = arith.constant 0 : index
    %c0_124 = arith.constant 0 : index
    %272 = vector.load %arg15[%c0_123, %c0_124] : memref<8x128xf32, #tpu.memory_space<vmem>>, vector<8x128xf32>
    tpu.vector_store %arg15[%c0_123, %c0_124], %271 {strides = array<i32>} : memref<8x128xf32, #tpu.memory_space<vmem>>, vector<8x128xf32>,
    %c2_i32 = arith.constant 2 : i32
    %c3_i32_125 = arith.constant 3 : i32
    %273 = arith.subi %c3_i32_125, %c2_i32 : i32
    %274 = arith.addi %4, %c2_i32 : i32
    %275 = arith.addi %6, %273 : i32
    %c0_126 = arith.constant 0 : index
    %c0_127 = arith.constant 0 : index
    %276 = vector.load %arg10[%c0_126, %c0_127] : memref<8x128xf32, #tpu.memory_space<vmem>>, vector<8x128xf32>
    %277 = arith.truncf %276 : vector<8x128xf32> to vector<8x128xbf16>
    %c0_128 = arith.constant 0 : index
    %c0_129 = arith.constant 0 : index
    %278 = vector.load %arg4[%c0_128, %c0_129] : memref<128x512xbf16, #tpu.memory_space<vmem>>, vector<128x512xbf16>
    %cst_130 = arith.constant dense<0.000000e+00> : vector<8x512xf32>
    %279 = tpu.matmul %277, %278, %cst_130 {dimension_numbers = #tpu.dot_dimension_numbers<[1], [0], [0], [1], [0, 0, 1, 1], [], []>} : vector<8x128xbf16>, vector<128x512xbf16>, vector<8x512xf32> -> vector<8x512xf32>
    %c0_131 = arith.constant 0 : index
    %c0_132 = arith.constant 0 : index
    %280 = vector.load %arg12[%c0_131, %c0_132] : memref<8x128xf32, #tpu.memory_space<vmem>>, vector<8x128xf32>
    %281 = arith.truncf %280 : vector<8x128xf32> to vector<8x128xbf16>
    %c0_133 = arith.constant 0 : index
    %c0_134 = arith.constant 0 : index
    %282 = vector.load %arg5[%c0_133, %c0_134] : memref<128x512xbf16, #tpu.memory_space<vmem>>, vector<128x512xbf16>
    %cst_135 = arith.constant dense<0.000000e+00> : vector<8x512xf32>
    %283 = tpu.matmul %281, %282, %cst_135 {dimension_numbers = #tpu.dot_dimension_numbers<[1], [0], [0], [1], [0, 0, 1, 1], [], []>} : vector<8x128xbf16>, vector<128x512xbf16>, vector<8x512xf32> -> vector<8x512xf32>
    %284 = arith.index_cast %c2_i32 : i32 to index
    %c0_136 = arith.constant 0 : index
    %c0_137 = arith.constant 0 : index
    %285 = vector.load %arg2[%284, %c0_136, %c0_137] : memref<4x8x512xbf16, #tpu.memory_space<vmem>>, vector<1x8x512xbf16>
    %286 = vector.shape_cast %285 : vector<1x8x512xbf16> to vector<8x512xbf16>
    %287 = arith.extf %286 : vector<8x512xbf16> to vector<8x512xf32>
    %288 = arith.addf %287, %279 : vector<8x512xf32>
    %289 = arith.index_cast %273 : i32 to index
    %c0_138 = arith.constant 0 : index
    %c0_139 = arith.constant 0 : index
    %290 = vector.load %arg3[%289, %c0_138, %c0_139] : memref<4x8x512xbf16, #tpu.memory_space<vmem>>, vector<1x8x512xbf16>
    %291 = vector.shape_cast %290 : vector<1x8x512xbf16> to vector<8x512xbf16>
    %292 = arith.extf %291 : vector<8x512xbf16> to vector<8x512xf32>
    %293 = arith.addf %292, %283 : vector<8x512xf32>
    %c0_140 = arith.constant 0 : index
    %c0_141 = arith.constant 0 : index
    %294 = vector.load %arg11[%c0_140, %c0_141] : memref<8x128xf32, #tpu.memory_space<vmem>>, vector<8x128xf32>
    %295 = vector.extract_strided_slice %288 {offsets = [0, 0], sizes = [8, 384], strides = [1, 1]} : vector<8x512xf32> to vector<8x384xf32>
    %cst_142 = arith.constant 5.000000e-01 : f32
    %296 = vector.broadcast %cst_142 : f32 to vector<8x384xf32>
    %297 = arith.mulf %296, %295 : vector<8x384xf32>
    %298 = math.tanh %297 : vector<8x384xf32>
    %cst_143 = arith.constant 5.000000e-01 : f32
    %299 = vector.broadcast %cst_143 : f32 to vector<8x384xf32>
    %300 = arith.mulf %299, %298 : vector<8x384xf32>
    %cst_144 = arith.constant 5.000000e-01 : f32
    %301 = vector.broadcast %cst_144 : f32 to vector<8x384xf32>
    %302 = arith.addf %300, %301 : vector<8x384xf32>
    %303 = vector.extract_strided_slice %302 {offsets = [0, 0], sizes = [8, 128], strides = [1, 1]} : vector<8x384xf32> to vector<8x128xf32>
    %304 = vector.extract_strided_slice %302 {offsets = [0, 128], sizes = [8, 128], strides = [1, 1]} : vector<8x384xf32> to vector<8x128xf32>
    %305 = vector.extract_strided_slice %302 {offsets = [0, 256], sizes = [8, 128], strides = [1, 1]} : vector<8x384xf32> to vector<8x128xf32>
    %306 = vector.extract_strided_slice %288 {offsets = [0, 384], sizes = [8, 128], strides = [1, 1]} : vector<8x512xf32> to vector<8x128xf32>
    %307 = math.tanh %306 : vector<8x128xf32>
    %308 = arith.mulf %304, %294 : vector<8x128xf32>
    %309 = arith.mulf %303, %307 : vector<8x128xf32>
    %310 = arith.addf %308, %309 : vector<8x128xf32>
    %311 = math.tanh %310 : vector<8x128xf32>
    %312 = arith.mulf %305, %311 : vector<8x128xf32>
    %c0_145 = arith.constant 0 : index
    %c0_146 = arith.constant 0 : index
    %313 = vector.load %arg13[%c0_145, %c0_146] : memref<8x128xf32, #tpu.memory_space<vmem>>, vector<8x128xf32>
    %314 = vector.extract_strided_slice %293 {offsets = [0, 0], sizes = [8, 384], strides = [1, 1]} : vector<8x512xf32> to vector<8x384xf32>
    %cst_147 = arith.constant 5.000000e-01 : f32
    %315 = vector.broadcast %cst_147 : f32 to vector<8x384xf32>
    %316 = arith.mulf %315, %314 : vector<8x384xf32>
    %317 = math.tanh %316 : vector<8x384xf32>
    %cst_148 = arith.constant 5.000000e-01 : f32
    %318 = vector.broadcast %cst_148 : f32 to vector<8x384xf32>
    %319 = arith.mulf %318, %317 : vector<8x384xf32>
    %cst_149 = arith.constant 5.000000e-01 : f32
    %320 = vector.broadcast %cst_149 : f32 to vector<8x384xf32>
    %321 = arith.addf %319, %320 : vector<8x384xf32>
    %322 = vector.extract_strided_slice %321 {offsets = [0, 0], sizes = [8, 128], strides = [1, 1]} : vector<8x384xf32> to vector<8x128xf32>
    %323 = vector.extract_strided_slice %321 {offsets = [0, 128], sizes = [8, 128], strides = [1, 1]} : vector<8x384xf32> to vector<8x128xf32>
    %324 = vector.extract_strided_slice %321 {offsets = [0, 256], sizes = [8, 128], strides = [1, 1]} : vector<8x384xf32> to vector<8x128xf32>
    %325 = vector.extract_strided_slice %293 {offsets = [0, 384], sizes = [8, 128], strides = [1, 1]} : vector<8x512xf32> to vector<8x128xf32>
    %326 = math.tanh %325 : vector<8x128xf32>
    %327 = arith.mulf %323, %313 : vector<8x128xf32>
    %328 = arith.mulf %322, %326 : vector<8x128xf32>
    %329 = arith.addf %327, %328 : vector<8x128xf32>
    %330 = math.tanh %329 : vector<8x128xf32>
    %331 = arith.mulf %324, %330 : vector<8x128xf32>
    %332 = vector.broadcast %274 : i32 to vector<8x1xi32>
    %333 = arith.cmpi slt, %332, %3 : vector<8x1xi32>
    %334 = arith.extui %333 : vector<8x1xi1> to vector<8x1xi32>
    %335 = arith.sitofp %334 : vector<8x1xi32> to vector<8x1xf32>
    %336 = vector.broadcast %275 : i32 to vector<8x1xi32>
    %337 = arith.cmpi slt, %336, %3 : vector<8x1xi32>
    %338 = arith.extui %337 : vector<8x1xi1> to vector<8x1xi32>
    %339 = arith.sitofp %338 : vector<8x1xi32> to vector<8x1xf32>
    %340 = vector.broadcast %335 : vector<8x1xf32> to vector<8x128xf32>
    %341 = arith.mulf %340, %312 : vector<8x128xf32>
    %cst_150 = arith.constant 1.000000e+00 : f32
    %342 = vector.broadcast %cst_150 : f32 to vector<8x1xf32>
    %343 = arith.subf %342, %335 : vector<8x1xf32>
    %c0_151 = arith.constant 0 : index
    %c0_152 = arith.constant 0 : index
    %344 = vector.load %arg10[%c0_151, %c0_152] : memref<8x128xf32, #tpu.memory_space<vmem>>, vector<8x128xf32>
    %345 = vector.broadcast %343 : vector<8x1xf32> to vector<8x128xf32>
    %346 = arith.mulf %345, %344 : vector<8x128xf32>
    %347 = arith.addf %341, %346 : vector<8x128xf32>
    %c0_153 = arith.constant 0 : index
    %c0_154 = arith.constant 0 : index
    %348 = vector.load %arg10[%c0_153, %c0_154] : memref<8x128xf32, #tpu.memory_space<vmem>>, vector<8x128xf32>
    tpu.vector_store %arg10[%c0_153, %c0_154], %347 {strides = array<i32>} : memref<8x128xf32, #tpu.memory_space<vmem>>, vector<8x128xf32>,
    %349 = vector.broadcast %335 : vector<8x1xf32> to vector<8x128xf32>
    %350 = arith.mulf %349, %310 : vector<8x128xf32>
    %cst_155 = arith.constant 1.000000e+00 : f32
    %351 = vector.broadcast %cst_155 : f32 to vector<8x1xf32>
    %352 = arith.subf %351, %335 : vector<8x1xf32>
    %c0_156 = arith.constant 0 : index
    %c0_157 = arith.constant 0 : index
    %353 = vector.load %arg11[%c0_156, %c0_157] : memref<8x128xf32, #tpu.memory_space<vmem>>, vector<8x128xf32>
    %354 = vector.broadcast %352 : vector<8x1xf32> to vector<8x128xf32>
    %355 = arith.mulf %354, %353 : vector<8x128xf32>
    %356 = arith.addf %350, %355 : vector<8x128xf32>
    %c0_158 = arith.constant 0 : index
    %c0_159 = arith.constant 0 : index
    %357 = vector.load %arg11[%c0_158, %c0_159] : memref<8x128xf32, #tpu.memory_space<vmem>>, vector<8x128xf32>
    tpu.vector_store %arg11[%c0_158, %c0_159], %356 {strides = array<i32>} : memref<8x128xf32, #tpu.memory_space<vmem>>, vector<8x128xf32>,
    %358 = vector.broadcast %339 : vector<8x1xf32> to vector<8x128xf32>
    %359 = arith.mulf %358, %331 : vector<8x128xf32>
    %cst_160 = arith.constant 1.000000e+00 : f32
    %360 = vector.broadcast %cst_160 : f32 to vector<8x1xf32>
    %361 = arith.subf %360, %339 : vector<8x1xf32>
    %c0_161 = arith.constant 0 : index
    %c0_162 = arith.constant 0 : index
    %362 = vector.load %arg12[%c0_161, %c0_162] : memref<8x128xf32, #tpu.memory_space<vmem>>, vector<8x128xf32>
    %363 = vector.broadcast %361 : vector<8x1xf32> to vector<8x128xf32>
    %364 = arith.mulf %363, %362 : vector<8x128xf32>
    %365 = arith.addf %359, %364 : vector<8x128xf32>
    %c0_163 = arith.constant 0 : index
    %c0_164 = arith.constant 0 : index
    %366 = vector.load %arg12[%c0_163, %c0_164] : memref<8x128xf32, #tpu.memory_space<vmem>>, vector<8x128xf32>
    tpu.vector_store %arg12[%c0_163, %c0_164], %365 {strides = array<i32>} : memref<8x128xf32, #tpu.memory_space<vmem>>, vector<8x128xf32>,
    %367 = vector.broadcast %339 : vector<8x1xf32> to vector<8x128xf32>
    %368 = arith.mulf %367, %329 : vector<8x128xf32>
    %cst_165 = arith.constant 1.000000e+00 : f32
    %369 = vector.broadcast %cst_165 : f32 to vector<8x1xf32>
    %370 = arith.subf %369, %339 : vector<8x1xf32>
    %c0_166 = arith.constant 0 : index
    %c0_167 = arith.constant 0 : index
    %371 = vector.load %arg13[%c0_166, %c0_167] : memref<8x128xf32, #tpu.memory_space<vmem>>, vector<8x128xf32>
    %372 = vector.broadcast %370 : vector<8x1xf32> to vector<8x128xf32>
    %373 = arith.mulf %372, %371 : vector<8x128xf32>
    %374 = arith.addf %368, %373 : vector<8x128xf32>
    %c0_168 = arith.constant 0 : index
    %c0_169 = arith.constant 0 : index
    %375 = vector.load %arg13[%c0_168, %c0_169] : memref<8x128xf32, #tpu.memory_space<vmem>>, vector<8x128xf32>
    tpu.vector_store %arg13[%c0_168, %c0_169], %374 {strides = array<i32>} : memref<8x128xf32, #tpu.memory_space<vmem>>, vector<8x128xf32>,
    %376 = vector.broadcast %335 : vector<8x1xf32> to vector<8x128xf32>
    %377 = arith.mulf %376, %312 : vector<8x128xf32>
    %378 = arith.index_cast %c2_i32 : i32 to index
    %c0_170 = arith.constant 0 : index
    %c0_171 = arith.constant 0 : index
    %379 = vector.load %arg6[%378, %c0_170, %c0_171] : memref<4x8x128xf32, #tpu.memory_space<vmem>>, vector<1x8x128xf32>
    %380 = vector.shape_cast %379 : vector<1x8x128xf32> to vector<8x128xf32>
    %381 = vector.shape_cast %377 : vector<8x128xf32> to vector<1x8x128xf32>
    tpu.vector_store %arg6[%378, %c0_170, %c0_171], %381 {strides = array<i32>} : memref<4x8x128xf32, #tpu.memory_space<vmem>>, vector<1x8x128xf32>,
    %382 = vector.broadcast %339 : vector<8x1xf32> to vector<8x128xf32>
    %383 = arith.mulf %382, %331 : vector<8x128xf32>
    %384 = arith.index_cast %273 : i32 to index
    %c0_172 = arith.constant 0 : index
    %c0_173 = arith.constant 0 : index
    %385 = vector.load %arg7[%384, %c0_172, %c0_173] : memref<4x8x128xf32, #tpu.memory_space<vmem>>, vector<1x8x128xf32>
    %386 = vector.shape_cast %385 : vector<1x8x128xf32> to vector<8x128xf32>
    %387 = vector.shape_cast %383 : vector<8x128xf32> to vector<1x8x128xf32>
    tpu.vector_store %arg7[%384, %c0_172, %c0_173], %387 {strides = array<i32>} : memref<4x8x128xf32, #tpu.memory_space<vmem>>, vector<1x8x128xf32>,
    %c0_174 = arith.constant 0 : index
    %c0_175 = arith.constant 0 : index
    %388 = vector.load %arg14[%c0_174, %c0_175] : memref<8x128xf32, #tpu.memory_space<vmem>>, vector<8x128xf32>
    %cst_176 = arith.constant 0.000000e+00 : f32
    %389 = vector.broadcast %cst_176 : f32 to vector<8x1xf32>
    %390 = arith.cmpf ogt, %335, %389 : vector<8x1xf32>
    %cst_177 = arith.constant -1.000000e+02 : f32
    %391 = vector.shape_cast %390 : vector<8x1xi1> to vector<8x1xi1>
    %392 = vector.broadcast %391 : vector<8x1xi1> to vector<8x128xi1>
    %393 = vector.broadcast %cst_177 : f32 to vector<8x128xf32>
    %394 = arith.select %392, %312, %393 : vector<8x128xi1>, vector<8x128xf32>
    %395 = arith.maximumf %388, %394 : vector<8x128xf32>
    %c0_178 = arith.constant 0 : index
    %c0_179 = arith.constant 0 : index
    %396 = vector.load %arg14[%c0_178, %c0_179] : memref<8x128xf32, #tpu.memory_space<vmem>>, vector<8x128xf32>
    tpu.vector_store %arg14[%c0_178, %c0_179], %395 {strides = array<i32>} : memref<8x128xf32, #tpu.memory_space<vmem>>, vector<8x128xf32>,
    %c0_180 = arith.constant 0 : index
    %c0_181 = arith.constant 0 : index
    %397 = vector.load %arg15[%c0_180, %c0_181] : memref<8x128xf32, #tpu.memory_space<vmem>>, vector<8x128xf32>
    %cst_182 = arith.constant 0.000000e+00 : f32
    %398 = vector.broadcast %cst_182 : f32 to vector<8x1xf32>
    %399 = arith.cmpf ogt, %339, %398 : vector<8x1xf32>
    %cst_183 = arith.constant -1.000000e+02 : f32
    %400 = vector.shape_cast %399 : vector<8x1xi1> to vector<8x1xi1>
    %401 = vector.broadcast %400 : vector<8x1xi1> to vector<8x128xi1>
    %402 = vector.broadcast %cst_183 : f32 to vector<8x128xf32>
    %403 = arith.select %401, %331, %402 : vector<8x128xi1>, vector<8x128xf32>
    %404 = arith.maximumf %397, %403 : vector<8x128xf32>
    %c0_184 = arith.constant 0 : index
    %c0_185 = arith.constant 0 : index
    %405 = vector.load %arg15[%c0_184, %c0_185] : memref<8x128xf32, #tpu.memory_space<vmem>>, vector<8x128xf32>
    tpu.vector_store %arg15[%c0_184, %c0_185], %404 {strides = array<i32>} : memref<8x128xf32, #tpu.memory_space<vmem>>, vector<8x128xf32>,
    %c3_i32_186 = arith.constant 3 : i32
    %c3_i32_187 = arith.constant 3 : i32
    %406 = arith.subi %c3_i32_187, %c3_i32_186 : i32
    %407 = arith.addi %4, %c3_i32_186 : i32
    %408 = arith.addi %6, %406 : i32
    %c0_188 = arith.constant 0 : index
    %c0_189 = arith.constant 0 : index
    %409 = vector.load %arg10[%c0_188, %c0_189] : memref<8x128xf32, #tpu.memory_space<vmem>>, vector<8x128xf32>
    %410 = arith.truncf %409 : vector<8x128xf32> to vector<8x128xbf16>
    %c0_190 = arith.constant 0 : index
    %c0_191 = arith.constant 0 : index
    %411 = vector.load %arg4[%c0_190, %c0_191] : memref<128x512xbf16, #tpu.memory_space<vmem>>, vector<128x512xbf16>
    %cst_192 = arith.constant dense<0.000000e+00> : vector<8x512xf32>
    %412 = tpu.matmul %410, %411, %cst_192 {dimension_numbers = #tpu.dot_dimension_numbers<[1], [0], [0], [1], [0, 0, 1, 1], [], []>} : vector<8x128xbf16>, vector<128x512xbf16>, vector<8x512xf32> -> vector<8x512xf32>
    %c0_193 = arith.constant 0 : index
    %c0_194 = arith.constant 0 : index
    %413 = vector.load %arg12[%c0_193, %c0_194] : memref<8x128xf32, #tpu.memory_space<vmem>>, vector<8x128xf32>
    %414 = arith.truncf %413 : vector<8x128xf32> to vector<8x128xbf16>
    %c0_195 = arith.constant 0 : index
    %c0_196 = arith.constant 0 : index
    %415 = vector.load %arg5[%c0_195, %c0_196] : memref<128x512xbf16, #tpu.memory_space<vmem>>, vector<128x512xbf16>
    %cst_197 = arith.constant dense<0.000000e+00> : vector<8x512xf32>
    %416 = tpu.matmul %414, %415, %cst_197 {dimension_numbers = #tpu.dot_dimension_numbers<[1], [0], [0], [1], [0, 0, 1, 1], [], []>} : vector<8x128xbf16>, vector<128x512xbf16>, vector<8x512xf32> -> vector<8x512xf32>
    %417 = arith.index_cast %c3_i32_186 : i32 to index
    %c0_198 = arith.constant 0 : index
    %c0_199 = arith.constant 0 : index
    %418 = vector.load %arg2[%417, %c0_198, %c0_199] : memref<4x8x512xbf16, #tpu.memory_space<vmem>>, vector<1x8x512xbf16>
    %419 = vector.shape_cast %418 : vector<1x8x512xbf16> to vector<8x512xbf16>
    %420 = arith.extf %419 : vector<8x512xbf16> to vector<8x512xf32>
    %421 = arith.addf %420, %412 : vector<8x512xf32>
    %422 = arith.index_cast %406 : i32 to index
    %c0_200 = arith.constant 0 : index
    %c0_201 = arith.constant 0 : index
    %423 = vector.load %arg3[%422, %c0_200, %c0_201] : memref<4x8x512xbf16, #tpu.memory_space<vmem>>, vector<1x8x512xbf16>
    %424 = vector.shape_cast %423 : vector<1x8x512xbf16> to vector<8x512xbf16>
    %425 = arith.extf %424 : vector<8x512xbf16> to vector<8x512xf32>
    %426 = arith.addf %425, %416 : vector<8x512xf32>
    %c0_202 = arith.constant 0 : index
    %c0_203 = arith.constant 0 : index
    %427 = vector.load %arg11[%c0_202, %c0_203] : memref<8x128xf32, #tpu.memory_space<vmem>>, vector<8x128xf32>
    %428 = vector.extract_strided_slice %421 {offsets = [0, 0], sizes = [8, 384], strides = [1, 1]} : vector<8x512xf32> to vector<8x384xf32>
    %cst_204 = arith.constant 5.000000e-01 : f32
    %429 = vector.broadcast %cst_204 : f32 to vector<8x384xf32>
    %430 = arith.mulf %429, %428 : vector<8x384xf32>
    %431 = math.tanh %430 : vector<8x384xf32>
    %cst_205 = arith.constant 5.000000e-01 : f32
    %432 = vector.broadcast %cst_205 : f32 to vector<8x384xf32>
    %433 = arith.mulf %432, %431 : vector<8x384xf32>
    %cst_206 = arith.constant 5.000000e-01 : f32
    %434 = vector.broadcast %cst_206 : f32 to vector<8x384xf32>
    %435 = arith.addf %433, %434 : vector<8x384xf32>
    %436 = vector.extract_strided_slice %435 {offsets = [0, 0], sizes = [8, 128], strides = [1, 1]} : vector<8x384xf32> to vector<8x128xf32>
    %437 = vector.extract_strided_slice %435 {offsets = [0, 128], sizes = [8, 128], strides = [1, 1]} : vector<8x384xf32> to vector<8x128xf32>
    %438 = vector.extract_strided_slice %435 {offsets = [0, 256], sizes = [8, 128], strides = [1, 1]} : vector<8x384xf32> to vector<8x128xf32>
    %439 = vector.extract_strided_slice %421 {offsets = [0, 384], sizes = [8, 128], strides = [1, 1]} : vector<8x512xf32> to vector<8x128xf32>
    %440 = math.tanh %439 : vector<8x128xf32>
    %441 = arith.mulf %437, %427 : vector<8x128xf32>
    %442 = arith.mulf %436, %440 : vector<8x128xf32>
    %443 = arith.addf %441, %442 : vector<8x128xf32>
    %444 = math.tanh %443 : vector<8x128xf32>
    %445 = arith.mulf %438, %444 : vector<8x128xf32>
    %c0_207 = arith.constant 0 : index
    %c0_208 = arith.constant 0 : index
    %446 = vector.load %arg13[%c0_207, %c0_208] : memref<8x128xf32, #tpu.memory_space<vmem>>, vector<8x128xf32>
    %447 = vector.extract_strided_slice %426 {offsets = [0, 0], sizes = [8, 384], strides = [1, 1]} : vector<8x512xf32> to vector<8x384xf32>
    %cst_209 = arith.constant 5.000000e-01 : f32
    %448 = vector.broadcast %cst_209 : f32 to vector<8x384xf32>
    %449 = arith.mulf %448, %447 : vector<8x384xf32>
    %450 = math.tanh %449 : vector<8x384xf32>
    %cst_210 = arith.constant 5.000000e-01 : f32
    %451 = vector.broadcast %cst_210 : f32 to vector<8x384xf32>
    %452 = arith.mulf %451, %450 : vector<8x384xf32>
    %cst_211 = arith.constant 5.000000e-01 : f32
    %453 = vector.broadcast %cst_211 : f32 to vector<8x384xf32>
    %454 = arith.addf %452, %453 : vector<8x384xf32>
    %455 = vector.extract_strided_slice %454 {offsets = [0, 0], sizes = [8, 128], strides = [1, 1]} : vector<8x384xf32> to vector<8x128xf32>
    %456 = vector.extract_strided_slice %454 {offsets = [0, 128], sizes = [8, 128], strides = [1, 1]} : vector<8x384xf32> to vector<8x128xf32>
    %457 = vector.extract_strided_slice %454 {offsets = [0, 256], sizes = [8, 128], strides = [1, 1]} : vector<8x384xf32> to vector<8x128xf32>
    %458 = vector.extract_strided_slice %426 {offsets = [0, 384], sizes = [8, 128], strides = [1, 1]} : vector<8x512xf32> to vector<8x128xf32>
    %459 = math.tanh %458 : vector<8x128xf32>
    %460 = arith.mulf %456, %446 : vector<8x128xf32>
    %461 = arith.mulf %455, %459 : vector<8x128xf32>
    %462 = arith.addf %460, %461 : vector<8x128xf32>
    %463 = math.tanh %462 : vector<8x128xf32>
    %464 = arith.mulf %457, %463 : vector<8x128xf32>
    %465 = vector.broadcast %407 : i32 to vector<8x1xi32>
    %466 = arith.cmpi slt, %465, %3 : vector<8x1xi32>
    %467 = arith.extui %466 : vector<8x1xi1> to vector<8x1xi32>
    %468 = arith.sitofp %467 : vector<8x1xi32> to vector<8x1xf32>
    %469 = vector.broadcast %408 : i32 to vector<8x1xi32>
    %470 = arith.cmpi slt, %469, %3 : vector<8x1xi32>
    %471 = arith.extui %470 : vector<8x1xi1> to vector<8x1xi32>
    %472 = arith.sitofp %471 : vector<8x1xi32> to vector<8x1xf32>
    %473 = vector.broadcast %468 : vector<8x1xf32> to vector<8x128xf32>
    %474 = arith.mulf %473, %445 : vector<8x128xf32>
    %cst_212 = arith.constant 1.000000e+00 : f32
    %475 = vector.broadcast %cst_212 : f32 to vector<8x1xf32>
    %476 = arith.subf %475, %468 : vector<8x1xf32>
    %c0_213 = arith.constant 0 : index
    %c0_214 = arith.constant 0 : index
    %477 = vector.load %arg10[%c0_213, %c0_214] : memref<8x128xf32, #tpu.memory_space<vmem>>, vector<8x128xf32>
    %478 = vector.broadcast %476 : vector<8x1xf32> to vector<8x128xf32>
    %479 = arith.mulf %478, %477 : vector<8x128xf32>
    %480 = arith.addf %474, %479 : vector<8x128xf32>
    %c0_215 = arith.constant 0 : index
    %c0_216 = arith.constant 0 : index
    %481 = vector.load %arg10[%c0_215, %c0_216] : memref<8x128xf32, #tpu.memory_space<vmem>>, vector<8x128xf32>
    tpu.vector_store %arg10[%c0_215, %c0_216], %480 {strides = array<i32>} : memref<8x128xf32, #tpu.memory_space<vmem>>, vector<8x128xf32>,
    %482 = vector.broadcast %468 : vector<8x1xf32> to vector<8x128xf32>
    %483 = arith.mulf %482, %443 : vector<8x128xf32>
    %cst_217 = arith.constant 1.000000e+00 : f32
    %484 = vector.broadcast %cst_217 : f32 to vector<8x1xf32>
    %485 = arith.subf %484, %468 : vector<8x1xf32>
    %c0_218 = arith.constant 0 : index
    %c0_219 = arith.constant 0 : index
    %486 = vector.load %arg11[%c0_218, %c0_219] : memref<8x128xf32, #tpu.memory_space<vmem>>, vector<8x128xf32>
    %487 = vector.broadcast %485 : vector<8x1xf32> to vector<8x128xf32>
    %488 = arith.mulf %487, %486 : vector<8x128xf32>
    %489 = arith.addf %483, %488 : vector<8x128xf32>
    %c0_220 = arith.constant 0 : index
    %c0_221 = arith.constant 0 : index
    %490 = vector.load %arg11[%c0_220, %c0_221] : memref<8x128xf32, #tpu.memory_space<vmem>>, vector<8x128xf32>
    tpu.vector_store %arg11[%c0_220, %c0_221], %489 {strides = array<i32>} : memref<8x128xf32, #tpu.memory_space<vmem>>, vector<8x128xf32>,
    %491 = vector.broadcast %472 : vector<8x1xf32> to vector<8x128xf32>
    %492 = arith.mulf %491, %464 : vector<8x128xf32>
    %cst_222 = arith.constant 1.000000e+00 : f32
    %493 = vector.broadcast %cst_222 : f32 to vector<8x1xf32>
    %494 = arith.subf %493, %472 : vector<8x1xf32>
    %c0_223 = arith.constant 0 : index
    %c0_224 = arith.constant 0 : index
    %495 = vector.load %arg12[%c0_223, %c0_224] : memref<8x128xf32, #tpu.memory_space<vmem>>, vector<8x128xf32>
    %496 = vector.broadcast %494 : vector<8x1xf32> to vector<8x128xf32>
    %497 = arith.mulf %496, %495 : vector<8x128xf32>
    %498 = arith.addf %492, %497 : vector<8x128xf32>
    %c0_225 = arith.constant 0 : index
    %c0_226 = arith.constant 0 : index
    %499 = vector.load %arg12[%c0_225, %c0_226] : memref<8x128xf32, #tpu.memory_space<vmem>>, vector<8x128xf32>
    tpu.vector_store %arg12[%c0_225, %c0_226], %498 {strides = array<i32>} : memref<8x128xf32, #tpu.memory_space<vmem>>, vector<8x128xf32>,
    %500 = vector.broadcast %472 : vector<8x1xf32> to vector<8x128xf32>
    %501 = arith.mulf %500, %462 : vector<8x128xf32>
    %cst_227 = arith.constant 1.000000e+00 : f32
    %502 = vector.broadcast %cst_227 : f32 to vector<8x1xf32>
    %503 = arith.subf %502, %472 : vector<8x1xf32>
    %c0_228 = arith.constant 0 : index
    %c0_229 = arith.constant 0 : index
    %504 = vector.load %arg13[%c0_228, %c0_229] : memref<8x128xf32, #tpu.memory_space<vmem>>, vector<8x128xf32>
    %505 = vector.broadcast %503 : vector<8x1xf32> to vector<8x128xf32>
    %506 = arith.mulf %505, %504 : vector<8x128xf32>
    %507 = arith.addf %501, %506 : vector<8x128xf32>
    %c0_230 = arith.constant 0 : index
    %c0_231 = arith.constant 0 : index
    %508 = vector.load %arg13[%c0_230, %c0_231] : memref<8x128xf32, #tpu.memory_space<vmem>>, vector<8x128xf32>
    tpu.vector_store %arg13[%c0_230, %c0_231], %507 {strides = array<i32>} : memref<8x128xf32, #tpu.memory_space<vmem>>, vector<8x128xf32>,
    %509 = vector.broadcast %468 : vector<8x1xf32> to vector<8x128xf32>
    %510 = arith.mulf %509, %445 : vector<8x128xf32>
    %511 = arith.index_cast %c3_i32_186 : i32 to index
    %c0_232 = arith.constant 0 : index
    %c0_233 = arith.constant 0 : index
    %512 = vector.load %arg6[%511, %c0_232, %c0_233] : memref<4x8x128xf32, #tpu.memory_space<vmem>>, vector<1x8x128xf32>
    %513 = vector.shape_cast %512 : vector<1x8x128xf32> to vector<8x128xf32>
    %514 = vector.shape_cast %510 : vector<8x128xf32> to vector<1x8x128xf32>
    tpu.vector_store %arg6[%511, %c0_232, %c0_233], %514 {strides = array<i32>} : memref<4x8x128xf32, #tpu.memory_space<vmem>>, vector<1x8x128xf32>,
    %515 = vector.broadcast %472 : vector<8x1xf32> to vector<8x128xf32>
    %516 = arith.mulf %515, %464 : vector<8x128xf32>
    %517 = arith.index_cast %406 : i32 to index
    %c0_234 = arith.constant 0 : index
    %c0_235 = arith.constant 0 : index
    %518 = vector.load %arg7[%517, %c0_234, %c0_235] : memref<4x8x128xf32, #tpu.memory_space<vmem>>, vector<1x8x128xf32>
    %519 = vector.shape_cast %518 : vector<1x8x128xf32> to vector<8x128xf32>
    %520 = vector.shape_cast %516 : vector<8x128xf32> to vector<1x8x128xf32>
    tpu.vector_store %arg7[%517, %c0_234, %c0_235], %520 {strides = array<i32>} : memref<4x8x128xf32, #tpu.memory_space<vmem>>, vector<1x8x128xf32>,
    %c0_236 = arith.constant 0 : index
    %c0_237 = arith.constant 0 : index
    %521 = vector.load %arg14[%c0_236, %c0_237] : memref<8x128xf32, #tpu.memory_space<vmem>>, vector<8x128xf32>
    %cst_238 = arith.constant 0.000000e+00 : f32
    %522 = vector.broadcast %cst_238 : f32 to vector<8x1xf32>
    %523 = arith.cmpf ogt, %468, %522 : vector<8x1xf32>
    %cst_239 = arith.constant -1.000000e+02 : f32
    %524 = vector.shape_cast %523 : vector<8x1xi1> to vector<8x1xi1>
    %525 = vector.broadcast %524 : vector<8x1xi1> to vector<8x128xi1>
    %526 = vector.broadcast %cst_239 : f32 to vector<8x128xf32>
    %527 = arith.select %525, %445, %526 : vector<8x128xi1>, vector<8x128xf32>
    %528 = arith.maximumf %521, %527 : vector<8x128xf32>
    %c0_240 = arith.constant 0 : index
    %c0_241 = arith.constant 0 : index
    %529 = vector.load %arg14[%c0_240, %c0_241] : memref<8x128xf32, #tpu.memory_space<vmem>>, vector<8x128xf32>
    tpu.vector_store %arg14[%c0_240, %c0_241], %528 {strides = array<i32>} : memref<8x128xf32, #tpu.memory_space<vmem>>, vector<8x128xf32>,
    %c0_242 = arith.constant 0 : index
    %c0_243 = arith.constant 0 : index
    %530 = vector.load %arg15[%c0_242, %c0_243] : memref<8x128xf32, #tpu.memory_space<vmem>>, vector<8x128xf32>
    %cst_244 = arith.constant 0.000000e+00 : f32
    %531 = vector.broadcast %cst_244 : f32 to vector<8x1xf32>
    %532 = arith.cmpf ogt, %472, %531 : vector<8x1xf32>
    %cst_245 = arith.constant -1.000000e+02 : f32
    %533 = vector.shape_cast %532 : vector<8x1xi1> to vector<8x1xi1>
    %534 = vector.broadcast %533 : vector<8x1xi1> to vector<8x128xi1>
    %535 = vector.broadcast %cst_245 : f32 to vector<8x128xf32>
    %536 = arith.select %534, %464, %535 : vector<8x128xi1>, vector<8x128xf32>
    %537 = arith.maximumf %530, %536 : vector<8x128xf32>
    %c0_246 = arith.constant 0 : index
    %c0_247 = arith.constant 0 : index
    %538 = vector.load %arg15[%c0_246, %c0_247] : memref<8x128xf32, #tpu.memory_space<vmem>>, vector<8x128xf32>
    tpu.vector_store %arg15[%c0_246, %c0_247], %537 {strides = array<i32>} : memref<8x128xf32, #tpu.memory_space<vmem>>, vector<8x128xf32>,
    %c4_i32_248 = arith.constant 4 : i32
    %c1_i32_249 = arith.constant 1 : i32
    %539 = arith.cmpi eq, %arg0, %c1_i32_249 : i32
    %540 = arith.extui %539 : i1 to i32
    %c0_i32_250 = arith.constant 0 : i32
    %541 = arith.cmpi ne, %540, %c0_i32_250 : i32
    scf.if %541 {
      %c0_251 = arith.constant 0 : index
      %c0_252 = arith.constant 0 : index
      %542 = vector.load %arg14[%c0_251, %c0_252] : memref<8x128xf32, #tpu.memory_space<vmem>>, vector<8x128xf32>
      %c0_253 = arith.constant 0 : index
      %c0_254 = arith.constant 0 : index
      %543 = vector.load %arg8[%c0_253, %c0_254] : memref<8x128xf32, #tpu.memory_space<vmem>>, vector<8x128xf32>
      tpu.vector_store %arg8[%c0_253, %c0_254], %542 {strides = array<i32>} : memref<8x128xf32, #tpu.memory_space<vmem>>, vector<8x128xf32>,
      %c0_255 = arith.constant 0 : index
      %c0_256 = arith.constant 0 : index
      %544 = vector.load %arg15[%c0_255, %c0_256] : memref<8x128xf32, #tpu.memory_space<vmem>>, vector<8x128xf32>
      %c0_257 = arith.constant 0 : index
      %c0_258 = arith.constant 0 : index
      %545 = vector.load %arg9[%c0_257, %c0_258] : memref<8x128xf32, #tpu.memory_space<vmem>>, vector<8x128xf32>
      tpu.vector_store %arg9[%c0_257, %c0_258], %544 {strides = array<i32>} : memref<8x128xf32, #tpu.memory_space<vmem>>, vector<8x128xf32>,
    } else {
    }
    return
  }
  func.func @transform_0(%arg0: i32) -> (i32, i32) {
    %c0_i32 = arith.constant 0 : i32
    %c0_i32_0 = arith.constant 0 : i32
    %c0_i32_1 = arith.constant 0 : i32
    return %c0_i32, %c0_i32_0 : i32, i32
  }
  func.func @transform_1(%arg0: i32) -> (i32, i32, i32) {
    %c0_i32 = arith.constant 0 : i32
    %c0_i32_0 = arith.constant 0 : i32
    %c0_i32_1 = arith.constant 0 : i32
    return %arg0, %c0_i32, %c0_i32_0 : i32, i32, i32
  }
  func.func @transform_2(%arg0: i32) -> (i32, i32, i32) {
    %c1_i32 = arith.constant 1 : i32
    %0 = arith.subi %c1_i32, %arg0 : i32
    %c0_i32 = arith.constant 0 : i32
    %c1_i32_0 = arith.constant 1 : i32
    %c0_i32_1 = arith.constant 0 : i32
    return %0, %c0_i32, %c1_i32_0 : i32, i32, i32
  }
  func.func @transform_3(%arg0: i32) -> (i32, i32) {
    %c0_i32 = arith.constant 0 : i32
    %c0_i32_0 = arith.constant 0 : i32
    %c0_i32_1 = arith.constant 0 : i32
    return %c0_i32, %c0_i32_0 : i32, i32
  }
  func.func @transform_4(%arg0: i32) -> (i32, i32) {
    %c0_i32 = arith.constant 0 : i32
    %c0_i32_0 = arith.constant 0 : i32
    %c0_i32_1 = arith.constant 0 : i32
    return %c0_i32, %c0_i32_0 : i32, i32
  }
  func.func @transform_5(%arg0: i32) -> (i32, i32, i32) {
    %c0_i32 = arith.constant 0 : i32
    %c0_i32_0 = arith.constant 0 : i32
    %c0_i32_1 = arith.constant 0 : i32
    return %arg0, %c0_i32, %c0_i32_0 : i32, i32, i32
  }
  func.func @transform_6(%arg0: i32) -> (i32, i32, i32) {
    %c1_i32 = arith.constant 1 : i32
    %0 = arith.subi %c1_i32, %arg0 : i32
    %c0_i32 = arith.constant 0 : i32
    %c0_i32_0 = arith.constant 0 : i32
    %c0_i32_1 = arith.constant 0 : i32
    return %0, %c0_i32, %c0_i32_0 : i32, i32, i32
  }
  func.func @transform_7(%arg0: i32) -> (i32, i32) {
    %c0_i32 = arith.constant 0 : i32
    %c0_i32_0 = arith.constant 0 : i32
    %c0_i32_1 = arith.constant 0 : i32
    return %c0_i32, %c0_i32_0 : i32, i32
  }
  func.func @transform_8(%arg0: i32) -> (i32, i32) {
    %c0_i32 = arith.constant 0 : i32
    %c0_i32_0 = arith.constant 0 : i32
    %c0_i32_1 = arith.constant 0 : i32
    return %c0_i32, %c0_i32_0 : i32, i32
  }
}

</mosaic_0001>

<llo_original>
// kernel: tpu_custom_call.1
$region0: #{tpu_custom_call.1}
  #allocation0 [shape = 'u32[]', space=smem, size = 0x4, offset = 0x4, fixed_abs, tag = 'smem constant byte address 0x4 - core index']
  #allocation1 [shape = 'u32[144,128]{1,0:T(1,128)}', space=vmem, size = 0x12000, scoped, tag = 'internal scratch']
  #allocation2 [shape = 'f32[8,128]{1,0:T(8,128)}', space=vmem, size = 0x1000, scoped, tag = 'scratch operand']
  #allocation3 [shape = 'f32[8,128]{1,0:T(8,128)}', space=vmem, size = 0x1000, scoped, tag = 'scratch operand']
  #allocation4 [shape = 'f32[8,128]{1,0:T(8,128)}', space=vmem, size = 0x1000, scoped, tag = 'scratch operand']
  #allocation5 [shape = 'f32[8,128]{1,0:T(8,128)}', space=vmem, size = 0x1000, scoped, tag = 'scratch operand']
  #allocation6 [shape = 'f32[8,128]{1,0:T(8,128)}', space=vmem, size = 0x1000, scoped, tag = 'scratch operand']
  #allocation7 [shape = 'f32[8,128]{1,0:T(8,128)}', space=vmem, size = 0x1000, scoped, tag = 'scratch operand']
  %s0 = inlined_call_operand.vmem [shape: s32[8,1], index: 0, kind: input, shape index: {}]
  %s1 = inlined_call_operand.hbm [shape: bf16[8,8,1024], index: 1, kind: input, shape index: {}]
  %s2 = inlined_call_operand.hbm [shape: bf16[8,8,1024], index: 2, kind: input, shape index: {}]
  %s3 = inlined_call_operand.hbm [shape: bf16[128,512], index: 3, kind: input, shape index: {}]
  %s4 = inlined_call_operand.hbm [shape: bf16[128,512], index: 4, kind: input, shape index: {}]
  %s5 = inlined_call_operand.hbm [shape: f32[8,8,128], index: 5, kind: output, shape index: {0}]
  %s6 = inlined_call_operand.hbm [shape: f32[8,8,128], index: 6, kind: output, shape index: {1}]
  %s7 = inlined_call_operand.hbm [shape: f32[8,128], index: 7, kind: output, shape index: {2}]
  %s8 = inlined_call_operand.hbm [shape: f32[8,128], index: 8, kind: output, shape index: {3}]
  %9 = xla_tuple %s5, %s6, %s7, %s8
  %s10 = sld [smem:[#allocation0]]
  $region101: #{tpu_custom_call.1} parent=0
    _
  %s12 = ssub.s32 1, %s10
  %s13 = scalar_select 0, %s12, %s10
  $region1: #{tpu_custom_call.1} parent=0
    #allocation8 [shape = 'u8[65536]{0}', space=vmem, size = 0x10000, scoped, tag = 'input window, operand 1']
    #allocation9 [shape = 's32[2]{0}', space=sflag, size = 0x8, scoped, tag = 'scoped memory for tpu_custom_call.1']
    #allocation10 [shape = 's32[2]{0}', space=sflag, size = 0x8, scoped, tag = 'scoped memory for tpu_custom_call.1']
    #allocation11 [shape = 'u8[65536]{0}', space=vmem, size = 0x10000, scoped, tag = 'input window, operand 2']
    #allocation12 [shape = 's32[2]{0}', space=sflag, size = 0x8, scoped, tag = 'scoped memory for tpu_custom_call.1']
    #allocation13 [shape = 'u8[131072]{0}', space=vmem, size = 0x20000, scoped, tag = 'input window, operand 3, single buffered']
    #allocation14 [shape = 'u8[131072]{0}', space=vmem, size = 0x20000, scoped, tag = 'input window, operand 4, single buffered']
    #allocation15 [shape = 's32[1]{0}', space=sflag, size = 0x4, scoped, tag = 'scoped memory for tpu_custom_call.1']
    #allocation16 [shape = 'u8[32768]{0}', space=vmem, size = 0x8000, scoped, tag = 'output window, operand 0']
    #allocation17 [shape = 'u8[32768]{0}', space=vmem, size = 0x8000, scoped, tag = 'output window, operand 1']
    #allocation18 [shape = 's32[2]{0}', space=sflag, size = 0x8, scoped, tag = 'scoped memory for tpu_custom_call.1']
    #allocation19 [shape = 'u8[4096]{0}', space=vmem, size = 0x1000, scoped, tag = 'output window, operand 2, single buffered']
    #allocation20 [shape = 'u8[4096]{0}', space=vmem, size = 0x1000, scoped, tag = 'output window, operand 3, single buffered']
    #allocation21 [shape = 's32[1]{0}', space=sflag, size = 0x4, scoped, tag = 'scoped memory for tpu_custom_call.1']
    %14 = vsyncpa [#allocation9], 0
    %s15 = scalar_lea.sflag [#allocation9], 1
    %16 = vsyncpa %s15, 0
    %17 = vsyncpa [#allocation12], 0
    %s18 = scalar_lea.sflag [#allocation12], 1
    %19 = vsyncpa %s18, 0
    %20 = vsyncpa [#allocation15], 0
    %21 = vsyncpa [#allocation10], 0
    %s22 = scalar_lea.sflag [#allocation10], 1
    %23 = vsyncpa %s22, 0
    %24 = vsyncpa [#allocation18], 0
    %s25 = scalar_lea.sflag [#allocation18], 1
    %26 = vsyncpa %s25, 0
    %27 = vsyncpa [#allocation21], 0
    loop: start=0, step=1, limit=4
    $region2: #{tpu_custom_call.1} parent=1 // loop_pre_header
      _
    $region3: #{tpu_custom_call.1} parent=1 // loop_header
      %s29 = sphi 0, %s33
      %p30 = scmp.ge.s32.totalorder %s29, 4
      %s37 = sphi 0, %s37
      %s39 = sphi 0, %s37
      %s40 = sphi 0, %s39
      %s54 = sphi 0, %s40
      %s60 = sphi 0, %s62
      %s63 = sphi 0, %s60
      %s64 = sphi 0, %s63
      %s80 = sphi 0, %s64
      %s88 = sphi 0, %s90
      %s91 = sphi 0, %s88
      %s92 = sphi 0, %s91
      %s108 = sphi 0, %s92
      %s112 = sphi 0, %s112
      %s114 = sphi 0, %s112
      %s115 = sphi 0, %s114
      %s129 = sphi 0, %s115
      %s133 = sphi 0, %s133
      %s135 = sphi 0, %s133
      %s136 = sphi 0, %s135
      %s150 = sphi 0, %s136
      %s156 = sphi 0, %s158
      %s159 = sphi 0, %s156
      %s160 = sphi 0, %s159
      %s176 = sphi 0, %s160
      %s184 = sphi 0, %s186
      %s187 = sphi 0, %s184
      %s188 = sphi 0, %s187
      %s204 = sphi 0, %s188
      %s208 = sphi 0, %s208
      %s210 = sphi 0, %s208
      %s211 = sphi 0, %s210
      %s225 = sphi 0, %s211
      %s229 = sphi 0, %s229
      %s231 = sphi 0, %s229
      %s232 = sphi 0, %s231
      %s246 = sphi 0, %s232
    $region4: #{tpu_custom_call.1} parent=1 // loop_header_branch
      %32 = sbr.rel (%p30) target = $region8
    $region5: #{tpu_custom_call.1} parent=1 // loop_body
      %s34 = ssub.s32 %s29, 1
      %s35 = ssub.s32 %s29, 2
      %s36 = sadd.s32 %s29, 1
      %s38 = sadd.s32 %s37, 1
      %p41 = scmp.eq.s32.totalorder %s29, 1
      %p42 = scmp.ne.s32.totalorder %s37, %s39
      %p43 = scmp.eq.s32.totalorder %s29, 0
      %p44 = por %p42, %p43
      %p45 = scmp.ne.s32.totalorder %s37, %s39
      %p46 = scmp.eq.s32.totalorder %s34, 1
      %p47 = por %p45, %p46
      %p48 = scmp.ne.s32.totalorder %s39, %s40
      %p49 = scmp.eq.s32.totalorder %s34, 0
      %p50 = por %p48, %p49
      %p51 = scmp.ne.s32.totalorder %s39, %s40
      %p52 = scmp.eq.s32.totalorder %s35, 1
      %p53 = por %p51, %p52
      %p55 = scmp.ne.s32.totalorder %s40, %s54
      %p56 = scmp.eq.s32.totalorder %s35, 0
      %p57 = por %p55, %p56
      %s58 = ssub.s32 %s29, %s36
      %p59 = scmp.eq.s32.totalorder %s58, 0
      %s61 = sadd.s32 %s60, 1
      %s62 = scalar_select %p59, %s60, %s61
      %p65 = pneg %p59
      %p66 = scmp.eq.s32.totalorder %s29, 1
      %p67 = por %p65, %p66
      %p68 = scmp.ne.s32.totalorder %s60, %s63
      %p69 = scmp.eq.s32.totalorder %s29, 0
      %p70 = por %p68, %p69
      %p71 = scmp.ne.s32.totalorder %s60, %s63
      %p72 = scmp.eq.s32.totalorder %s34, 1
      %p73 = por %p71, %p72
      %p74 = scmp.ne.s32.totalorder %s63, %s64
      %p75 = scmp.eq.s32.totalorder %s34, 0
      %p76 = por %p74, %p75
      %p77 = scmp.ne.s32.totalorder %s63, %s64
      %p78 = scmp.eq.s32.totalorder %s35, 1
      %p79 = por %p77, %p78
      %p81 = scmp.ne.s32.totalorder %s64, %s80
      %p82 = scmp.eq.s32.totalorder %s35, 0
      %p83 = por %p81, %p82
      %s84 = ssub.s32 1, %s29
      %s85 = ssub.s32 1, %s36
      %s86 = ssub.s32 %s84, %s85
      %p87 = scmp.eq.s32.totalorder %s86, 0
      %s89 = sadd.s32 %s88, 1
      %s90 = scalar_select %p87, %s88, %s89
      %p93 = pneg %p87
      %p94 = scmp.eq.s32.totalorder %s29, 1
      %p95 = por %p93, %p94
      %p96 = scmp.ne.s32.totalorder %s88, %s91
      %p97 = scmp.eq.s32.totalorder %s29, 0
      %p98 = por %p96, %p97
      %p99 = scmp.ne.s32.totalorder %s88, %s91
      %p100 = scmp.eq.s32.totalorder %s34, 1
      %p101 = por %p99, %p100
      %p102 = scmp.ne.s32.totalorder %s91, %s92
      %p103 = scmp.eq.s32.totalorder %s34, 0
      %p104 = por %p102, %p103
      %p105 = scmp.ne.s32.totalorder %s91, %s92
      %p106 = scmp.eq.s32.totalorder %s35, 1
      %p107 = por %p105, %p106
      %p109 = scmp.ne.s32.totalorder %s92, %s108
      %p110 = scmp.eq.s32.totalorder %s35, 0
      %p111 = por %p109, %p110
      %s113 = sadd.s32 %s112, 1
      %p116 = scmp.eq.s32.totalorder %s29, 1
      %p117 = scmp.ne.s32.totalorder %s112, %s114
      %p118 = scmp.eq.s32.totalorder %s29, 0
      %p119 = por %p117, %p118
      %p120 = scmp.ne.s32.totalorder %s112, %s114
      %p121 = scmp.eq.s32.totalorder %s34, 1
      %p122 = por %p120, %p121
      %p123 = scmp.ne.s32.totalorder %s114, %s115
      %p124 = scmp.eq.s32.totalorder %s34, 0
      %p125 = por %p123, %p124
      %p126 = scmp.ne.s32.totalorder %s114, %s115
      %p127 = scmp.eq.s32.totalorder %s35, 1
      %p128 = por %p126, %p127
      %p130 = scmp.ne.s32.totalorder %s115, %s129
      %p131 = scmp.eq.s32.totalorder %s35, 0
      %p132 = por %p130, %p131
      %s134 = sadd.s32 %s133, 1
      %p137 = scmp.eq.s32.totalorder %s29, 1
      %p138 = scmp.ne.s32.totalorder %s133, %s135
      %p139 = scmp.eq.s32.totalorder %s29, 0
      %p140 = por %p138, %p139
      %p141 = scmp.ne.s32.totalorder %s133, %s135
      %p142 = scmp.eq.s32.totalorder %s34, 1
      %p143 = por %p141, %p142
      %p144 = scmp.ne.s32.totalorder %s135, %s136
      %p145 = scmp.eq.s32.totalorder %s34, 0
      %p146 = por %p144, %p145
      %p147 = scmp.ne.s32.totalorder %s135, %s136
      %p148 = scmp.eq.s32.totalorder %s35, 1
      %p149 = por %p147, %p148
      %p151 = scmp.ne.s32.totalorder %s136, %s150
      %p152 = scmp.eq.s32.totalorder %s35, 0
      %p153 = por %p151, %p152
      %s154 = ssub.s32 %s29, %s36
      %p155 = scmp.eq.s32.totalorder %s154, 0
      %s157 = sadd.s32 %s156, 1
      %s158 = scalar_select %p155, %s156, %s157
      %p161 = pneg %p155
      %p162 = scmp.eq.s32.totalorder %s29, 1
      %p163 = por %p161, %p162
      %p164 = scmp.ne.s32.totalorder %s156, %s159
      %p165 = scmp.eq.s32.totalorder %s29, 0
      %p166 = por %p164, %p165
      %p167 = scmp.ne.s32.totalorder %s156, %s159
      %p168 = scmp.eq.s32.totalorder %s34, 1
      %p169 = por %p167, %p168
      %p170 = scmp.ne.s32.totalorder %s159, %s160
      %p171 = scmp.eq.s32.totalorder %s34, 0
      %p172 = por %p170, %p171
      %p173 = scmp.ne.s32.totalorder %s159, %s160
      %p174 = scmp.eq.s32.totalorder %s35, 1
      %p175 = por %p173, %p174
      %p177 = scmp.ne.s32.totalorder %s160, %s176
      %p178 = scmp.eq.s32.totalorder %s35, 0
      %p179 = por %p177, %p178
      %s180 = ssub.s32 1, %s29
      %s181 = ssub.s32 1, %s36
      %s182 = ssub.s32 %s180, %s181
      %p183 = scmp.eq.s32.totalorder %s182, 0
      %s185 = sadd.s32 %s184, 1
      %s186 = scalar_select %p183, %s184, %s185
      %p189 = pneg %p183
      %p190 = scmp.eq.s32.totalorder %s29, 1
      %p191 = por %p189, %p190
      %p192 = scmp.ne.s32.totalorder %s184, %s187
      %p193 = scmp.eq.s32.totalorder %s29, 0
      %p194 = por %p192, %p193
      %p195 = scmp.ne.s32.totalorder %s184, %s187
      %p196 = scmp.eq.s32.totalorder %s34, 1
      %p197 = por %p195, %p196
      %p198 = scmp.ne.s32.totalorder %s187, %s188
      %p199 = scmp.eq.s32.totalorder %s34, 0
      %p200 = por %p198, %p199
      %p201 = scmp.ne.s32.totalorder %s187, %s188
      %p202 = scmp.eq.s32.totalorder %s35, 1
      %p203 = por %p201, %p202
      %p205 = scmp.ne.s32.totalorder %s188, %s204
      %p206 = scmp.eq.s32.totalorder %s35, 0
      %p207 = por %p205, %p206
      %s209 = sadd.s32 %s208, 1
      %p212 = scmp.eq.s32.totalorder %s29, 1
      %p213 = scmp.ne.s32.totalorder %s208, %s210
      %p214 = scmp.eq.s32.totalorder %s29, 0
      %p215 = por %p213, %p214
      %p216 = scmp.ne.s32.totalorder %s208, %s210
      %p217 = scmp.eq.s32.totalorder %s34, 1
      %p218 = por %p216, %p217
      %p219 = scmp.ne.s32.totalorder %s210, %s211
      %p220 = scmp.eq.s32.totalorder %s34, 0
      %p221 = por %p219, %p220
      %p222 = scmp.ne.s32.totalorder %s210, %s211
      %p223 = scmp.eq.s32.totalorder %s35, 1
      %p224 = por %p222, %p223
      %p226 = scmp.ne.s32.totalorder %s211, %s225
      %p227 = scmp.eq.s32.totalorder %s35, 0
      %p228 = por %p226, %p227
      %s230 = sadd.s32 %s229, 1
      %p233 = scmp.eq.s32.totalorder %s29, 1
      %p234 = scmp.ne.s32.totalorder %s229, %s231
      %p235 = scmp.eq.s32.totalorder %s29, 0
      %p236 = por %p234, %p235
      %p237 = scmp.ne.s32.totalorder %s229, %s231
      %p238 = scmp.eq.s32.totalorder %s34, 1
      %p239 = por %p237, %p238
      %p240 = scmp.ne.s32.totalorder %s231, %s232
      %p241 = scmp.eq.s32.totalorder %s34, 0
      %p242 = por %p240, %p241
      %p243 = scmp.ne.s32.totalorder %s231, %s232
      %p244 = scmp.eq.s32.totalorder %s35, 1
      %p245 = por %p243, %p244
      %p247 = scmp.ne.s32.totalorder %s232, %s246
      %p248 = scmp.eq.s32.totalorder %s35, 0
      %p249 = por %p247, %p248
      %p250 = scmp.le.s32.totalorder 1, %s29
      %p251 = scmp.lt.s32.totalorder %s29, 3
      %p252 = pnand %p250, %p251
      %p253 = pneg %p252
      // Predicated region
      $region9: #{tpu_custom_call.1} parent=5 // pred_check
        _
      $region10: #{tpu_custom_call.1} parent=5 // pred_check_branch
        %255 = sbr.rel (%p252) target = $region12
      $region11: #{tpu_custom_call.1} parent=5 // pred_region
        %s256 = ssub.s32 %s29, 1
        // Predicated region
        $region13: #{tpu_custom_call.1} parent=11 // pred_check
          %p257 = pneg %p50
        $region14: #{tpu_custom_call.1} parent=11 // pred_check_branch
          %259 = sbr.rel (%p257) target = $region16
        $region15: #{tpu_custom_call.1} parent=11 // pred_region
          _
        $region16: #{tpu_custom_call.1} parent=11 // pred_fallthru
          _
        // Predicated region
        $region17: #{tpu_custom_call.1} parent=11 // pred_check
          %p260 = pneg %p125
        $region18: #{tpu_custom_call.1} parent=11 // pred_check_branch
          %262 = sbr.rel (%p260) target = $region20
        $region19: #{tpu_custom_call.1} parent=11 // pred_region
          %s264 = ssub.s32 4096, 4096
          %265 = vsyncadd [#allocation12], %s264
          %s266 = sshll.u32 [#allocation13], 4
          %s267 = int_to_ptr.vmem [resolvable:$true] %s266
          %272 = dma.hbm_to_vmem [thread:$0]  %s3, 4096, %s267, [#allocation12], 256, 256, 16
        $region20: #{tpu_custom_call.1} parent=11 // pred_fallthru
          _
        // Predicated region
        $region21: #{tpu_custom_call.1} parent=11 // pred_check
          %p273 = pneg %p146
        $region22: #{tpu_custom_call.1} parent=11 // pred_check_branch
          %275 = sbr.rel (%p273) target = $region24
        $region23: #{tpu_custom_call.1} parent=11 // pred_region
          %s277 = ssub.s32 4096, 4096
          %278 = vsyncadd [#allocation15], %s277
          %s279 = sshll.u32 [#allocation14], 4
          %s280 = int_to_ptr.vmem [resolvable:$true] %s279
          %285 = dma.hbm_to_vmem [thread:$0]  %s4, 4096, %s280, [#allocation15], 256, 256, 16
        $region24: #{tpu_custom_call.1} parent=11 // pred_fallthru
          _
      $region12: #{tpu_custom_call.1} parent=5 // pred_fallthru
        _
      %p286 = scmp.lt.s32.totalorder %s29, 2
      // Predicated region
      $region25: #{tpu_custom_call.1} parent=5 // pred_check
        %p287 = pneg %p286
      $region26: #{tpu_custom_call.1} parent=5 // pred_check_branch
        %289 = sbr.rel (%p287) target = $region28
      $region27: #{tpu_custom_call.1} parent=5 // pred_region
        // Predicated region
        $region29: #{tpu_custom_call.1} parent=27 // pred_check
          %p290 = pneg %p70
        $region30: #{tpu_custom_call.1} parent=27 // pred_check_branch
          %292 = sbr.rel (%p290) target = $region32
        $region31: #{tpu_custom_call.1} parent=27 // pred_region
          %s293 = sand.u32 %s60, 1
          %s294 = scalar_lea.sflag [#allocation9], %s293
          %s295 = sand.u32 %s60, 1
          %s296 = smul.addr %s295, 64
          %s297 = scalar_lea.vmem [#allocation8], %s296
          %s298 = smul.u32 4, %s29
          %s300 = ssub.s32 1024, 1024
          %301 = vsyncadd %s294, %s300
          %s302 = smul.addr %s298, 8
          %s303 = smul.addr %s302, 64
          %s304 = scalar_lea.hbm %s1, %s303
          %s305 = sshll.u32 %s297, 4
          %s306 = int_to_ptr.vmem [resolvable:$true] %s305
          %311 = dma.hbm_to_vmem [thread:$0]  %s304, 1024, %s306, %s294, 512, 256, 16
        $region32: #{tpu_custom_call.1} parent=27 // pred_fallthru
          _
        // Predicated region
        $region33: #{tpu_custom_call.1} parent=27 // pred_check
          %p312 = pneg %p98
        $region34: #{tpu_custom_call.1} parent=27 // pred_check_branch
          %314 = sbr.rel (%p312) target = $region36
        $region35: #{tpu_custom_call.1} parent=27 // pred_region
          %s315 = sand.u32 %s29, 1
          %s316 = scalar_lea.sflag [#allocation12], %s315
          %s317 = sand.u32 %s88, 1
          %s318 = smul.addr %s317, 64
          %s319 = scalar_lea.vmem [#allocation11], %s318
          %s320 = ssub.s32 1, %s29
          %s321 = smul.u32 4, %s320
          %s323 = ssub.s32 1024, 1024
          %324 = vsyncadd %s316, %s323
          %s325 = smul.addr %s321, 8
          %s326 = sadd.s32 4, %s325
          %s327 = smul.addr %s326, 64
          %s328 = scalar_lea.hbm %s2, %s327
          %s329 = sshll.u32 %s319, 4
          %s330 = int_to_ptr.vmem [resolvable:$true] %s329
          %335 = dma.hbm_to_vmem [thread:$0]  %s328, 1024, %s330, %s316, 512, 256, 16
        $region36: #{tpu_custom_call.1} parent=27 // pred_fallthru
          _
      $region28: #{tpu_custom_call.1} parent=5 // pred_fallthru
        _
      %p336 = scmp.le.s32.totalorder 1, %s29
      %p337 = scmp.lt.s32.totalorder %s29, 3
      %p338 = pnand %p336, %p337
      %p339 = pneg %p338
      // Predicated region
      $region37: #{tpu_custom_call.1} parent=5 // pred_check
        _
      $region38: #{tpu_custom_call.1} parent=5 // pred_check_branch
        %341 = sbr.rel (%p338) target = $region40
      $region39: #{tpu_custom_call.1} parent=5 // pred_region
        %s342 = ssub.s32 %s29, 1
        %s343 = sand.u32 %s63, 1
        %s344 = scalar_lea.sflag [#allocation9], %s343
        %s345 = sand.u32 %s63, 1
        %s346 = smul.addr %s345, 64
        %s347 = scalar_lea.vmem [#allocation8], %s346
        // Predicated region
        $region41: #{tpu_custom_call.1} parent=39 // pred_check
          %p348 = pneg %p76
        $region42: #{tpu_custom_call.1} parent=39 // pred_check_branch
          %350 = sbr.rel (%p348) target = $region44
        $region43: #{tpu_custom_call.1} parent=39 // pred_region
          %351 = dma.done %s344, 1024
        $region44: #{tpu_custom_call.1} parent=39 // pred_fallthru
          _
        %s352 = sand.u32 %s34, 1
        %s353 = scalar_lea.sflag [#allocation12], %s352
        %s354 = sand.u32 %s91, 1
        %s355 = smul.addr %s354, 64
        %s356 = scalar_lea.vmem [#allocation11], %s355
        // Predicated region
        $region45: #{tpu_custom_call.1} parent=39 // pred_check
          %p357 = pneg %p104
        $region46: #{tpu_custom_call.1} parent=39 // pred_check_branch
          %359 = sbr.rel (%p357) target = $region48
        $region47: #{tpu_custom_call.1} parent=39 // pred_region
          %360 = dma.done %s353, 1024
        $region48: #{tpu_custom_call.1} parent=39 // pred_fallthru
          _
        // Predicated region
        $region49: #{tpu_custom_call.1} parent=39 // pred_check
          %p361 = pneg %p125
        $region50: #{tpu_custom_call.1} parent=39 // pred_check_branch
          %363 = sbr.rel (%p361) target = $region52
        $region51: #{tpu_custom_call.1} parent=39 // pred_region
          %364 = dma.done [#allocation12], 4096
        $region52: #{tpu_custom_call.1} parent=39 // pred_fallthru
          _
        // Predicated region
        $region53: #{tpu_custom_call.1} parent=39 // pred_check
          %p365 = pneg %p146
        $region54: #{tpu_custom_call.1} parent=39 // pred_check_branch
          %367 = sbr.rel (%p365) target = $region56
        $region55: #{tpu_custom_call.1} parent=39 // pred_region
          %368 = dma.done [#allocation15], 4096
        $region56: #{tpu_custom_call.1} parent=39 // pred_fallthru
          _
        %p369 = pneg %p50
        %p370 = pneg %p47
        %s371 = sand.u32 %s63, 1
        %s372 = scalar_lea.sflag [#allocation9], %s371
        %s373 = sand.u32 %s63, 1
        %s374 = smul.addr %s373, 64
        %s375 = scalar_lea.vmem [#allocation8], %s374
        %p376 = pneg %p76
        %p377 = pneg %p73
        %s378 = sand.u32 %s34, 1
        %s379 = scalar_lea.sflag [#allocation12], %s378
        %s380 = sand.u32 %s91, 1
        %s381 = smul.addr %s380, 64
        %s382 = scalar_lea.vmem [#allocation11], %s381
        %p383 = pneg %p104
        %p384 = pneg %p101
        %p385 = pneg %p125
        %p386 = pneg %p122
        %p387 = pneg %p146
        %p388 = pneg %p143
        %p389 = pneg %p172
        %p390 = pneg %p169
        %s391 = sand.u32 %s159, 1
        %s392 = scalar_lea.sflag [#allocation10], %s391
        %s393 = sand.u32 %s159, 1
        %s394 = smul.addr %s393, 32
        %s395 = scalar_lea.vmem [#allocation16], %s394
        %p396 = pneg %p200
        %p397 = pneg %p197
        %s398 = sand.u32 %s34, 1
        %s399 = scalar_lea.sflag [#allocation18], %s398
        %s400 = sand.u32 %s187, 1
        %s401 = smul.addr %s400, 32
        %s402 = scalar_lea.vmem [#allocation17], %s401
        %p403 = pneg %p221
        %p404 = pneg %p218
        %p405 = pneg %p242
        %p406 = pneg %p239
        %s407 = smul.u32 4, %s34
        %s408 = ssub.s32 1, %s34
        %s409 = smul.u32 4, %s408
        %s410 = smul.u32 4, %s34
        %s411 = ssub.s32 1, %s34
        %s412 = smul.u32 4, %s411
        %p414 = scmp.eq.s32.totalorder %s34, 0
        // Predicated region
        $region57: #{tpu_custom_call.1} parent=39 // pred_check
          %p415 = pneg %p414
        $region58: #{tpu_custom_call.1} parent=39 // pred_check_branch
          %417 = sbr.rel (%p415) target = $region60
        $region59: #{tpu_custom_call.1} parent=39 // pred_region
          %418 = vst [vmem:[#allocation2] sm:$0xff] 0.0
          %419 = vst [vmem:[#allocation3] sm:$0xff] 0.0
          %420 = vst [vmem:[#allocation4] sm:$0xff] 0.0
          %421 = vst [vmem:[#allocation5] sm:$0xff] 0.0
          %422 = vst [vmem:[#allocation6] sm:$0xff] -100.0
          %423 = vst [vmem:[#allocation7] sm:$0xff] -100.0
        $region60: #{tpu_custom_call.1} parent=39 // pred_fallthru
          _
        %v424 = vld [vmem:[%s0] sm:$0xff]
        %s425 = smul.u32 %s34, 4
        %s426 = ssub.s32 1, %s34
        %s427 = smul.u32 %s426, 4
        %s428 = sadd.s32 %s427, 3
        %v429 = vld [vmem:[#allocation2] sm:$0xff]
        %v430 = vpack.c.bf16 %v429, %v429
        %v431 = vld [vmem:[#allocation13] sm:$0xff]
        %v432 = vld [vmem:[#allocation13 + $0x8] sm:$0xff]
        %v433 = vld [vmem:[#allocation13 + $0x10] sm:$0xff]
        %v434 = vld [vmem:[#allocation13 + $0x18] sm:$0xff]
        %v435 = vld [vmem:[#allocation13 + $0x20] sm:$0xff]
        %v436 = vld [vmem:[#allocation13 + $0x28] sm:$0xff]
        %v437 = vld [vmem:[#allocation13 + $0x30] sm:$0xff]
        %v438 = vld [vmem:[#allocation13 + $0x38] sm:$0xff]
        %v439 = vld [vmem:[#allocation13 + $0x40] sm:$0xff]
        %v440 = vld [vmem:[#allocation13 + $0x48] sm:$0xff]
        %v441 = vld [vmem:[#allocation13 + $0x50] sm:$0xff]
        %v442 = vld [vmem:[#allocation13 + $0x58] sm:$0xff]
        %v443 = vld [vmem:[#allocation13 + $0x60] sm:$0xff]
        %v444 = vld [vmem:[#allocation13 + $0x68] sm:$0xff]
        %v445 = vld [vmem:[#allocation13 + $0x70] sm:$0xff]
        %v446 = vld [vmem:[#allocation13 + $0x78] sm:$0xff]
        %v447 = vld [vmem:[#allocation13 + $0x80] sm:$0xff]
        %v448 = vld [vmem:[#allocation13 + $0x88] sm:$0xff]
        %v449 = vld [vmem:[#allocation13 + $0x90] sm:$0xff]
        %v450 = vld [vmem:[#allocation13 + $0x98] sm:$0xff]
        %v451 = vld [vmem:[#allocation13 + $0xa0] sm:$0xff]
        %v452 = vld [vmem:[#allocation13 + $0xa8] sm:$0xff]
        %v453 = vld [vmem:[#allocation13 + $0xb0] sm:$0xff]
        %v454 = vld [vmem:[#allocation13 + $0xb8] sm:$0xff]
        %v455 = vld [vmem:[#allocation13 + $0xc0] sm:$0xff]
        %v456 = vld [vmem:[#allocation13 + $0xc8] sm:$0xff]
        %v457 = vld [vmem:[#allocation13 + $0xd0] sm:$0xff]
        %v458 = vld [vmem:[#allocation13 + $0xd8] sm:$0xff]
        %v459 = vld [vmem:[#allocation13 + $0xe0] sm:$0xff]
        %v460 = vld [vmem:[#allocation13 + $0xe8] sm:$0xff]
        %v461 = vld [vmem:[#allocation13 + $0xf0] sm:$0xff]
        %v462 = vld [vmem:[#allocation13 + $0xf8] sm:$0xff]
        %v495 = vunpack.c.l.b16 %v431
        %v496 = vunpack.c.h.b16 %v431
        %v497 = vunpack.c.l.b16 %v432
        %v498 = vunpack.c.h.b16 %v432
        %v499 = vunpack.c.l.b16 %v433
        %v500 = vunpack.c.h.b16 %v433
        %v501 = vunpack.c.l.b16 %v434
        %v502 = vunpack.c.h.b16 %v434
        %v503 = vunpack.c.l.b16 %v435
        %v504 = vunpack.c.h.b16 %v435
        %v505 = vunpack.c.l.b16 %v436
        %v506 = vunpack.c.h.b16 %v436
        %v507 = vunpack.c.l.b16 %v437
        %v508 = vunpack.c.h.b16 %v437
        %v509 = vunpack.c.l.b16 %v438
        %v510 = vunpack.c.h.b16 %v438
        %v511 = vunpack.c.l.b16 %v439
        %v512 = vunpack.c.h.b16 %v439
        %v513 = vunpack.c.l.b16 %v440
        %v514 = vunpack.c.h.b16 %v440
        %v515 = vunpack.c.l.b16 %v441
        %v516 = vunpack.c.h.b16 %v441
        %v517 = vunpack.c.l.b16 %v442
        %v518 = vunpack.c.h.b16 %v442
        %v519 = vunpack.c.l.b16 %v443
        %v520 = vunpack.c.h.b16 %v443
        %v521 = vunpack.c.l.b16 %v444
        %v522 = vunpack.c.h.b16 %v444
        %v523 = vunpack.c.l.b16 %v445
        %v524 = vunpack.c.h.b16 %v445
        %v525 = vunpack.c.l.b16 %v446
        %v526 = vunpack.c.h.b16 %v446
        %v527 = vunpack.c.l.b16 %v447
        %v528 = vunpack.c.h.b16 %v447
        %v529 = vunpack.c.l.b16 %v448
        %v530 = vunpack.c.h.b16 %v448
        %v531 = vunpack.c.l.b16 %v449
        %v532 = vunpack.c.h.b16 %v449
        %v533 = vunpack.c.l.b16 %v450
        %v534 = vunpack.c.h.b16 %v450
        %v535 = vunpack.c.l.b16 %v451
        %v536 = vunpack.c.h.b16 %v451
        %v537 = vunpack.c.l.b16 %v452
        %v538 = vunpack.c.h.b16 %v452
        %v539 = vunpack.c.l.b16 %v453
        %v540 = vunpack.c.h.b16 %v453
        %v541 = vunpack.c.l.b16 %v454
        %v542 = vunpack.c.h.b16 %v454
        %v543 = vunpack.c.l.b16 %v455
        %v544 = vunpack.c.h.b16 %v455
        %v545 = vunpack.c.l.b16 %v456
        %v546 = vunpack.c.h.b16 %v456
        %v547 = vunpack.c.l.b16 %v457
        %v548 = vunpack.c.h.b16 %v457
        %v549 = vunpack.c.l.b16 %v458
        %v550 = vunpack.c.h.b16 %v458
        %v551 = vunpack.c.l.b16 %v459
        %v552 = vunpack.c.h.b16 %v459
        %v553 = vunpack.c.l.b16 %v460
        %v554 = vunpack.c.h.b16 %v460
        %v555 = vunpack.c.l.b16 %v461
        %v556 = vunpack.c.h.b16 %v461
        %v557 = vunpack.c.l.b16 %v462
        %v558 = vunpack.c.h.b16 %v462
        %v559 = vpack.c.b16 %v499, %v495
        %v560 = vpack.c.b16 %v500, %v496
        %v561 = vpack.c.b16 %v501, %v497
        %v562 = vpack.c.b16 %v502, %v498
        %v563 = vpack.c.b16 %v507, %v503
        %v564 = vpack.c.b16 %v508, %v504
        %v565 = vpack.c.b16 %v509, %v505
        %v566 = vpack.c.b16 %v510, %v506
        %v567 = vpack.c.b16 %v515, %v511
        %v568 = vpack.c.b16 %v516, %v512
        %v569 = vpack.c.b16 %v517, %v513
        %v570 = vpack.c.b16 %v518, %v514
        %v571 = vpack.c.b16 %v523, %v519
        %v572 = vpack.c.b16 %v524, %v520
        %v573 = vpack.c.b16 %v525, %v521
        %v574 = vpack.c.b16 %v526, %v522
        %v575 = vpack.c.b16 %v531, %v527
        %v576 = vpack.c.b16 %v532, %v528
        %v577 = vpack.c.b16 %v533, %v529
        %v578 = vpack.c.b16 %v534, %v530
        %v579 = vpack.c.b16 %v539, %v535
        %v580 = vpack.c.b16 %v540, %v536
        %v581 = vpack.c.b16 %v541, %v537
        %v582 = vpack.c.b16 %v542, %v538
        %v583 = vpack.c.b16 %v547, %v543
        %v584 = vpack.c.b16 %v548, %v544
        %v585 = vpack.c.b16 %v549, %v545
        %v586 = vpack.c.b16 %v550, %v546
        %v587 = vpack.c.b16 %v555, %v551
        %v588 = vpack.c.b16 %v556, %v552
        %v589 = vpack.c.b16 %v557, %v553
        %v590 = vpack.c.b16 %v558, %v554
        %623 = vmatprep.subr.bf16.mxu0 %v588
        %624 = vmatpush1.bf16.msra.mxu0 %v587
        %625 = vmatprep.subr.bf16.mxu0 %v584
        %626 = vmatpush1.bf16.msra.mxu0 %v583
        %627 = vmatprep.subr.bf16.mxu0 %v580
        %628 = vmatpush1.bf16.msra.mxu0 %v579
        %629 = vmatprep.subr.bf16.mxu0 %v576
        %630 = vmatpush1.bf16.msra.mxu0 %v575
        %631 = vmatprep.subr.bf16.mxu0 %v572
        %632 = vmatpush1.bf16.msra.mxu0 %v571
        %633 = vmatprep.subr.bf16.mxu0 %v568
        %634 = vmatpush1.bf16.msra.mxu0 %v567
        %635 = vmatprep.subr.bf16.mxu0 %v564
        %636 = vmatpush1.bf16.msra.mxu0 %v563
        %637 = vmatprep.subr.bf16.mxu0 %v560
        %638 = vmatpush1.bf16.msra.mxu0 %v559
        %639 = vmatprep.subr.bf16.mxu0 0
        %640 = vmatpush2.bf16.msra.mxu0 0
        %641 = vmatprep.subr.bf16.mxu0 0
        %642 = vmatpush2.bf16.msra.mxu0 0
        %643 = vmatprep.subr.bf16.mxu0 0
        %644 = vmatpush2.bf16.msra.mxu0 0
        %645 = vmatprep.subr.bf16.mxu0 0
        %646 = vmatpush2.bf16.msra.mxu0 0
        %647 = vmatprep.subr.bf16.mxu0 0
        %648 = vmatpush2.bf16.msra.mxu0 0
        %649 = vmatprep.subr.bf16.mxu0 0
        %650 = vmatpush2.bf16.msra.mxu0 0
        %651 = vmatprep.subr.bf16.mxu0 0
        %652 = vmatpush2.bf16.msra.mxu0 0
        %653 = vmatprep.subr.bf16.mxu0 0
        %654 = vmatpush2.bf16.msra.mxu0 0
        %655 = vmatprep.mubr.bf16.mxu0 0
        %656 = vmatmul.mubr.bf16.gmra.mxu0 %v430
        %v657 = vpop.f32.mrf.mxu0
        %v658 = vadd.f32 0.0, %v657
        %v659 = vpop.f32.mrf.mxu0
        %v660 = vadd.f32 0.0, %v659
        %v661 = vpop.f32.mrf.mxu0
        %v662 = vpop.f32.mrf.mxu0
        %663 = vdwg.mxu0
        %664 = vmatprep.subr.bf16.mxu0 %v590
        %665 = vmatpush1.bf16.msra.mxu0 %v589
        %666 = vmatprep.subr.bf16.mxu0 %v586
        %667 = vmatpush1.bf16.msra.mxu0 %v585
        %668 = vmatprep.subr.bf16.mxu0 %v582
        %669 = vmatpush1.bf16.msra.mxu0 %v581
        %670 = vmatprep.subr.bf16.mxu0 %v578
        %671 = vmatpush1.bf16.msra.mxu0 %v577
        %672 = vmatprep.subr.bf16.mxu0 %v574
        %673 = vmatpush1.bf16.msra.mxu0 %v573
        %674 = vmatprep.subr.bf16.mxu0 %v570
        %675 = vmatpush1.bf16.msra.mxu0 %v569
        %676 = vmatprep.subr.bf16.mxu0 %v566
        %677 = vmatpush1.bf16.msra.mxu0 %v565
        %678 = vmatprep.subr.bf16.mxu0 %v562
        %679 = vmatpush1.bf16.msra.mxu0 %v561
        %680 = vmatprep.subr.bf16.mxu0 0
        %681 = vmatpush2.bf16.msra.mxu0 0
        %682 = vmatprep.subr.bf16.mxu0 0
        %683 = vmatpush2.bf16.msra.mxu0 0
        %684 = vmatprep.subr.bf16.mxu0 0
        %685 = vmatpush2.bf16.msra.mxu0 0
        %686 = vmatprep.subr.bf16.mxu0 0
        %687 = vmatpush2.bf16.msra.mxu0 0
        %688 = vmatprep.subr.bf16.mxu0 0
        %689 = vmatpush2.bf16.msra.mxu0 0
        %690 = vmatprep.subr.bf16.mxu0 0
        %691 = vmatpush2.bf16.msra.mxu0 0
        %692 = vmatprep.subr.bf16.mxu0 0
        %693 = vmatpush2.bf16.msra.mxu0 0
        %694 = vmatprep.subr.bf16.mxu0 0
        %695 = vmatpush2.bf16.msra.mxu0 0
        %696 = vmatprep.mubr.bf16.mxu0 0
        %697 = vmatmul.mubr.bf16.gmra.mxu0 %v430
        %v698 = vpop.f32.mrf.mxu0
        %v699 = vadd.f32 0.0, %v698
        %v700 = vpop.f32.mrf.mxu0
        %v701 = vadd.f32 0.0, %v700
        %v702 = vpop.f32.mrf.mxu0
        %v703 = vpop.f32.mrf.mxu0
        %704 = vdwg.mxu0
        %v705 = vld [vmem:[#allocation4] sm:$0xff]
        %v706 = vpack.c.bf16 %v705, %v705
        %v707 = vld [vmem:[#allocation14] sm:$0xff]
        %v708 = vld [vmem:[#allocation14 + $0x8] sm:$0xff]
        %v709 = vld [vmem:[#allocation14 + $0x10] sm:$0xff]
        %v710 = vld [vmem:[#allocation14 + $0x18] sm:$0xff]
        %v711 = vld [vmem:[#allocation14 + $0x20] sm:$0xff]
        %v712 = vld [vmem:[#allocation14 + $0x28] sm:$0xff]
        %v713 = vld [vmem:[#allocation14 + $0x30] sm:$0xff]
        %v714 = vld [vmem:[#allocation14 + $0x38] sm:$0xff]
        %v715 = vld [vmem:[#allocation14 + $0x40] sm:$0xff]
        %v716 = vld [vmem:[#allocation14 + $0x48] sm:$0xff]
        %v717 = vld [vmem:[#allocation14 + $0x50] sm:$0xff]
        %v718 = vld [vmem:[#allocation14 + $0x58] sm:$0xff]
        %v719 = vld [vmem:[#allocation14 + $0x60] sm:$0xff]
        %v720 = vld [vmem:[#allocation14 + $0x68] sm:$0xff]
        %v721 = vld [vmem:[#allocation14 + $0x70] sm:$0xff]
        %v722 = vld [vmem:[#allocation14 + $0x78] sm:$0xff]
        %v723 = vld [vmem:[#allocation14 + $0x80] sm:$0xff]
        %v724 = vld [vmem:[#allocation14 + $0x88] sm:$0xff]
        %v725 = vld [vmem:[#allocation14 + $0x90] sm:$0xff]
        %v726 = vld [vmem:[#allocation14 + $0x98] sm:$0xff]
        %v727 = vld [vmem:[#allocation14 + $0xa0] sm:$0xff]
        %v728 = vld [vmem:[#allocation14 + $0xa8] sm:$0xff]
        %v729 = vld [vmem:[#allocation14 + $0xb0] sm:$0xff]
        %v730 = vld [vmem:[#allocation14 + $0xb8] sm:$0xff]
        %v731 = vld [vmem:[#allocation14 + $0xc0] sm:$0xff]
        %v732 = vld [vmem:[#allocation14 + $0xc8] sm:$0xff]
        %v733 = vld [vmem:[#allocation14 + $0xd0] sm:$0xff]
        %v734 = vld [vmem:[#allocation14 + $0xd8] sm:$0xff]
        %v735 = vld [vmem:[#allocation14 + $0xe0] sm:$0xff]
        %v736 = vld [vmem:[#allocation14 + $0xe8] sm:$0xff]
        %v737 = vld [vmem:[#allocation14 + $0xf0] sm:$0xff]
        %v738 = vld [vmem:[#allocation14 + $0xf8] sm:$0xff]
        %v771 = vunpack.c.l.b16 %v707
        %v772 = vunpack.c.h.b16 %v707
        %v773 = vunpack.c.l.b16 %v708
        %v774 = vunpack.c.h.b16 %v708
        %v775 = vunpack.c.l.b16 %v709
        %v776 = vunpack.c.h.b16 %v709
        %v777 = vunpack.c.l.b16 %v710
        %v778 = vunpack.c.h.b16 %v710
        %v779 = vunpack.c.l.b16 %v711
        %v780 = vunpack.c.h.b16 %v711
        %v781 = vunpack.c.l.b16 %v712
        %v782 = vunpack.c.h.b16 %v712
        %v783 = vunpack.c.l.b16 %v713
        %v784 = vunpack.c.h.b16 %v713
        %v785 = vunpack.c.l.b16 %v714
        %v786 = vunpack.c.h.b16 %v714
        %v787 = vunpack.c.l.b16 %v715
        %v788 = vunpack.c.h.b16 %v715
        %v789 = vunpack.c.l.b16 %v716
        %v790 = vunpack.c.h.b16 %v716
        %v791 = vunpack.c.l.b16 %v717
        %v792 = vunpack.c.h.b16 %v717
        %v793 = vunpack.c.l.b16 %v718
        %v794 = vunpack.c.h.b16 %v718
        %v795 = vunpack.c.l.b16 %v719
        %v796 = vunpack.c.h.b16 %v719
        %v797 = vunpack.c.l.b16 %v720
        %v798 = vunpack.c.h.b16 %v720
        %v799 = vunpack.c.l.b16 %v721
        %v800 = vunpack.c.h.b16 %v721
        %v801 = vunpack.c.l.b16 %v722
        %v802 = vunpack.c.h.b16 %v722
        %v803 = vunpack.c.l.b16 %v723
        %v804 = vunpack.c.h.b16 %v723
        %v805 = vunpack.c.l.b16 %v724
        %v806 = vunpack.c.h.b16 %v724
        %v807 = vunpack.c.l.b16 %v725
        %v808 = vunpack.c.h.b16 %v725
        %v809 = vunpack.c.l.b16 %v726
        %v810 = vunpack.c.h.b16 %v726
        %v811 = vunpack.c.l.b16 %v727
        %v812 = vunpack.c.h.b16 %v727
        %v813 = vunpack.c.l.b16 %v728
        %v814 = vunpack.c.h.b16 %v728
        %v815 = vunpack.c.l.b16 %v729
        %v816 = vunpack.c.h.b16 %v729
        %v817 = vunpack.c.l.b16 %v730
        %v818 = vunpack.c.h.b16 %v730
        %v819 = vunpack.c.l.b16 %v731
        %v820 = vunpack.c.h.b16 %v731
        %v821 = vunpack.c.l.b16 %v732
        %v822 = vunpack.c.h.b16 %v732
        %v823 = vunpack.c.l.b16 %v733
        %v824 = vunpack.c.h.b16 %v733
        %v825 = vunpack.c.l.b16 %v734
        %v826 = vunpack.c.h.b16 %v734
        %v827 = vunpack.c.l.b16 %v735
        %v828 = vunpack.c.h.b16 %v735
        %v829 = vunpack.c.l.b16 %v736
        %v830 = vunpack.c.h.b16 %v736
        %v831 = vunpack.c.l.b16 %v737
        %v832 = vunpack.c.h.b16 %v737
        %v833 = vunpack.c.l.b16 %v738
        %v834 = vunpack.c.h.b16 %v738
        %v835 = vpack.c.b16 %v775, %v771
        %v836 = vpack.c.b16 %v776, %v772
        %v837 = vpack.c.b16 %v777, %v773
        %v838 = vpack.c.b16 %v778, %v774
        %v839 = vpack.c.b16 %v783, %v779
        %v840 = vpack.c.b16 %v784, %v780
        %v841 = vpack.c.b16 %v785, %v781
        %v842 = vpack.c.b16 %v786, %v782
        %v843 = vpack.c.b16 %v791, %v787
        %v844 = vpack.c.b16 %v792, %v788
        %v845 = vpack.c.b16 %v793, %v789
        %v846 = vpack.c.b16 %v794, %v790
        %v847 = vpack.c.b16 %v799, %v795
        %v848 = vpack.c.b16 %v800, %v796
        %v849 = vpack.c.b16 %v801, %v797
        %v850 = vpack.c.b16 %v802, %v798
        %v851 = vpack.c.b16 %v807, %v803
        %v852 = vpack.c.b16 %v808, %v804
        %v853 = vpack.c.b16 %v809, %v805
        %v854 = vpack.c.b16 %v810, %v806
        %v855 = vpack.c.b16 %v815, %v811
        %v856 = vpack.c.b16 %v816, %v812
        %v857 = vpack.c.b16 %v817, %v813
        %v858 = vpack.c.b16 %v818, %v814
        %v859 = vpack.c.b16 %v823, %v819
        %v860 = vpack.c.b16 %v824, %v820
        %v861 = vpack.c.b16 %v825, %v821
        %v862 = vpack.c.b16 %v826, %v822
        %v863 = vpack.c.b16 %v831, %v827
        %v864 = vpack.c.b16 %v832, %v828
        %v865 = vpack.c.b16 %v833, %v829
        %v866 = vpack.c.b16 %v834, %v830
        %899 = vmatprep.subr.bf16.mxu0 %v864
        %900 = vmatpush1.bf16.msra.mxu0 %v863
        %901 = vmatprep.subr.bf16.mxu0 %v860
        %902 = vmatpush1.bf16.msra.mxu0 %v859
        %903 = vmatprep.subr.bf16.mxu0 %v856
        %904 = vmatpush1.bf16.msra.mxu0 %v855
        %905 = vmatprep.subr.bf16.mxu0 %v852
        %906 = vmatpush1.bf16.msra.mxu0 %v851
        %907 = vmatprep.subr.bf16.mxu0 %v848
        %908 = vmatpush1.bf16.msra.mxu0 %v847
        %909 = vmatprep.subr.bf16.mxu0 %v844
        %910 = vmatpush1.bf16.msra.mxu0 %v843
        %911 = vmatprep.subr.bf16.mxu0 %v840
        %912 = vmatpush1.bf16.msra.mxu0 %v839
        %913 = vmatprep.subr.bf16.mxu0 %v836
        %914 = vmatpush1.bf16.msra.mxu0 %v835
        %915 = vmatprep.subr.bf16.mxu0 0
        %916 = vmatpush2.bf16.msra.mxu0 0
        %917 = vmatprep.subr.bf16.mxu0 0
        %918 = vmatpush2.bf16.msra.mxu0 0
        %919 = vmatprep.subr.bf16.mxu0 0
        %920 = vmatpush2.bf16.msra.mxu0 0
        %921 = vmatprep.subr.bf16.mxu0 0
        %922 = vmatpush2.bf16.msra.mxu0 0
        %923 = vmatprep.subr.bf16.mxu0 0
        %924 = vmatpush2.bf16.msra.mxu0 0
        %925 = vmatprep.subr.bf16.mxu0 0
        %926 = vmatpush2.bf16.msra.mxu0 0
        %927 = vmatprep.subr.bf16.mxu0 0
        %928 = vmatpush2.bf16.msra.mxu0 0
        %929 = vmatprep.subr.bf16.mxu0 0
        %930 = vmatpush2.bf16.msra.mxu0 0
        %931 = vmatprep.mubr.bf16.mxu0 0
        %932 = vmatmul.mubr.bf16.gmra.mxu0 %v706
        %v933 = vpop.f32.mrf.mxu0
        %v934 = vadd.f32 0.0, %v933
        %v935 = vpop.f32.mrf.mxu0
        %v936 = vadd.f32 0.0, %v935
        %v937 = vpop.f32.mrf.mxu0
        %v938 = vpop.f32.mrf.mxu0
        %939 = vdwg.mxu0
        %940 = vmatprep.subr.bf16.mxu0 %v866
        %941 = vmatpush1.bf16.msra.mxu0 %v865
        %942 = vmatprep.subr.bf16.mxu0 %v862
        %943 = vmatpush1.bf16.msra.mxu0 %v861
        %944 = vmatprep.subr.bf16.mxu0 %v858
        %945 = vmatpush1.bf16.msra.mxu0 %v857
        %946 = vmatprep.subr.bf16.mxu0 %v854
        %947 = vmatpush1.bf16.msra.mxu0 %v853
        %948 = vmatprep.subr.bf16.mxu0 %v850
        %949 = vmatpush1.bf16.msra.mxu0 %v849
        %950 = vmatprep.subr.bf16.mxu0 %v846
        %951 = vmatpush1.bf16.msra.mxu0 %v845
        %952 = vmatprep.subr.bf16.mxu0 %v842
        %953 = vmatpush1.bf16.msra.mxu0 %v841
        %954 = vmatprep.subr.bf16.mxu0 %v838
        %955 = vmatpush1.bf16.msra.mxu0 %v837
        %956 = vmatprep.subr.bf16.mxu0 0
        %957 = vmatpush2.bf16.msra.mxu0 0
        %958 = vmatprep.subr.bf16.mxu0 0
        %959 = vmatpush2.bf16.msra.mxu0 0
        %960 = vmatprep.subr.bf16.mxu0 0
        %961 = vmatpush2.bf16.msra.mxu0 0
        %962 = vmatprep.subr.bf16.mxu0 0
        %963 = vmatpush2.bf16.msra.mxu0 0
        %964 = vmatprep.subr.bf16.mxu0 0
        %965 = vmatpush2.bf16.msra.mxu0 0
        %966 = vmatprep.subr.bf16.mxu0 0
        %967 = vmatpush2.bf16.msra.mxu0 0
        %968 = vmatprep.subr.bf16.mxu0 0
        %969 = vmatpush2.bf16.msra.mxu0 0
        %970 = vmatprep.subr.bf16.mxu0 0
        %971 = vmatpush2.bf16.msra.mxu0 0
        %972 = vmatprep.mubr.bf16.mxu0 0
        %973 = vmatmul.mubr.bf16.gmra.mxu0 %v706
        %v974 = vpop.f32.mrf.mxu0
        %v975 = vadd.f32 0.0, %v974
        %v976 = vpop.f32.mrf.mxu0
        %v977 = vadd.f32 0.0, %v976
        %v978 = vpop.f32.mrf.mxu0
        %v979 = vpop.f32.mrf.mxu0
        %980 = vdwg.mxu0
        %v981 = vld [vmem:[%s347] sm:$0xff]
        %v982 = vld [vmem:[%s347 + $0x8] sm:$0xff]
        %v983 = vunpack.c.l.bf16 %v981
        %v984 = vunpack.c.h.bf16 %v981
        %v985 = vunpack.c.l.bf16 %v982
        %v986 = vunpack.c.h.bf16 %v982
        %v987 = vadd.f32 %v983, %v658
        %v988 = vadd.f32 %v984, %v660
        %v989 = vadd.f32 %v985, %v699
        %v990 = vadd.f32 %v986, %v701
        %s991 = scalar_lea.vmem %s356, 48 [#allocation11]
        %v992 = vld [vmem:[%s991] sm:$0xff]
        %v993 = vld [vmem:[%s991 + $0x8] sm:$0xff]
        %v994 = vunpack.c.l.bf16 %v992
        %v995 = vunpack.c.h.bf16 %v992
        %v996 = vunpack.c.l.bf16 %v993
        %v997 = vunpack.c.h.bf16 %v993
        %v998 = vadd.f32 %v994, %v934
        %v999 = vadd.f32 %v995, %v936
        %v1000 = vadd.f32 %v996, %v975
        %v1001 = vadd.f32 %v997, %v977
        %v1002 = vld [vmem:[#allocation3] sm:$0xff]
        %v1003 = vmul.f32 %v987, 0.5
        %v1004 = vmul.f32 %v988, 0.5
        %v1005 = vmul.f32 %v989, 0.5
        %v1006 = vtanh.pop %v1003
        %v1007 = vtanh.pop %v1004
        %v1008 = vtanh.pop %v1005
        %v1009 = vmul.f32 %v1006, 0.5
        %v1010 = vmul.f32 %v1007, 0.5
        %v1011 = vmul.f32 %v1008, 0.5
        %v1012 = vadd.f32 %v1009, 0.5
        %v1013 = vadd.f32 %v1010, 0.5
        %v1014 = vadd.f32 %v1011, 0.5
        %v1015 = vtanh.pop %v990
        %v1016 = vmul.f32 %v1013, %v1002
        %v1017 = vmul.f32 %v1012, %v1015
        %v1018 = vadd.f32 %v1016, %v1017
        %v1019 = vtanh.pop %v1018
        %v1020 = vmul.f32 %v1014, %v1019
        %v1021 = vld [vmem:[#allocation5] sm:$0xff]
        %v1022 = vmul.f32 %v998, 0.5
        %v1023 = vmul.f32 %v999, 0.5
        %v1024 = vmul.f32 %v1000, 0.5
        %v1025 = vtanh.pop %v1022
        %v1026 = vtanh.pop %v1023
        %v1027 = vtanh.pop %v1024
        %v1028 = vmul.f32 %v1025, 0.5
        %v1029 = vmul.f32 %v1026, 0.5
        %v1030 = vmul.f32 %v1027, 0.5
        %v1031 = vadd.f32 %v1028, 0.5
        %v1032 = vadd.f32 %v1029, 0.5
        %v1033 = vadd.f32 %v1030, 0.5
        %v1034 = vtanh.pop %v1001
        %v1035 = vmul.f32 %v1032, %v1021
        %v1036 = vmul.f32 %v1031, %v1034
        %v1037 = vadd.f32 %v1035, %v1036
        %v1038 = vtanh.pop %v1037
        %v1039 = vmul.f32 %v1033, %v1038
        %v1040 = vstv %s425
        %vm1041 = vcmp.lt.s32.totalorder %v1040, %v424
        %v1042 = vsel %vm1041, 1, 0
        %v1043 = vcvt.s32.f32 %v1042
        %v1044 = vstv %s428
        %vm1045 = vcmp.lt.s32.totalorder %v1044, %v424
        %v1046 = vsel %vm1045, 1, 0
        %v1047 = vcvt.s32.f32 %v1046
        %1049 = vset.pattern.permute.xlu0 0
        %1050 = vperm.xlu0 %1049, %v1043
        %v1051 = vpop.permute.xlu0 %1050
        %v1053 = vmul.f32 %v1051, %v1020
        %v1054 = vsub.f32 1.0, %v1043
        %1056 = vset.pattern.permute.xlu0 0
        %1057 = vperm.xlu0 %1056, %v1054
        %v1058 = vpop.permute.xlu0 %1057
        %v1060 = vmul.f32 %v1058, %v429
        %v1061 = vadd.f32 %v1053, %v1060
        %1062 = vst [vmem:[#allocation2] sm:$0xff] %v1061
        %v1063 = vmul.f32 %v1051, %v1018
        %v1064 = vld [vmem:[#allocation3] sm:$0xff]
        %v1065 = vmul.f32 %v1058, %v1064
        %v1066 = vadd.f32 %v1063, %v1065
        %1067 = vst [vmem:[#allocation3] sm:$0xff] %v1066
        %1069 = vset.pattern.permute.xlu0 0
        %1070 = vperm.xlu0 %1069, %v1047
        %v1071 = vpop.permute.xlu0 %1070
        %v1073 = vmul.f32 %v1071, %v1039
        %v1074 = vsub.f32 1.0, %v1047
        %v1075 = vld [vmem:[#allocation4] sm:$0xff]
        %1077 = vset.pattern.permute.xlu0 0
        %1078 = vperm.xlu0 %1077, %v1074
        %v1079 = vpop.permute.xlu0 %1078
        %v1081 = vmul.f32 %v1079, %v1075
        %v1082 = vadd.f32 %v1073, %v1081
        %1083 = vst [vmem:[#allocation4] sm:$0xff] %v1082
        %v1084 = vmul.f32 %v1071, %v1037
        %v1085 = vld [vmem:[#allocation5] sm:$0xff]
        %v1086 = vmul.f32 %v1079, %v1085
        %v1087 = vadd.f32 %v1084, %v1086
        %1088 = vst [vmem:[#allocation5] sm:$0xff] %v1087
        %1089 = vst [vmem:[%s395] sm:$0xff] %v1053
        %s1090 = scalar_lea.vmem %s402, 24 [#allocation17]
        %1091 = vst [vmem:[%s1090] sm:$0xff] %v1073
        %v1092 = vld [vmem:[#allocation6] sm:$0xff]
        %vm1093 = vcmp.gt.f32.partialorder %v1043, 0.0
        %v1094 = vsel %vm1093, 1, 0
        %1095 = vset.pattern.permute.xlu0 0
        %1096 = vperm.xlu0 %1095, %v1094
        %v1097 = vpop.permute.xlu0 %1096
        %vm1098 = vcmp.eq.s32.totalorder %v1097, 1
        %v1099 = vsel %vm1098, %v1020, -100.0
        %v1100 = vmax.f32 %v1092, %v1099
        %1101 = vst [vmem:[#allocation6] sm:$0xff] %v1100
        %v1102 = vld [vmem:[#allocation7] sm:$0xff]
        %vm1103 = vcmp.gt.f32.partialorder %v1047, 0.0
        %v1104 = vsel %vm1103, 1, 0
        %1105 = vset.pattern.permute.xlu0 0
        %1106 = vperm.xlu0 %1105, %v1104
        %v1107 = vpop.permute.xlu0 %1106
        %vm1108 = vcmp.eq.s32.totalorder %v1107, 1
        %v1109 = vsel %vm1108, %v1039, -100.0
        %v1110 = vmax.f32 %v1102, %v1109
        %1111 = vst [vmem:[#allocation7] sm:$0xff] %v1110
        %s1112 = sadd.s32 %s425, 1
        %s1113 = sadd.s32 %s427, 2
        %v1114 = vld [vmem:[#allocation2] sm:$0xff]
        %v1115 = vpack.c.bf16 %v1114, %v1114
        %v1116 = vld [vmem:[#allocation13] sm:$0xff]
        %v1117 = vld [vmem:[#allocation13 + $0x8] sm:$0xff]
        %v1118 = vld [vmem:[#allocation13 + $0x10] sm:$0xff]
        %v1119 = vld [vmem:[#allocation13 + $0x18] sm:$0xff]
        %v1120 = vld [vmem:[#allocation13 + $0x20] sm:$0xff]
        %v1121 = vld [vmem:[#allocation13 + $0x28] sm:$0xff]
        %v1122 = vld [vmem:[#allocation13 + $0x30] sm:$0xff]
        %v1123 = vld [vmem:[#allocation13 + $0x38] sm:$0xff]
        %v1124 = vld [vmem:[#allocation13 + $0x40] sm:$0xff]
        %v1125 = vld [vmem:[#allocation13 + $0x48] sm:$0xff]
        %v1126 = vld [vmem:[#allocation13 + $0x50] sm:$0xff]
        %v1127 = vld [vmem:[#allocation13 + $0x58] sm:$0xff]
        %v1128 = vld [vmem:[#allocation13 + $0x60] sm:$0xff]
        %v1129 = vld [vmem:[#allocation13 + $0x68] sm:$0xff]
        %v1130 = vld [vmem:[#allocation13 + $0x70] sm:$0xff]
        %v1131 = vld [vmem:[#allocation13 + $0x78] sm:$0xff]
        %v1132 = vld [vmem:[#allocation13 + $0x80] sm:$0xff]
        %v1133 = vld [vmem:[#allocation13 + $0x88] sm:$0xff]
        %v1134 = vld [vmem:[#allocation13 + $0x90] sm:$0xff]
        %v1135 = vld [vmem:[#allocation13 + $0x98] sm:$0xff]
        %v1136 = vld [vmem:[#allocation13 + $0xa0] sm:$0xff]
        %v1137 = vld [vmem:[#allocation13 + $0xa8] sm:$0xff]
        %v1138 = vld [vmem:[#allocation13 + $0xb0] sm:$0xff]
        %v1139 = vld [vmem:[#allocation13 + $0xb8] sm:$0xff]
        %v1140 = vld [vmem:[#allocation13 + $0xc0] sm:$0xff]
        %v1141 = vld [vmem:[#allocation13 + $0xc8] sm:$0xff]
        %v1142 = vld [vmem:[#allocation13 + $0xd0] sm:$0xff]
        %v1143 = vld [vmem:[#allocation13 + $0xd8] sm:$0xff]
        %v1144 = vld [vmem:[#allocation13 + $0xe0] sm:$0xff]
        %v1145 = vld [vmem:[#allocation13 + $0xe8] sm:$0xff]
        %v1146 = vld [vmem:[#allocation13 + $0xf0] sm:$0xff]
        %v1147 = vld [vmem:[#allocation13 + $0xf8] sm:$0xff]
        %v1180 = vunpack.c.l.b16 %v1116
        %v1181 = vunpack.c.h.b16 %v1116
        %v1182 = vunpack.c.l.b16 %v1117
        %v1183 = vunpack.c.h.b16 %v1117
        %v1184 = vunpack.c.l.b16 %v1118
        %v1185 = vunpack.c.h.b16 %v1118
        %v1186 = vunpack.c.l.b16 %v1119
        %v1187 = vunpack.c.h.b16 %v1119
        %v1188 = vunpack.c.l.b16 %v1120
        %v1189 = vunpack.c.h.b16 %v1120
        %v1190 = vunpack.c.l.b16 %v1121
        %v1191 = vunpack.c.h.b16 %v1121
        %v1192 = vunpack.c.l.b16 %v1122
        %v1193 = vunpack.c.h.b16 %v1122
        %v1194 = vunpack.c.l.b16 %v1123
        %v1195 = vunpack.c.h.b16 %v1123
        %v1196 = vunpack.c.l.b16 %v1124
        %v1197 = vunpack.c.h.b16 %v1124
        %v1198 = vunpack.c.l.b16 %v1125
        %v1199 = vunpack.c.h.b16 %v1125
        %v1200 = vunpack.c.l.b16 %v1126
        %v1201 = vunpack.c.h.b16 %v1126
        %v1202 = vunpack.c.l.b16 %v1127
        %v1203 = vunpack.c.h.b16 %v1127
        %v1204 = vunpack.c.l.b16 %v1128
        %v1205 = vunpack.c.h.b16 %v1128
        %v1206 = vunpack.c.l.b16 %v1129
        %v1207 = vunpack.c.h.b16 %v1129
        %v1208 = vunpack.c.l.b16 %v1130
        %v1209 = vunpack.c.h.b16 %v1130
        %v1210 = vunpack.c.l.b16 %v1131
        %v1211 = vunpack.c.h.b16 %v1131
        %v1212 = vunpack.c.l.b16 %v1132
        %v1213 = vunpack.c.h.b16 %v1132
        %v1214 = vunpack.c.l.b16 %v1133
        %v1215 = vunpack.c.h.b16 %v1133
        %v1216 = vunpack.c.l.b16 %v1134
        %v1217 = vunpack.c.h.b16 %v1134
        %v1218 = vunpack.c.l.b16 %v1135
        %v1219 = vunpack.c.h.b16 %v1135
        %v1220 = vunpack.c.l.b16 %v1136
        %v1221 = vunpack.c.h.b16 %v1136
        %v1222 = vunpack.c.l.b16 %v1137
        %v1223 = vunpack.c.h.b16 %v1137
        %v1224 = vunpack.c.l.b16 %v1138
        %v1225 = vunpack.c.h.b16 %v1138
        %v1226 = vunpack.c.l.b16 %v1139
        %v1227 = vunpack.c.h.b16 %v1139
        %v1228 = vunpack.c.l.b16 %v1140
        %v1229 = vunpack.c.h.b16 %v1140
        %v1230 = vunpack.c.l.b16 %v1141
        %v1231 = vunpack.c.h.b16 %v1141
        %v1232 = vunpack.c.l.b16 %v1142
        %v1233 = vunpack.c.h.b16 %v1142
        %v1234 = vunpack.c.l.b16 %v1143
        %v1235 = vunpack.c.h.b16 %v1143
        %v1236 = vunpack.c.l.b16 %v1144
        %v1237 = vunpack.c.h.b16 %v1144
        %v1238 = vunpack.c.l.b16 %v1145
        %v1239 = vunpack.c.h.b16 %v1145
        %v1240 = vunpack.c.l.b16 %v1146
        %v1241 = vunpack.c.h.b16 %v1146
        %v1242 = vunpack.c.l.b16 %v1147
        %v1243 = vunpack.c.h.b16 %v1147
        %v1244 = vpack.c.b16 %v1184, %v1180
        %v1245 = vpack.c.b16 %v1185, %v1181
        %v1246 = vpack.c.b16 %v1186, %v1182
        %v1247 = vpack.c.b16 %v1187, %v1183
        %v1248 = vpack.c.b16 %v1192, %v1188
        %v1249 = vpack.c.b16 %v1193, %v1189
        %v1250 = vpack.c.b16 %v1194, %v1190
        %v1251 = vpack.c.b16 %v1195, %v1191
        %v1252 = vpack.c.b16 %v1200, %v1196
        %v1253 = vpack.c.b16 %v1201, %v1197
        %v1254 = vpack.c.b16 %v1202, %v1198
        %v1255 = vpack.c.b16 %v1203, %v1199
        %v1256 = vpack.c.b16 %v1208, %v1204
        %v1257 = vpack.c.b16 %v1209, %v1205
        %v1258 = vpack.c.b16 %v1210, %v1206
        %v1259 = vpack.c.b16 %v1211, %v1207
        %v1260 = vpack.c.b16 %v1216, %v1212
        %v1261 = vpack.c.b16 %v1217, %v1213
        %v1262 = vpack.c.b16 %v1218, %v1214
        %v1263 = vpack.c.b16 %v1219, %v1215
        %v1264 = vpack.c.b16 %v1224, %v1220
        %v1265 = vpack.c.b16 %v1225, %v1221
        %v1266 = vpack.c.b16 %v1226, %v1222
        %v1267 = vpack.c.b16 %v1227, %v1223
        %v1268 = vpack.c.b16 %v1232, %v1228
        %v1269 = vpack.c.b16 %v1233, %v1229
        %v1270 = vpack.c.b16 %v1234, %v1230
        %v1271 = vpack.c.b16 %v1235, %v1231
        %v1272 = vpack.c.b16 %v1240, %v1236
        %v1273 = vpack.c.b16 %v1241, %v1237
        %v1274 = vpack.c.b16 %v1242, %v1238
        %v1275 = vpack.c.b16 %v1243, %v1239
        %1308 = vmatprep.subr.bf16.mxu0 %v1273
        %1309 = vmatpush1.bf16.msra.mxu0 %v1272
        %1310 = vmatprep.subr.bf16.mxu0 %v1269
        %1311 = vmatpush1.bf16.msra.mxu0 %v1268
        %1312 = vmatprep.subr.bf16.mxu0 %v1265
        %1313 = vmatpush1.bf16.msra.mxu0 %v1264
        %1314 = vmatprep.subr.bf16.mxu0 %v1261
        %1315 = vmatpush1.bf16.msra.mxu0 %v1260
        %1316 = vmatprep.subr.bf16.mxu0 %v1257
        %1317 = vmatpush1.bf16.msra.mxu0 %v1256
        %1318 = vmatprep.subr.bf16.mxu0 %v1253
        %1319 = vmatpush1.bf16.msra.mxu0 %v1252
        %1320 = vmatprep.subr.bf16.mxu0 %v1249
        %1321 = vmatpush1.bf16.msra.mxu0 %v1248
        %1322 = vmatprep.subr.bf16.mxu0 %v1245
        %1323 = vmatpush1.bf16.msra.mxu0 %v1244
        %1324 = vmatprep.subr.bf16.mxu0 0
        %1325 = vmatpush2.bf16.msra.mxu0 0
        %1326 = vmatprep.subr.bf16.mxu0 0
        %1327 = vmatpush2.bf16.msra.mxu0 0
        %1328 = vmatprep.subr.bf16.mxu0 0
        %1329 = vmatpush2.bf16.msra.mxu0 0
        %1330 = vmatprep.subr.bf16.mxu0 0
        %1331 = vmatpush2.bf16.msra.mxu0 0
        %1332 = vmatprep.subr.bf16.mxu0 0
        %1333 = vmatpush2.bf16.msra.mxu0 0
        %1334 = vmatprep.subr.bf16.mxu0 0
        %1335 = vmatpush2.bf16.msra.mxu0 0
        %1336 = vmatprep.subr.bf16.mxu0 0
        %1337 = vmatpush2.bf16.msra.mxu0 0
        %1338 = vmatprep.subr.bf16.mxu0 0
        %1339 = vmatpush2.bf16.msra.mxu0 0
        %1340 = vmatprep.mubr.bf16.mxu0 0
        %1341 = vmatmul.mubr.bf16.gmra.mxu0 %v1115
        %v1342 = vpop.f32.mrf.mxu0
        %v1343 = vadd.f32 0.0, %v1342
        %v1344 = vpop.f32.mrf.mxu0
        %v1345 = vadd.f32 0.0, %v1344
        %v1346 = vpop.f32.mrf.mxu0
        %v1347 = vpop.f32.mrf.mxu0
        %1348 = vdwg.mxu0
        %1349 = vmatprep.subr.bf16.mxu0 %v1275
        %1350 = vmatpush1.bf16.msra.mxu0 %v1274
        %1351 = vmatprep.subr.bf16.mxu0 %v1271
        %1352 = vmatpush1.bf16.msra.mxu0 %v1270
        %1353 = vmatprep.subr.bf16.mxu0 %v1267
        %1354 = vmatpush1.bf16.msra.mxu0 %v1266
        %1355 = vmatprep.subr.bf16.mxu0 %v1263
        %1356 = vmatpush1.bf16.msra.mxu0 %v1262
        %1357 = vmatprep.subr.bf16.mxu0 %v1259
        %1358 = vmatpush1.bf16.msra.mxu0 %v1258
        %1359 = vmatprep.subr.bf16.mxu0 %v1255
        %1360 = vmatpush1.bf16.msra.mxu0 %v1254
        %1361 = vmatprep.subr.bf16.mxu0 %v1251
        %1362 = vmatpush1.bf16.msra.mxu0 %v1250
        %1363 = vmatprep.subr.bf16.mxu0 %v1247
        %1364 = vmatpush1.bf16.msra.mxu0 %v1246
        %1365 = vmatprep.subr.bf16.mxu0 0
        %1366 = vmatpush2.bf16.msra.mxu0 0
        %1367 = vmatprep.subr.bf16.mxu0 0
        %1368 = vmatpush2.bf16.msra.mxu0 0
        %1369 = vmatprep.subr.bf16.mxu0 0
        %1370 = vmatpush2.bf16.msra.mxu0 0
        %1371 = vmatprep.subr.bf16.mxu0 0
        %1372 = vmatpush2.bf16.msra.mxu0 0
        %1373 = vmatprep.subr.bf16.mxu0 0
        %1374 = vmatpush2.bf16.msra.mxu0 0
        %1375 = vmatprep.subr.bf16.mxu0 0
        %1376 = vmatpush2.bf16.msra.mxu0 0
        %1377 = vmatprep.subr.bf16.mxu0 0
        %1378 = vmatpush2.bf16.msra.mxu0 0
        %1379 = vmatprep.subr.bf16.mxu0 0
        %1380 = vmatpush2.bf16.msra.mxu0 0
        %1381 = vmatprep.mubr.bf16.mxu0 0
        %1382 = vmatmul.mubr.bf16.gmra.mxu0 %v1115
        %v1383 = vpop.f32.mrf.mxu0
        %v1384 = vadd.f32 0.0, %v1383
        %v1385 = vpop.f32.mrf.mxu0
        %v1386 = vadd.f32 0.0, %v1385
        %v1387 = vpop.f32.mrf.mxu0
        %v1388 = vpop.f32.mrf.mxu0
        %1389 = vdwg.mxu0
        %v1390 = vld [vmem:[#allocation4] sm:$0xff]
        %v1391 = vpack.c.bf16 %v1390, %v1390
        %v1392 = vld [vmem:[#allocation14] sm:$0xff]
        %v1393 = vld [vmem:[#allocation14 + $0x8] sm:$0xff]
        %v1394 = vld [vmem:[#allocation14 + $0x10] sm:$0xff]
        %v1395 = vld [vmem:[#allocation14 + $0x18] sm:$0xff]
        %v1396 = vld [vmem:[#allocation14 + $0x20] sm:$0xff]
        %v1397 = vld [vmem:[#allocation14 + $0x28] sm:$0xff]
        %v1398 = vld [vmem:[#allocation14 + $0x30] sm:$0xff]
        %v1399 = vld [vmem:[#allocation14 + $0x38] sm:$0xff]
        %v1400 = vld [vmem:[#allocation14 + $0x40] sm:$0xff]
        %v1401 = vld [vmem:[#allocation14 + $0x48] sm:$0xff]
        %v1402 = vld [vmem:[#allocation14 + $0x50] sm:$0xff]
        %v1403 = vld [vmem:[#allocation14 + $0x58] sm:$0xff]
        %v1404 = vld [vmem:[#allocation14 + $0x60] sm:$0xff]
        %v1405 = vld [vmem:[#allocation14 + $0x68] sm:$0xff]
        %v1406 = vld [vmem:[#allocation14 + $0x70] sm:$0xff]
        %v1407 = vld [vmem:[#allocation14 + $0x78] sm:$0xff]
        %v1408 = vld [vmem:[#allocation14 + $0x80] sm:$0xff]
        %v1409 = vld [vmem:[#allocation14 + $0x88] sm:$0xff]
        %v1410 = vld [vmem:[#allocation14 + $0x90] sm:$0xff]
        %v1411 = vld [vmem:[#allocation14 + $0x98] sm:$0xff]
        %v1412 = vld [vmem:[#allocation14 + $0xa0] sm:$0xff]
        %v1413 = vld [vmem:[#allocation14 + $0xa8] sm:$0xff]
        %v1414 = vld [vmem:[#allocation14 + $0xb0] sm:$0xff]
        %v1415 = vld [vmem:[#allocation14 + $0xb8] sm:$0xff]
        %v1416 = vld [vmem:[#allocation14 + $0xc0] sm:$0xff]
        %v1417 = vld [vmem:[#allocation14 + $0xc8] sm:$0xff]
        %v1418 = vld [vmem:[#allocation14 + $0xd0] sm:$0xff]
        %v1419 = vld [vmem:[#allocation14 + $0xd8] sm:$0xff]
        %v1420 = vld [vmem:[#allocation14 + $0xe0] sm:$0xff]
        %v1421 = vld [vmem:[#allocation14 + $0xe8] sm:$0xff]
        %v1422 = vld [vmem:[#allocation14 + $0xf0] sm:$0xff]
        %v1423 = vld [vmem:[#allocation14 + $0xf8] sm:$0xff]
        %v1456 = vunpack.c.l.b16 %v1392
        %v1457 = vunpack.c.h.b16 %v1392
        %v1458 = vunpack.c.l.b16 %v1393
        %v1459 = vunpack.c.h.b16 %v1393
        %v1460 = vunpack.c.l.b16 %v1394
        %v1461 = vunpack.c.h.b16 %v1394
        %v1462 = vunpack.c.l.b16 %v1395
        %v1463 = vunpack.c.h.b16 %v1395
        %v1464 = vunpack.c.l.b16 %v1396
        %v1465 = vunpack.c.h.b16 %v1396
        %v1466 = vunpack.c.l.b16 %v1397
        %v1467 = vunpack.c.h.b16 %v1397
        %v1468 = vunpack.c.l.b16 %v1398
        %v1469 = vunpack.c.h.b16 %v1398
        %v1470 = vunpack.c.l.b16 %v1399
        %v1471 = vunpack.c.h.b16 %v1399
        %v1472 = vunpack.c.l.b16 %v1400
        %v1473 = vunpack.c.h.b16 %v1400
        %v1474 = vunpack.c.l.b16 %v1401
        %v1475 = vunpack.c.h.b16 %v1401
        %v1476 = vunpack.c.l.b16 %v1402
        %v1477 = vunpack.c.h.b16 %v1402
        %v1478 = vunpack.c.l.b16 %v1403
        %v1479 = vunpack.c.h.b16 %v1403
        %v1480 = vunpack.c.l.b16 %v1404
        %v1481 = vunpack.c.h.b16 %v1404
        %v1482 = vunpack.c.l.b16 %v1405
        %v1483 = vunpack.c.h.b16 %v1405
        %v1484 = vunpack.c.l.b16 %v1406
        %v1485 = vunpack.c.h.b16 %v1406
        %v1486 = vunpack.c.l.b16 %v1407
        %v1487 = vunpack.c.h.b16 %v1407
        %v1488 = vunpack.c.l.b16 %v1408
        %v1489 = vunpack.c.h.b16 %v1408
        %v1490 = vunpack.c.l.b16 %v1409
        %v1491 = vunpack.c.h.b16 %v1409
        %v1492 = vunpack.c.l.b16 %v1410
        %v1493 = vunpack.c.h.b16 %v1410
        %v1494 = vunpack.c.l.b16 %v1411
        %v1495 = vunpack.c.h.b16 %v1411
        %v1496 = vunpack.c.l.b16 %v1412
        %v1497 = vunpack.c.h.b16 %v1412
        %v1498 = vunpack.c.l.b16 %v1413
        %v1499 = vunpack.c.h.b16 %v1413
        %v1500 = vunpack.c.l.b16 %v1414
        %v1501 = vunpack.c.h.b16 %v1414
        %v1502 = vunpack.c.l.b16 %v1415
        %v1503 = vunpack.c.h.b16 %v1415
        %v1504 = vunpack.c.l.b16 %v1416
        %v1505 = vunpack.c.h.b16 %v1416
        %v1506 = vunpack.c.l.b16 %v1417
        %v1507 = vunpack.c.h.b16 %v1417
        %v1508 = vunpack.c.l.b16 %v1418
        %v1509 = vunpack.c.h.b16 %v1418
        %v1510 = vunpack.c.l.b16 %v1419
        %v1511 = vunpack.c.h.b16 %v1419
        %v1512 = vunpack.c.l.b16 %v1420
        %v1513 = vunpack.c.h.b16 %v1420
        %v1514 = vunpack.c.l.b16 %v1421
        %v1515 = vunpack.c.h.b16 %v1421
        %v1516 = vunpack.c.l.b16 %v1422
        %v1517 = vunpack.c.h.b16 %v1422
        %v1518 = vunpack.c.l.b16 %v1423
        %v1519 = vunpack.c.h.b16 %v1423
        %v1520 = vpack.c.b16 %v1460, %v1456
        %v1521 = vpack.c.b16 %v1461, %v1457
        %v1522 = vpack.c.b16 %v1462, %v1458
        %v1523 = vpack.c.b16 %v1463, %v1459
        %v1524 = vpack.c.b16 %v1468, %v1464
        %v1525 = vpack.c.b16 %v1469, %v1465
        %v1526 = vpack.c.b16 %v1470, %v1466
        %v1527 = vpack.c.b16 %v1471, %v1467
        %v1528 = vpack.c.b16 %v1476, %v1472
        %v1529 = vpack.c.b16 %v1477, %v1473
        %v1530 = vpack.c.b16 %v1478, %v1474
        %v1531 = vpack.c.b16 %v1479, %v1475
        %v1532 = vpack.c.b16 %v1484, %v1480
        %v1533 = vpack.c.b16 %v1485, %v1481
        %v1534 = vpack.c.b16 %v1486, %v1482
        %v1535 = vpack.c.b16 %v1487, %v1483
        %v1536 = vpack.c.b16 %v1492, %v1488
        %v1537 = vpack.c.b16 %v1493, %v1489
        %v1538 = vpack.c.b16 %v1494, %v1490
        %v1539 = vpack.c.b16 %v1495, %v1491
        %v1540 = vpack.c.b16 %v1500, %v1496
        %v1541 = vpack.c.b16 %v1501, %v1497
        %v1542 = vpack.c.b16 %v1502, %v1498
        %v1543 = vpack.c.b16 %v1503, %v1499
        %v1544 = vpack.c.b16 %v1508, %v1504
        %v1545 = vpack.c.b16 %v1509, %v1505
        %v1546 = vpack.c.b16 %v1510, %v1506
        %v1547 = vpack.c.b16 %v1511, %v1507
        %v1548 = vpack.c.b16 %v1516, %v1512
        %v1549 = vpack.c.b16 %v1517, %v1513
        %v1550 = vpack.c.b16 %v1518, %v1514
        %v1551 = vpack.c.b16 %v1519, %v1515
        %1584 = vmatprep.subr.bf16.mxu0 %v1549
        %1585 = vmatpush1.bf16.msra.mxu0 %v1548
        %1586 = vmatprep.subr.bf16.mxu0 %v1545
        %1587 = vmatpush1.bf16.msra.mxu0 %v1544
        %1588 = vmatprep.subr.bf16.mxu0 %v1541
        %1589 = vmatpush1.bf16.msra.mxu0 %v1540
        %1590 = vmatprep.subr.bf16.mxu0 %v1537
        %1591 = vmatpush1.bf16.msra.mxu0 %v1536
        %1592 = vmatprep.subr.bf16.mxu0 %v1533
        %1593 = vmatpush1.bf16.msra.mxu0 %v1532
        %1594 = vmatprep.subr.bf16.mxu0 %v1529
        %1595 = vmatpush1.bf16.msra.mxu0 %v1528
        %1596 = vmatprep.subr.bf16.mxu0 %v1525
        %1597 = vmatpush1.bf16.msra.mxu0 %v1524
        %1598 = vmatprep.subr.bf16.mxu0 %v1521
        %1599 = vmatpush1.bf16.msra.mxu0 %v1520
        %1600 = vmatprep.subr.bf16.mxu0 0
        %1601 = vmatpush2.bf16.msra.mxu0 0
        %1602 = vmatprep.subr.bf16.mxu0 0
        %1603 = vmatpush2.bf16.msra.mxu0 0
        %1604 = vmatprep.subr.bf16.mxu0 0
        %1605 = vmatpush2.bf16.msra.mxu0 0
        %1606 = vmatprep.subr.bf16.mxu0 0
        %1607 = vmatpush2.bf16.msra.mxu0 0
        %1608 = vmatprep.subr.bf16.mxu0 0
        %1609 = vmatpush2.bf16.msra.mxu0 0
        %1610 = vmatprep.subr.bf16.mxu0 0
        %1611 = vmatpush2.bf16.msra.mxu0 0
        %1612 = vmatprep.subr.bf16.mxu0 0
        %1613 = vmatpush2.bf16.msra.mxu0 0
        %1614 = vmatprep.subr.bf16.mxu0 0
        %1615 = vmatpush2.bf16.msra.mxu0 0
        %1616 = vmatprep.mubr.bf16.mxu0 0
        %1617 = vmatmul.mubr.bf16.gmra.mxu0 %v1391
        %v1618 = vpop.f32.mrf.mxu0
        %v1619 = vadd.f32 0.0, %v1618
        %v1620 = vpop.f32.mrf.mxu0
        %v1621 = vadd.f32 0.0, %v1620
        %v1622 = vpop.f32.mrf.mxu0
        %v1623 = vpop.f32.mrf.mxu0
        %1624 = vdwg.mxu0
        %1625 = vmatprep.subr.bf16.mxu0 %v1551
        %1626 = vmatpush1.bf16.msra.mxu0 %v1550
        %1627 = vmatprep.subr.bf16.mxu0 %v1547
        %1628 = vmatpush1.bf16.msra.mxu0 %v1546
        %1629 = vmatprep.subr.bf16.mxu0 %v1543
        %1630 = vmatpush1.bf16.msra.mxu0 %v1542
        %1631 = vmatprep.subr.bf16.mxu0 %v1539
        %1632 = vmatpush1.bf16.msra.mxu0 %v1538
        %1633 = vmatprep.subr.bf16.mxu0 %v1535
        %1634 = vmatpush1.bf16.msra.mxu0 %v1534
        %1635 = vmatprep.subr.bf16.mxu0 %v1531
        %1636 = vmatpush1.bf16.msra.mxu0 %v1530
        %1637 = vmatprep.subr.bf16.mxu0 %v1527
        %1638 = vmatpush1.bf16.msra.mxu0 %v1526
        %1639 = vmatprep.subr.bf16.mxu0 %v1523
        %1640 = vmatpush1.bf16.msra.mxu0 %v1522
        %1641 = vmatprep.subr.bf16.mxu0 0
        %1642 = vmatpush2.bf16.msra.mxu0 0
        %1643 = vmatprep.subr.bf16.mxu0 0
        %1644 = vmatpush2.bf16.msra.mxu0 0
        %1645 = vmatprep.subr.bf16.mxu0 0
        %1646 = vmatpush2.bf16.msra.mxu0 0
        %1647 = vmatprep.subr.bf16.mxu0 0
        %1648 = vmatpush2.bf16.msra.mxu0 0
        %1649 = vmatprep.subr.bf16.mxu0 0
        %1650 = vmatpush2.bf16.msra.mxu0 0
        %1651 = vmatprep.subr.bf16.mxu0 0
        %1652 = vmatpush2.bf16.msra.mxu0 0
        %1653 = vmatprep.subr.bf16.mxu0 0
        %1654 = vmatpush2.bf16.msra.mxu0 0
        %1655 = vmatprep.subr.bf16.mxu0 0
        %1656 = vmatpush2.bf16.msra.mxu0 0
        %1657 = vmatprep.mubr.bf16.mxu0 0
        %1658 = vmatmul.mubr.bf16.gmra.mxu0 %v1391
        %v1659 = vpop.f32.mrf.mxu0
        %v1660 = vadd.f32 0.0, %v1659
        %v1661 = vpop.f32.mrf.mxu0
        %v1662 = vadd.f32 0.0, %v1661
        %v1663 = vpop.f32.mrf.mxu0
        %v1664 = vpop.f32.mrf.mxu0
        %1665 = vdwg.mxu0
        %s1666 = scalar_lea.vmem %s347, 16 [#allocation8]
        %v1667 = vld [vmem:[%s1666] sm:$0xff]
        %v1668 = vld [vmem:[%s1666 + $0x8] sm:$0xff]
        %v1669 = vunpack.c.l.bf16 %v1667
        %v1670 = vunpack.c.h.bf16 %v1667
        %v1671 = vunpack.c.l.bf16 %v1668
        %v1672 = vunpack.c.h.bf16 %v1668
        %v1673 = vadd.f32 %v1669, %v1343
        %v1674 = vadd.f32 %v1670, %v1345
        %v1675 = vadd.f32 %v1671, %v1384
        %v1676 = vadd.f32 %v1672, %v1386
        %s1677 = scalar_lea.vmem %s356, 32 [#allocation11]
        %v1678 = vld [vmem:[%s1677] sm:$0xff]
        %v1679 = vld [vmem:[%s1677 + $0x8] sm:$0xff]
        %v1680 = vunpack.c.l.bf16 %v1678
        %v1681 = vunpack.c.h.bf16 %v1678
        %v1682 = vunpack.c.l.bf16 %v1679
        %v1683 = vunpack.c.h.bf16 %v1679
        %v1684 = vadd.f32 %v1680, %v1619
        %v1685 = vadd.f32 %v1681, %v1621
        %v1686 = vadd.f32 %v1682, %v1660
        %v1687 = vadd.f32 %v1683, %v1662
        %v1688 = vld [vmem:[#allocation3] sm:$0xff]
        %v1689 = vmul.f32 %v1673, 0.5
        %v1690 = vmul.f32 %v1674, 0.5
        %v1691 = vmul.f32 %v1675, 0.5
        %v1692 = vtanh.pop %v1689
        %v1693 = vtanh.pop %v1690
        %v1694 = vtanh.pop %v1691
        %v1695 = vmul.f32 %v1692, 0.5
        %v1696 = vmul.f32 %v1693, 0.5
        %v1697 = vmul.f32 %v1694, 0.5
        %v1698 = vadd.f32 %v1695, 0.5
        %v1699 = vadd.f32 %v1696, 0.5
        %v1700 = vadd.f32 %v1697, 0.5
        %v1701 = vtanh.pop %v1676
        %v1702 = vmul.f32 %v1699, %v1688
        %v1703 = vmul.f32 %v1698, %v1701
        %v1704 = vadd.f32 %v1702, %v1703
        %v1705 = vtanh.pop %v1704
        %v1706 = vmul.f32 %v1700, %v1705
        %v1707 = vld [vmem:[#allocation5] sm:$0xff]
        %v1708 = vmul.f32 %v1684, 0.5
        %v1709 = vmul.f32 %v1685, 0.5
        %v1710 = vmul.f32 %v1686, 0.5
        %v1711 = vtanh.pop %v1708
        %v1712 = vtanh.pop %v1709
        %v1713 = vtanh.pop %v1710
        %v1714 = vmul.f32 %v1711, 0.5
        %v1715 = vmul.f32 %v1712, 0.5
        %v1716 = vmul.f32 %v1713, 0.5
        %v1717 = vadd.f32 %v1714, 0.5
        %v1718 = vadd.f32 %v1715, 0.5
        %v1719 = vadd.f32 %v1716, 0.5
        %v1720 = vtanh.pop %v1687
        %v1721 = vmul.f32 %v1718, %v1707
        %v1722 = vmul.f32 %v1717, %v1720
        %v1723 = vadd.f32 %v1721, %v1722
        %v1724 = vtanh.pop %v1723
        %v1725 = vmul.f32 %v1719, %v1724
        %v1726 = vstv %s1112
        %vm1727 = vcmp.lt.s32.totalorder %v1726, %v424
        %v1728 = vsel %vm1727, 1, 0
        %v1729 = vcvt.s32.f32 %v1728
        %v1730 = vstv %s1113
        %vm1731 = vcmp.lt.s32.totalorder %v1730, %v424
        %v1732 = vsel %vm1731, 1, 0
        %v1733 = vcvt.s32.f32 %v1732
        %1735 = vset.pattern.permute.xlu0 0
        %1736 = vperm.xlu0 %1735, %v1729
        %v1737 = vpop.permute.xlu0 %1736
        %v1739 = vmul.f32 %v1737, %v1706
        %v1740 = vsub.f32 1.0, %v1729
        %1742 = vset.pattern.permute.xlu0 0
        %1743 = vperm.xlu0 %1742, %v1740
        %v1744 = vpop.permute.xlu0 %1743
        %v1746 = vmul.f32 %v1744, %v1114
        %v1747 = vadd.f32 %v1739, %v1746
        %1748 = vst [vmem:[#allocation2] sm:$0xff] %v1747
        %v1749 = vmul.f32 %v1737, %v1704
        %v1750 = vld [vmem:[#allocation3] sm:$0xff]
        %v1751 = vmul.f32 %v1744, %v1750
        %v1752 = vadd.f32 %v1749, %v1751
        %1753 = vst [vmem:[#allocation3] sm:$0xff] %v1752
        %1755 = vset.pattern.permute.xlu0 0
        %1756 = vperm.xlu0 %1755, %v1733
        %v1757 = vpop.permute.xlu0 %1756
        %v1759 = vmul.f32 %v1757, %v1725
        %v1760 = vsub.f32 1.0, %v1733
        %v1761 = vld [vmem:[#allocation4] sm:$0xff]
        %1763 = vset.pattern.permute.xlu0 0
        %1764 = vperm.xlu0 %1763, %v1760
        %v1765 = vpop.permute.xlu0 %1764
        %v1767 = vmul.f32 %v1765, %v1761
        %v1768 = vadd.f32 %v1759, %v1767
        %1769 = vst [vmem:[#allocation4] sm:$0xff] %v1768
        %v1770 = vmul.f32 %v1757, %v1723
        %v1771 = vld [vmem:[#allocation5] sm:$0xff]
        %v1772 = vmul.f32 %v1765, %v1771
        %v1773 = vadd.f32 %v1770, %v1772
        %1774 = vst [vmem:[#allocation5] sm:$0xff] %v1773
        %s1775 = scalar_lea.vmem %s395, 8 [#allocation16]
        %1776 = vst [vmem:[%s1775] sm:$0xff] %v1739
        %s1777 = scalar_lea.vmem %s402, 16 [#allocation17]
        %1778 = vst [vmem:[%s1777] sm:$0xff] %v1759
        %v1779 = vld [vmem:[#allocation6] sm:$0xff]
        %vm1780 = vcmp.gt.f32.partialorder %v1729, 0.0
        %v1781 = vsel %vm1780, 1, 0
        %1782 = vset.pattern.permute.xlu0 0
        %1783 = vperm.xlu0 %1782, %v1781
        %v1784 = vpop.permute.xlu0 %1783
        %vm1785 = vcmp.eq.s32.totalorder %v1784, 1
        %v1786 = vsel %vm1785, %v1706, -100.0
        %v1787 = vmax.f32 %v1779, %v1786
        %1788 = vst [vmem:[#allocation6] sm:$0xff] %v1787
        %v1789 = vld [vmem:[#allocation7] sm:$0xff]
        %vm1790 = vcmp.gt.f32.partialorder %v1733, 0.0
        %v1791 = vsel %vm1790, 1, 0
        %1792 = vset.pattern.permute.xlu0 0
        %1793 = vperm.xlu0 %1792, %v1791
        %v1794 = vpop.permute.xlu0 %1793
        %vm1795 = vcmp.eq.s32.totalorder %v1794, 1
        %v1796 = vsel %vm1795, %v1725, -100.0
        %v1797 = vmax.f32 %v1789, %v1796
        %1798 = vst [vmem:[#allocation7] sm:$0xff] %v1797
        %s1799 = sadd.s32 %s425, 2
        %s1800 = sadd.s32 %s427, 1
        %v1801 = vld [vmem:[#allocation2] sm:$0xff]
        %v1802 = vpack.c.bf16 %v1801, %v1801
        %v1803 = vld [vmem:[#allocation13] sm:$0xff]
        %v1804 = vld [vmem:[#allocation13 + $0x8] sm:$0xff]
        %v1805 = vld [vmem:[#allocation13 + $0x10] sm:$0xff]
        %v1806 = vld [vmem:[#allocation13 + $0x18] sm:$0xff]
        %v1807 = vld [vmem:[#allocation13 + $0x20] sm:$0xff]
        %v1808 = vld [vmem:[#allocation13 + $0x28] sm:$0xff]
        %v1809 = vld [vmem:[#allocation13 + $0x30] sm:$0xff]
        %v1810 = vld [vmem:[#allocation13 + $0x38] sm:$0xff]
        %v1811 = vld [vmem:[#allocation13 + $0x40] sm:$0xff]
        %v1812 = vld [vmem:[#allocation13 + $0x48] sm:$0xff]
        %v1813 = vld [vmem:[#allocation13 + $0x50] sm:$0xff]
        %v1814 = vld [vmem:[#allocation13 + $0x58] sm:$0xff]
        %v1815 = vld [vmem:[#allocation13 + $0x60] sm:$0xff]
        %v1816 = vld [vmem:[#allocation13 + $0x68] sm:$0xff]
        %v1817 = vld [vmem:[#allocation13 + $0x70] sm:$0xff]
        %v1818 = vld [vmem:[#allocation13 + $0x78] sm:$0xff]
        %v1819 = vld [vmem:[#allocation13 + $0x80] sm:$0xff]
        %v1820 = vld [vmem:[#allocation13 + $0x88] sm:$0xff]
        %v1821 = vld [vmem:[#allocation13 + $0x90] sm:$0xff]
        %v1822 = vld [vmem:[#allocation13 + $0x98] sm:$0xff]
        %v1823 = vld [vmem:[#allocation13 + $0xa0] sm:$0xff]
        %v1824 = vld [vmem:[#allocation13 + $0xa8] sm:$0xff]
        %v1825 = vld [vmem:[#allocation13 + $0xb0] sm:$0xff]
        %v1826 = vld [vmem:[#allocation13 + $0xb8] sm:$0xff]
        %v1827 = vld [vmem:[#allocation13 + $0xc0] sm:$0xff]
        %v1828 = vld [vmem:[#allocation13 + $0xc8] sm:$0xff]
        %v1829 = vld [vmem:[#allocation13 + $0xd0] sm:$0xff]
        %v1830 = vld [vmem:[#allocation13 + $0xd8] sm:$0xff]
        %v1831 = vld [vmem:[#allocation13 + $0xe0] sm:$0xff]
        %v1832 = vld [vmem:[#allocation13 + $0xe8] sm:$0xff]
        %v1833 = vld [vmem:[#allocation13 + $0xf0] sm:$0xff]
        %v1834 = vld [vmem:[#allocation13 + $0xf8] sm:$0xff]
        %v1867 = vunpack.c.l.b16 %v1803
        %v1868 = vunpack.c.h.b16 %v1803
        %v1869 = vunpack.c.l.b16 %v1804
        %v1870 = vunpack.c.h.b16 %v1804
        %v1871 = vunpack.c.l.b16 %v1805
        %v1872 = vunpack.c.h.b16 %v1805
        %v1873 = vunpack.c.l.b16 %v1806
        %v1874 = vunpack.c.h.b16 %v1806
        %v1875 = vunpack.c.l.b16 %v1807
        %v1876 = vunpack.c.h.b16 %v1807
        %v1877 = vunpack.c.l.b16 %v1808
        %v1878 = vunpack.c.h.b16 %v1808
        %v1879 = vunpack.c.l.b16 %v1809
        %v1880 = vunpack.c.h.b16 %v1809
        %v1881 = vunpack.c.l.b16 %v1810
        %v1882 = vunpack.c.h.b16 %v1810
        %v1883 = vunpack.c.l.b16 %v1811
        %v1884 = vunpack.c.h.b16 %v1811
        %v1885 = vunpack.c.l.b16 %v1812
        %v1886 = vunpack.c.h.b16 %v1812
        %v1887 = vunpack.c.l.b16 %v1813
        %v1888 = vunpack.c.h.b16 %v1813
        %v1889 = vunpack.c.l.b16 %v1814
        %v1890 = vunpack.c.h.b16 %v1814
        %v1891 = vunpack.c.l.b16 %v1815
        %v1892 = vunpack.c.h.b16 %v1815
        %v1893 = vunpack.c.l.b16 %v1816
        %v1894 = vunpack.c.h.b16 %v1816
        %v1895 = vunpack.c.l.b16 %v1817
        %v1896 = vunpack.c.h.b16 %v1817
        %v1897 = vunpack.c.l.b16 %v1818
        %v1898 = vunpack.c.h.b16 %v1818
        %v1899 = vunpack.c.l.b16 %v1819
        %v1900 = vunpack.c.h.b16 %v1819
        %v1901 = vunpack.c.l.b16 %v1820
        %v1902 = vunpack.c.h.b16 %v1820
        %v1903 = vunpack.c.l.b16 %v1821
        %v1904 = vunpack.c.h.b16 %v1821
        %v1905 = vunpack.c.l.b16 %v1822
        %v1906 = vunpack.c.h.b16 %v1822
        %v1907 = vunpack.c.l.b16 %v1823
        %v1908 = vunpack.c.h.b16 %v1823
        %v1909 = vunpack.c.l.b16 %v1824
        %v1910 = vunpack.c.h.b16 %v1824
        %v1911 = vunpack.c.l.b16 %v1825
        %v1912 = vunpack.c.h.b16 %v1825
        %v1913 = vunpack.c.l.b16 %v1826
        %v1914 = vunpack.c.h.b16 %v1826
        %v1915 = vunpack.c.l.b16 %v1827
        %v1916 = vunpack.c.h.b16 %v1827
        %v1917 = vunpack.c.l.b16 %v1828
        %v1918 = vunpack.c.h.b16 %v1828
        %v1919 = vunpack.c.l.b16 %v1829
        %v1920 = vunpack.c.h.b16 %v1829
        %v1921 = vunpack.c.l.b16 %v1830
        %v1922 = vunpack.c.h.b16 %v1830
        %v1923 = vunpack.c.l.b16 %v1831
        %v1924 = vunpack.c.h.b16 %v1831
        %v1925 = vunpack.c.l.b16 %v1832
        %v1926 = vunpack.c.h.b16 %v1832
        %v1927 = vunpack.c.l.b16 %v1833
        %v1928 = vunpack.c.h.b16 %v1833
        %v1929 = vunpack.c.l.b16 %v1834
        %v1930 = vunpack.c.h.b16 %v1834
        %v1931 = vpack.c.b16 %v1871, %v1867
        %v1932 = vpack.c.b16 %v1872, %v1868
        %v1933 = vpack.c.b16 %v1873, %v1869
        %v1934 = vpack.c.b16 %v1874, %v1870
        %v1935 = vpack.c.b16 %v1879, %v1875
        %v1936 = vpack.c.b16 %v1880, %v1876
        %v1937 = vpack.c.b16 %v1881, %v1877
        %v1938 = vpack.c.b16 %v1882, %v1878
        %v1939 = vpack.c.b16 %v1887, %v1883
        %v1940 = vpack.c.b16 %v1888, %v1884
        %v1941 = vpack.c.b16 %v1889, %v1885
        %v1942 = vpack.c.b16 %v1890, %v1886
        %v1943 = vpack.c.b16 %v1895, %v1891
        %v1944 = vpack.c.b16 %v1896, %v1892
        %v1945 = vpack.c.b16 %v1897, %v1893
        %v1946 = vpack.c.b16 %v1898, %v1894
        %v1947 = vpack.c.b16 %v1903, %v1899
        %v1948 = vpack.c.b16 %v1904, %v1900
        %v1949 = vpack.c.b16 %v1905, %v1901
        %v1950 = vpack.c.b16 %v1906, %v1902
        %v1951 = vpack.c.b16 %v1911, %v1907
        %v1952 = vpack.c.b16 %v1912, %v1908
        %v1953 = vpack.c.b16 %v1913, %v1909
        %v1954 = vpack.c.b16 %v1914, %v1910
        %v1955 = vpack.c.b16 %v1919, %v1915
        %v1956 = vpack.c.b16 %v1920, %v1916
        %v1957 = vpack.c.b16 %v1921, %v1917
        %v1958 = vpack.c.b16 %v1922, %v1918
        %v1959 = vpack.c.b16 %v1927, %v1923
        %v1960 = vpack.c.b16 %v1928, %v1924
        %v1961 = vpack.c.b16 %v1929, %v1925
        %v1962 = vpack.c.b16 %v1930, %v1926
        %1995 = vmatprep.subr.bf16.mxu0 %v1960
        %1996 = vmatpush1.bf16.msra.mxu0 %v1959
        %1997 = vmatprep.subr.bf16.mxu0 %v1956
        %1998 = vmatpush1.bf16.msra.mxu0 %v1955
        %1999 = vmatprep.subr.bf16.mxu0 %v1952
        %2000 = vmatpush1.bf16.msra.mxu0 %v1951
        %2001 = vmatprep.subr.bf16.mxu0 %v1948
        %2002 = vmatpush1.bf16.msra.mxu0 %v1947
        %2003 = vmatprep.subr.bf16.mxu0 %v1944
        %2004 = vmatpush1.bf16.msra.mxu0 %v1943
        %2005 = vmatprep.subr.bf16.mxu0 %v1940
        %2006 = vmatpush1.bf16.msra.mxu0 %v1939
        %2007 = vmatprep.subr.bf16.mxu0 %v1936
        %2008 = vmatpush1.bf16.msra.mxu0 %v1935
        %2009 = vmatprep.subr.bf16.mxu0 %v1932
        %2010 = vmatpush1.bf16.msra.mxu0 %v1931
        %2011 = vmatprep.subr.bf16.mxu0 0
        %2012 = vmatpush2.bf16.msra.mxu0 0
        %2013 = vmatprep.subr.bf16.mxu0 0
        %2014 = vmatpush2.bf16.msra.mxu0 0
        %2015 = vmatprep.subr.bf16.mxu0 0
        %2016 = vmatpush2.bf16.msra.mxu0 0
        %2017 = vmatprep.subr.bf16.mxu0 0
        %2018 = vmatpush2.bf16.msra.mxu0 0
        %2019 = vmatprep.subr.bf16.mxu0 0
        %2020 = vmatpush2.bf16.msra.mxu0 0
        %2021 = vmatprep.subr.bf16.mxu0 0
        %2022 = vmatpush2.bf16.msra.mxu0 0
        %2023 = vmatprep.subr.bf16.mxu0 0
        %2024 = vmatpush2.bf16.msra.mxu0 0
        %2025 = vmatprep.subr.bf16.mxu0 0
        %2026 = vmatpush2.bf16.msra.mxu0 0
        %2027 = vmatprep.mubr.bf16.mxu0 0
        %2028 = vmatmul.mubr.bf16.gmra.mxu0 %v1802
        %v2029 = vpop.f32.mrf.mxu0
        %v2030 = vadd.f32 0.0, %v2029
        %v2031 = vpop.f32.mrf.mxu0
        %v2032 = vadd.f32 0.0, %v2031
        %v2033 = vpop.f32.mrf.mxu0
        %v2034 = vpop.f32.mrf.mxu0
        %2035 = vdwg.mxu0
        %2036 = vmatprep.subr.bf16.mxu0 %v1962
        %2037 = vmatpush1.bf16.msra.mxu0 %v1961
        %2038 = vmatprep.subr.bf16.mxu0 %v1958
        %2039 = vmatpush1.bf16.msra.mxu0 %v1957
        %2040 = vmatprep.subr.bf16.mxu0 %v1954
        %2041 = vmatpush1.bf16.msra.mxu0 %v1953
        %2042 = vmatprep.subr.bf16.mxu0 %v1950
        %2043 = vmatpush1.bf16.msra.mxu0 %v1949
        %2044 = vmatprep.subr.bf16.mxu0 %v1946
        %2045 = vmatpush1.bf16.msra.mxu0 %v1945
        %2046 = vmatprep.subr.bf16.mxu0 %v1942
        %2047 = vmatpush1.bf16.msra.mxu0 %v1941
        %2048 = vmatprep.subr.bf16.mxu0 %v1938
        %2049 = vmatpush1.bf16.msra.mxu0 %v1937
        %2050 = vmatprep.subr.bf16.mxu0 %v1934
        %2051 = vmatpush1.bf16.msra.mxu0 %v1933
        %2052 = vmatprep.subr.bf16.mxu0 0
        %2053 = vmatpush2.bf16.msra.mxu0 0
        %2054 = vmatprep.subr.bf16.mxu0 0
        %2055 = vmatpush2.bf16.msra.mxu0 0
        %2056 = vmatprep.subr.bf16.mxu0 0
        %2057 = vmatpush2.bf16.msra.mxu0 0
        %2058 = vmatprep.subr.bf16.mxu0 0
        %2059 = vmatpush2.bf16.msra.mxu0 0
        %2060 = vmatprep.subr.bf16.mxu0 0
        %2061 = vmatpush2.bf16.msra.mxu0 0
        %2062 = vmatprep.subr.bf16.mxu0 0
        %2063 = vmatpush2.bf16.msra.mxu0 0
        %2064 = vmatprep.subr.bf16.mxu0 0
        %2065 = vmatpush2.bf16.msra.mxu0 0
        %2066 = vmatprep.subr.bf16.mxu0 0
        %2067 = vmatpush2.bf16.msra.mxu0 0
        %2068 = vmatprep.mubr.bf16.mxu0 0
        %2069 = vmatmul.mubr.bf16.gmra.mxu0 %v1802
        %v2070 = vpop.f32.mrf.mxu0
        %v2071 = vadd.f32 0.0, %v2070
        %v2072 = vpop.f32.mrf.mxu0
        %v2073 = vadd.f32 0.0, %v2072
        %v2074 = vpop.f32.mrf.mxu0
        %v2075 = vpop.f32.mrf.mxu0
        %2076 = vdwg.mxu0
        %v2077 = vld [vmem:[#allocation4] sm:$0xff]
        %v2078 = vpack.c.bf16 %v2077, %v2077
        %v2079 = vld [vmem:[#allocation14] sm:$0xff]
        %v2080 = vld [vmem:[#allocation14 + $0x8] sm:$0xff]
        %v2081 = vld [vmem:[#allocation14 + $0x10] sm:$0xff]
        %v2082 = vld [vmem:[#allocation14 + $0x18] sm:$0xff]
        %v2083 = vld [vmem:[#allocation14 + $0x20] sm:$0xff]
        %v2084 = vld [vmem:[#allocation14 + $0x28] sm:$0xff]
        %v2085 = vld [vmem:[#allocation14 + $0x30] sm:$0xff]
        %v2086 = vld [vmem:[#allocation14 + $0x38] sm:$0xff]
        %v2087 = vld [vmem:[#allocation14 + $0x40] sm:$0xff]
        %v2088 = vld [vmem:[#allocation14 + $0x48] sm:$0xff]
        %v2089 = vld [vmem:[#allocation14 + $0x50] sm:$0xff]
        %v2090 = vld [vmem:[#allocation14 + $0x58] sm:$0xff]
        %v2091 = vld [vmem:[#allocation14 + $0x60] sm:$0xff]
        %v2092 = vld [vmem:[#allocation14 + $0x68] sm:$0xff]
        %v2093 = vld [vmem:[#allocation14 + $0x70] sm:$0xff]
        %v2094 = vld [vmem:[#allocation14 + $0x78] sm:$0xff]
        %v2095 = vld [vmem:[#allocation14 + $0x80] sm:$0xff]
        %v2096 = vld [vmem:[#allocation14 + $0x88] sm:$0xff]
        %v2097 = vld [vmem:[#allocation14 + $0x90] sm:$0xff]
        %v2098 = vld [vmem:[#allocation14 + $0x98] sm:$0xff]
        %v2099 = vld [vmem:[#allocation14 + $0xa0] sm:$0xff]
        %v2100 = vld [vmem:[#allocation14 + $0xa8] sm:$0xff]
        %v2101 = vld [vmem:[#allocation14 + $0xb0] sm:$0xff]
        %v2102 = vld [vmem:[#allocation14 + $0xb8] sm:$0xff]
        %v2103 = vld [vmem:[#allocation14 + $0xc0] sm:$0xff]
        %v2104 = vld [vmem:[#allocation14 + $0xc8] sm:$0xff]
        %v2105 = vld [vmem:[#allocation14 + $0xd0] sm:$0xff]
        %v2106 = vld [vmem:[#allocation14 + $0xd8] sm:$0xff]
        %v2107 = vld [vmem:[#allocation14 + $0xe0] sm:$0xff]
        %v2108 = vld [vmem:[#allocation14 + $0xe8] sm:$0xff]
        %v2109 = vld [vmem:[#allocation14 + $0xf0] sm:$0xff]
        %v2110 = vld [vmem:[#allocation14 + $0xf8] sm:$0xff]
        %v2143 = vunpack.c.l.b16 %v2079
        %v2144 = vunpack.c.h.b16 %v2079
        %v2145 = vunpack.c.l.b16 %v2080
        %v2146 = vunpack.c.h.b16 %v2080
        %v2147 = vunpack.c.l.b16 %v2081
        %v2148 = vunpack.c.h.b16 %v2081
        %v2149 = vunpack.c.l.b16 %v2082
        %v2150 = vunpack.c.h.b16 %v2082
        %v2151 = vunpack.c.l.b16 %v2083
        %v2152 = vunpack.c.h.b16 %v2083
        %v2153 = vunpack.c.l.b16 %v2084
        %v2154 = vunpack.c.h.b16 %v2084
        %v2155 = vunpack.c.l.b16 %v2085
        %v2156 = vunpack.c.h.b16 %v2085
        %v2157 = vunpack.c.l.b16 %v2086
        %v2158 = vunpack.c.h.b16 %v2086
        %v2159 = vunpack.c.l.b16 %v2087
        %v2160 = vunpack.c.h.b16 %v2087
        %v2161 = vunpack.c.l.b16 %v2088
        %v2162 = vunpack.c.h.b16 %v2088
        %v2163 = vunpack.c.l.b16 %v2089
        %v2164 = vunpack.c.h.b16 %v2089
        %v2165 = vunpack.c.l.b16 %v2090
        %v2166 = vunpack.c.h.b16 %v2090
        %v2167 = vunpack.c.l.b16 %v2091
        %v2168 = vunpack.c.h.b16 %v2091
        %v2169 = vunpack.c.l.b16 %v2092
        %v2170 = vunpack.c.h.b16 %v2092
        %v2171 = vunpack.c.l.b16 %v2093
        %v2172 = vunpack.c.h.b16 %v2093
        %v2173 = vunpack.c.l.b16 %v2094
        %v2174 = vunpack.c.h.b16 %v2094
        %v2175 = vunpack.c.l.b16 %v2095
        %v2176 = vunpack.c.h.b16 %v2095
        %v2177 = vunpack.c.l.b16 %v2096
        %v2178 = vunpack.c.h.b16 %v2096
        %v2179 = vunpack.c.l.b16 %v2097
        %v2180 = vunpack.c.h.b16 %v2097
        %v2181 = vunpack.c.l.b16 %v2098
        %v2182 = vunpack.c.h.b16 %v2098
        %v2183 = vunpack.c.l.b16 %v2099
        %v2184 = vunpack.c.h.b16 %v2099
        %v2185 = vunpack.c.l.b16 %v2100
        %v2186 = vunpack.c.h.b16 %v2100
        %v2187 = vunpack.c.l.b16 %v2101
        %v2188 = vunpack.c.h.b16 %v2101
        %v2189 = vunpack.c.l.b16 %v2102
        %v2190 = vunpack.c.h.b16 %v2102
        %v2191 = vunpack.c.l.b16 %v2103
        %v2192 = vunpack.c.h.b16 %v2103
        %v2193 = vunpack.c.l.b16 %v2104
        %v2194 = vunpack.c.h.b16 %v2104
        %v2195 = vunpack.c.l.b16 %v2105
        %v2196 = vunpack.c.h.b16 %v2105
        %v2197 = vunpack.c.l.b16 %v2106
        %v2198 = vunpack.c.h.b16 %v2106
        %v2199 = vunpack.c.l.b16 %v2107
        %v2200 = vunpack.c.h.b16 %v2107
        %v2201 = vunpack.c.l.b16 %v2108
        %v2202 = vunpack.c.h.b16 %v2108
        %v2203 = vunpack.c.l.b16 %v2109
        %v2204 = vunpack.c.h.b16 %v2109
        %v2205 = vunpack.c.l.b16 %v2110
        %v2206 = vunpack.c.h.b16 %v2110
        %v2207 = vpack.c.b16 %v2147, %v2143
        %v2208 = vpack.c.b16 %v2148, %v2144
        %v2209 = vpack.c.b16 %v2149, %v2145
        %v2210 = vpack.c.b16 %v2150, %v2146
        %v2211 = vpack.c.b16 %v2155, %v2151
        %v2212 = vpack.c.b16 %v2156, %v2152
        %v2213 = vpack.c.b16 %v2157, %v2153
        %v2214 = vpack.c.b16 %v2158, %v2154
        %v2215 = vpack.c.b16 %v2163, %v2159
        %v2216 = vpack.c.b16 %v2164, %v2160
        %v2217 = vpack.c.b16 %v2165, %v2161
        %v2218 = vpack.c.b16 %v2166, %v2162
        %v2219 = vpack.c.b16 %v2171, %v2167
        %v2220 = vpack.c.b16 %v2172, %v2168
        %v2221 = vpack.c.b16 %v2173, %v2169
        %v2222 = vpack.c.b16 %v2174, %v2170
        %v2223 = vpack.c.b16 %v2179, %v2175
        %v2224 = vpack.c.b16 %v2180, %v2176
        %v2225 = vpack.c.b16 %v2181, %v2177
        %v2226 = vpack.c.b16 %v2182, %v2178
        %v2227 = vpack.c.b16 %v2187, %v2183
        %v2228 = vpack.c.b16 %v2188, %v2184
        %v2229 = vpack.c.b16 %v2189, %v2185
        %v2230 = vpack.c.b16 %v2190, %v2186
        %v2231 = vpack.c.b16 %v2195, %v2191
        %v2232 = vpack.c.b16 %v2196, %v2192
        %v2233 = vpack.c.b16 %v2197, %v2193
        %v2234 = vpack.c.b16 %v2198, %v2194
        %v2235 = vpack.c.b16 %v2203, %v2199
        %v2236 = vpack.c.b16 %v2204, %v2200
        %v2237 = vpack.c.b16 %v2205, %v2201
        %v2238 = vpack.c.b16 %v2206, %v2202
        %2271 = vmatprep.subr.bf16.mxu0 %v2236
        %2272 = vmatpush1.bf16.msra.mxu0 %v2235
        %2273 = vmatprep.subr.bf16.mxu0 %v2232
        %2274 = vmatpush1.bf16.msra.mxu0 %v2231
        %2275 = vmatprep.subr.bf16.mxu0 %v2228
        %2276 = vmatpush1.bf16.msra.mxu0 %v2227
        %2277 = vmatprep.subr.bf16.mxu0 %v2224
        %2278 = vmatpush1.bf16.msra.mxu0 %v2223
        %2279 = vmatprep.subr.bf16.mxu0 %v2220
        %2280 = vmatpush1.bf16.msra.mxu0 %v2219
        %2281 = vmatprep.subr.bf16.mxu0 %v2216
        %2282 = vmatpush1.bf16.msra.mxu0 %v2215
        %2283 = vmatprep.subr.bf16.mxu0 %v2212
        %2284 = vmatpush1.bf16.msra.mxu0 %v2211
        %2285 = vmatprep.subr.bf16.mxu0 %v2208
        %2286 = vmatpush1.bf16.msra.mxu0 %v2207
        %2287 = vmatprep.subr.bf16.mxu0 0
        %2288 = vmatpush2.bf16.msra.mxu0 0
        %2289 = vmatprep.subr.bf16.mxu0 0
        %2290 = vmatpush2.bf16.msra.mxu0 0
        %2291 = vmatprep.subr.bf16.mxu0 0
        %2292 = vmatpush2.bf16.msra.mxu0 0
        %2293 = vmatprep.subr.bf16.mxu0 0
        %2294 = vmatpush2.bf16.msra.mxu0 0
        %2295 = vmatprep.subr.bf16.mxu0 0
        %2296 = vmatpush2.bf16.msra.mxu0 0
        %2297 = vmatprep.subr.bf16.mxu0 0
        %2298 = vmatpush2.bf16.msra.mxu0 0
        %2299 = vmatprep.subr.bf16.mxu0 0
        %2300 = vmatpush2.bf16.msra.mxu0 0
        %2301 = vmatprep.subr.bf16.mxu0 0
        %2302 = vmatpush2.bf16.msra.mxu0 0
        %2303 = vmatprep.mubr.bf16.mxu0 0
        %2304 = vmatmul.mubr.bf16.gmra.mxu0 %v2078
        %v2305 = vpop.f32.mrf.mxu0
        %v2306 = vadd.f32 0.0, %v2305
        %v2307 = vpop.f32.mrf.mxu0
        %v2308 = vadd.f32 0.0, %v2307
        %v2309 = vpop.f32.mrf.mxu0
        %v2310 = vpop.f32.mrf.mxu0
        %2311 = vdwg.mxu0
        %2312 = vmatprep.subr.bf16.mxu0 %v2238
        %2313 = vmatpush1.bf16.msra.mxu0 %v2237
        %2314 = vmatprep.subr.bf16.mxu0 %v2234
        %2315 = vmatpush1.bf16.msra.mxu0 %v2233
        %2316 = vmatprep.subr.bf16.mxu0 %v2230
        %2317 = vmatpush1.bf16.msra.mxu0 %v2229
        %2318 = vmatprep.subr.bf16.mxu0 %v2226
        %2319 = vmatpush1.bf16.msra.mxu0 %v2225
        %2320 = vmatprep.subr.bf16.mxu0 %v2222
        %2321 = vmatpush1.bf16.msra.mxu0 %v2221
        %2322 = vmatprep.subr.bf16.mxu0 %v2218
        %2323 = vmatpush1.bf16.msra.mxu0 %v2217
        %2324 = vmatprep.subr.bf16.mxu0 %v2214
        %2325 = vmatpush1.bf16.msra.mxu0 %v2213
        %2326 = vmatprep.subr.bf16.mxu0 %v2210
        %2327 = vmatpush1.bf16.msra.mxu0 %v2209
        %2328 = vmatprep.subr.bf16.mxu0 0
        %2329 = vmatpush2.bf16.msra.mxu0 0
        %2330 = vmatprep.subr.bf16.mxu0 0
        %2331 = vmatpush2.bf16.msra.mxu0 0
        %2332 = vmatprep.subr.bf16.mxu0 0
        %2333 = vmatpush2.bf16.msra.mxu0 0
        %2334 = vmatprep.subr.bf16.mxu0 0
        %2335 = vmatpush2.bf16.msra.mxu0 0
        %2336 = vmatprep.subr.bf16.mxu0 0
        %2337 = vmatpush2.bf16.msra.mxu0 0
        %2338 = vmatprep.subr.bf16.mxu0 0
        %2339 = vmatpush2.bf16.msra.mxu0 0
        %2340 = vmatprep.subr.bf16.mxu0 0
        %2341 = vmatpush2.bf16.msra.mxu0 0
        %2342 = vmatprep.subr.bf16.mxu0 0
        %2343 = vmatpush2.bf16.msra.mxu0 0
        %2344 = vmatprep.mubr.bf16.mxu0 0
        %2345 = vmatmul.mubr.bf16.gmra.mxu0 %v2078
        %v2346 = vpop.f32.mrf.mxu0
        %v2347 = vadd.f32 0.0, %v2346
        %v2348 = vpop.f32.mrf.mxu0
        %v2349 = vadd.f32 0.0, %v2348
        %v2350 = vpop.f32.mrf.mxu0
        %v2351 = vpop.f32.mrf.mxu0
        %2352 = vdwg.mxu0
        %s2353 = scalar_lea.vmem %s347, 32 [#allocation8]
        %v2354 = vld [vmem:[%s2353] sm:$0xff]
        %v2355 = vld [vmem:[%s2353 + $0x8] sm:$0xff]
        %v2356 = vunpack.c.l.bf16 %v2354
        %v2357 = vunpack.c.h.bf16 %v2354
        %v2358 = vunpack.c.l.bf16 %v2355
        %v2359 = vunpack.c.h.bf16 %v2355
        %v2360 = vadd.f32 %v2356, %v2030
        %v2361 = vadd.f32 %v2357, %v2032
        %v2362 = vadd.f32 %v2358, %v2071
        %v2363 = vadd.f32 %v2359, %v2073
        %s2364 = scalar_lea.vmem %s356, 16 [#allocation11]
        %v2365 = vld [vmem:[%s2364] sm:$0xff]
        %v2366 = vld [vmem:[%s2364 + $0x8] sm:$0xff]
        %v2367 = vunpack.c.l.bf16 %v2365
        %v2368 = vunpack.c.h.bf16 %v2365
        %v2369 = vunpack.c.l.bf16 %v2366
        %v2370 = vunpack.c.h.bf16 %v2366
        %v2371 = vadd.f32 %v2367, %v2306
        %v2372 = vadd.f32 %v2368, %v2308
        %v2373 = vadd.f32 %v2369, %v2347
        %v2374 = vadd.f32 %v2370, %v2349
        %v2375 = vld [vmem:[#allocation3] sm:$0xff]
        %v2376 = vmul.f32 %v2360, 0.5
        %v2377 = vmul.f32 %v2361, 0.5
        %v2378 = vmul.f32 %v2362, 0.5
        %v2379 = vtanh.pop %v2376
        %v2380 = vtanh.pop %v2377
        %v2381 = vtanh.pop %v2378
        %v2382 = vmul.f32 %v2379, 0.5
        %v2383 = vmul.f32 %v2380, 0.5
        %v2384 = vmul.f32 %v2381, 0.5
        %v2385 = vadd.f32 %v2382, 0.5
        %v2386 = vadd.f32 %v2383, 0.5
        %v2387 = vadd.f32 %v2384, 0.5
        %v2388 = vtanh.pop %v2363
        %v2389 = vmul.f32 %v2386, %v2375
        %v2390 = vmul.f32 %v2385, %v2388
        %v2391 = vadd.f32 %v2389, %v2390
        %v2392 = vtanh.pop %v2391
        %v2393 = vmul.f32 %v2387, %v2392
        %v2394 = vld [vmem:[#allocation5] sm:$0xff]
        %v2395 = vmul.f32 %v2371, 0.5
        %v2396 = vmul.f32 %v2372, 0.5
        %v2397 = vmul.f32 %v2373, 0.5
        %v2398 = vtanh.pop %v2395
        %v2399 = vtanh.pop %v2396
        %v2400 = vtanh.pop %v2397
        %v2401 = vmul.f32 %v2398, 0.5
        %v2402 = vmul.f32 %v2399, 0.5
        %v2403 = vmul.f32 %v2400, 0.5
        %v2404 = vadd.f32 %v2401, 0.5
        %v2405 = vadd.f32 %v2402, 0.5
        %v2406 = vadd.f32 %v2403, 0.5
        %v2407 = vtanh.pop %v2374
        %v2408 = vmul.f32 %v2405, %v2394
        %v2409 = vmul.f32 %v2404, %v2407
        %v2410 = vadd.f32 %v2408, %v2409
        %v2411 = vtanh.pop %v2410
        %v2412 = vmul.f32 %v2406, %v2411
        %v2413 = vstv %s1799
        %vm2414 = vcmp.lt.s32.totalorder %v2413, %v424
        %v2415 = vsel %vm2414, 1, 0
        %v2416 = vcvt.s32.f32 %v2415
        %v2417 = vstv %s1800
        %vm2418 = vcmp.lt.s32.totalorder %v2417, %v424
        %v2419 = vsel %vm2418, 1, 0
        %v2420 = vcvt.s32.f32 %v2419
        %2422 = vset.pattern.permute.xlu0 0
        %2423 = vperm.xlu0 %2422, %v2416
        %v2424 = vpop.permute.xlu0 %2423
        %v2426 = vmul.f32 %v2424, %v2393
        %v2427 = vsub.f32 1.0, %v2416
        %2429 = vset.pattern.permute.xlu0 0
        %2430 = vperm.xlu0 %2429, %v2427
        %v2431 = vpop.permute.xlu0 %2430
        %v2433 = vmul.f32 %v2431, %v1801
        %v2434 = vadd.f32 %v2426, %v2433
        %2435 = vst [vmem:[#allocation2] sm:$0xff] %v2434
        %v2436 = vmul.f32 %v2424, %v2391
        %v2437 = vld [vmem:[#allocation3] sm:$0xff]
        %v2438 = vmul.f32 %v2431, %v2437
        %v2439 = vadd.f32 %v2436, %v2438
        %2440 = vst [vmem:[#allocation3] sm:$0xff] %v2439
        %2442 = vset.pattern.permute.xlu0 0
        %2443 = vperm.xlu0 %2442, %v2420
        %v2444 = vpop.permute.xlu0 %2443
        %v2446 = vmul.f32 %v2444, %v2412
        %v2447 = vsub.f32 1.0, %v2420
        %v2448 = vld [vmem:[#allocation4] sm:$0xff]
        %2450 = vset.pattern.permute.xlu0 0
        %2451 = vperm.xlu0 %2450, %v2447
        %v2452 = vpop.permute.xlu0 %2451
        %v2454 = vmul.f32 %v2452, %v2448
        %v2455 = vadd.f32 %v2446, %v2454
        %2456 = vst [vmem:[#allocation4] sm:$0xff] %v2455
        %v2457 = vmul.f32 %v2444, %v2410
        %v2458 = vld [vmem:[#allocation5] sm:$0xff]
        %v2459 = vmul.f32 %v2452, %v2458
        %v2460 = vadd.f32 %v2457, %v2459
        %2461 = vst [vmem:[#allocation5] sm:$0xff] %v2460
        %s2462 = scalar_lea.vmem %s395, 16 [#allocation16]
        %2463 = vst [vmem:[%s2462] sm:$0xff] %v2426
        %s2464 = scalar_lea.vmem %s402, 8 [#allocation17]
        %2465 = vst [vmem:[%s2464] sm:$0xff] %v2446
        %v2466 = vld [vmem:[#allocation6] sm:$0xff]
        %vm2467 = vcmp.gt.f32.partialorder %v2416, 0.0
        %v2468 = vsel %vm2467, 1, 0
        %2469 = vset.pattern.permute.xlu0 0
        %2470 = vperm.xlu0 %2469, %v2468
        %v2471 = vpop.permute.xlu0 %2470
        %vm2472 = vcmp.eq.s32.totalorder %v2471, 1
        %v2473 = vsel %vm2472, %v2393, -100.0
        %v2474 = vmax.f32 %v2466, %v2473
        %2475 = vst [vmem:[#allocation6] sm:$0xff] %v2474
        %v2476 = vld [vmem:[#allocation7] sm:$0xff]
        %vm2477 = vcmp.gt.f32.partialorder %v2420, 0.0
        %v2478 = vsel %vm2477, 1, 0
        %2479 = vset.pattern.permute.xlu0 0
        %2480 = vperm.xlu0 %2479, %v2478
        %v2481 = vpop.permute.xlu0 %2480
        %vm2482 = vcmp.eq.s32.totalorder %v2481, 1
        %v2483 = vsel %vm2482, %v2412, -100.0
        %v2484 = vmax.f32 %v2476, %v2483
        %2485 = vst [vmem:[#allocation7] sm:$0xff] %v2484
        %s2486 = sadd.s32 %s425, 3
        %v2487 = vld [vmem:[#allocation2] sm:$0xff]
        %v2488 = vpack.c.bf16 %v2487, %v2487
        %v2489 = vld [vmem:[#allocation13] sm:$0xff]
        %v2490 = vld [vmem:[#allocation13 + $0x8] sm:$0xff]
        %v2491 = vld [vmem:[#allocation13 + $0x10] sm:$0xff]
        %v2492 = vld [vmem:[#allocation13 + $0x18] sm:$0xff]
        %v2493 = vld [vmem:[#allocation13 + $0x20] sm:$0xff]
        %v2494 = vld [vmem:[#allocation13 + $0x28] sm:$0xff]
        %v2495 = vld [vmem:[#allocation13 + $0x30] sm:$0xff]
        %v2496 = vld [vmem:[#allocation13 + $0x38] sm:$0xff]
        %v2497 = vld [vmem:[#allocation13 + $0x40] sm:$0xff]
        %v2498 = vld [vmem:[#allocation13 + $0x48] sm:$0xff]
        %v2499 = vld [vmem:[#allocation13 + $0x50] sm:$0xff]
        %v2500 = vld [vmem:[#allocation13 + $0x58] sm:$0xff]
        %v2501 = vld [vmem:[#allocation13 + $0x60] sm:$0xff]
        %v2502 = vld [vmem:[#allocation13 + $0x68] sm:$0xff]
        %v2503 = vld [vmem:[#allocation13 + $0x70] sm:$0xff]
        %v2504 = vld [vmem:[#allocation13 + $0x78] sm:$0xff]
        %v2505 = vld [vmem:[#allocation13 + $0x80] sm:$0xff]
        %v2506 = vld [vmem:[#allocation13 + $0x88] sm:$0xff]
        %v2507 = vld [vmem:[#allocation13 + $0x90] sm:$0xff]
        %v2508 = vld [vmem:[#allocation13 + $0x98] sm:$0xff]
        %v2509 = vld [vmem:[#allocation13 + $0xa0] sm:$0xff]
        %v2510 = vld [vmem:[#allocation13 + $0xa8] sm:$0xff]
        %v2511 = vld [vmem:[#allocation13 + $0xb0] sm:$0xff]
        %v2512 = vld [vmem:[#allocation13 + $0xb8] sm:$0xff]
        %v2513 = vld [vmem:[#allocation13 + $0xc0] sm:$0xff]
        %v2514 = vld [vmem:[#allocation13 + $0xc8] sm:$0xff]
        %v2515 = vld [vmem:[#allocation13 + $0xd0] sm:$0xff]
        %v2516 = vld [vmem:[#allocation13 + $0xd8] sm:$0xff]
        %v2517 = vld [vmem:[#allocation13 + $0xe0] sm:$0xff]
        %v2518 = vld [vmem:[#allocation13 + $0xe8] sm:$0xff]
        %v2519 = vld [vmem:[#allocation13 + $0xf0] sm:$0xff]
        %v2520 = vld [vmem:[#allocation13 + $0xf8] sm:$0xff]
        %v2553 = vunpack.c.l.b16 %v2489
        %v2554 = vunpack.c.h.b16 %v2489
        %v2555 = vunpack.c.l.b16 %v2490
        %v2556 = vunpack.c.h.b16 %v2490
        %v2557 = vunpack.c.l.b16 %v2491
        %v2558 = vunpack.c.h.b16 %v2491
        %v2559 = vunpack.c.l.b16 %v2492
        %v2560 = vunpack.c.h.b16 %v2492
        %v2561 = vunpack.c.l.b16 %v2493
        %v2562 = vunpack.c.h.b16 %v2493
        %v2563 = vunpack.c.l.b16 %v2494
        %v2564 = vunpack.c.h.b16 %v2494
        %v2565 = vunpack.c.l.b16 %v2495
        %v2566 = vunpack.c.h.b16 %v2495
        %v2567 = vunpack.c.l.b16 %v2496
        %v2568 = vunpack.c.h.b16 %v2496
        %v2569 = vunpack.c.l.b16 %v2497
        %v2570 = vunpack.c.h.b16 %v2497
        %v2571 = vunpack.c.l.b16 %v2498
        %v2572 = vunpack.c.h.b16 %v2498
        %v2573 = vunpack.c.l.b16 %v2499
        %v2574 = vunpack.c.h.b16 %v2499
        %v2575 = vunpack.c.l.b16 %v2500
        %v2576 = vunpack.c.h.b16 %v2500
        %v2577 = vunpack.c.l.b16 %v2501
        %v2578 = vunpack.c.h.b16 %v2501
        %v2579 = vunpack.c.l.b16 %v2502
        %v2580 = vunpack.c.h.b16 %v2502
        %v2581 = vunpack.c.l.b16 %v2503
        %v2582 = vunpack.c.h.b16 %v2503
        %v2583 = vunpack.c.l.b16 %v2504
        %v2584 = vunpack.c.h.b16 %v2504
        %v2585 = vunpack.c.l.b16 %v2505
        %v2586 = vunpack.c.h.b16 %v2505
        %v2587 = vunpack.c.l.b16 %v2506
        %v2588 = vunpack.c.h.b16 %v2506
        %v2589 = vunpack.c.l.b16 %v2507
        %v2590 = vunpack.c.h.b16 %v2507
        %v2591 = vunpack.c.l.b16 %v2508
        %v2592 = vunpack.c.h.b16 %v2508
        %v2593 = vunpack.c.l.b16 %v2509
        %v2594 = vunpack.c.h.b16 %v2509
        %v2595 = vunpack.c.l.b16 %v2510
        %v2596 = vunpack.c.h.b16 %v2510
        %v2597 = vunpack.c.l.b16 %v2511
        %v2598 = vunpack.c.h.b16 %v2511
        %v2599 = vunpack.c.l.b16 %v2512
        %v2600 = vunpack.c.h.b16 %v2512
        %v2601 = vunpack.c.l.b16 %v2513
        %v2602 = vunpack.c.h.b16 %v2513
        %v2603 = vunpack.c.l.b16 %v2514
        %v2604 = vunpack.c.h.b16 %v2514
        %v2605 = vunpack.c.l.b16 %v2515
        %v2606 = vunpack.c.h.b16 %v2515
        %v2607 = vunpack.c.l.b16 %v2516
        %v2608 = vunpack.c.h.b16 %v2516
        %v2609 = vunpack.c.l.b16 %v2517
        %v2610 = vunpack.c.h.b16 %v2517
        %v2611 = vunpack.c.l.b16 %v2518
        %v2612 = vunpack.c.h.b16 %v2518
        %v2613 = vunpack.c.l.b16 %v2519
        %v2614 = vunpack.c.h.b16 %v2519
        %v2615 = vunpack.c.l.b16 %v2520
        %v2616 = vunpack.c.h.b16 %v2520
        %v2617 = vpack.c.b16 %v2557, %v2553
        %v2618 = vpack.c.b16 %v2558, %v2554
        %v2619 = vpack.c.b16 %v2559, %v2555
        %v2620 = vpack.c.b16 %v2560, %v2556
        %v2621 = vpack.c.b16 %v2565, %v2561
        %v2622 = vpack.c.b16 %v2566, %v2562
        %v2623 = vpack.c.b16 %v2567, %v2563
        %v2624 = vpack.c.b16 %v2568, %v2564
        %v2625 = vpack.c.b16 %v2573, %v2569
        %v2626 = vpack.c.b16 %v2574, %v2570
        %v2627 = vpack.c.b16 %v2575, %v2571
        %v2628 = vpack.c.b16 %v2576, %v2572
        %v2629 = vpack.c.b16 %v2581, %v2577
        %v2630 = vpack.c.b16 %v2582, %v2578
        %v2631 = vpack.c.b16 %v2583, %v2579
        %v2632 = vpack.c.b16 %v2584, %v2580
        %v2633 = vpack.c.b16 %v2589, %v2585
        %v2634 = vpack.c.b16 %v2590, %v2586
        %v2635 = vpack.c.b16 %v2591, %v2587
        %v2636 = vpack.c.b16 %v2592, %v2588
        %v2637 = vpack.c.b16 %v2597, %v2593
        %v2638 = vpack.c.b16 %v2598, %v2594
        %v2639 = vpack.c.b16 %v2599, %v2595
        %v2640 = vpack.c.b16 %v2600, %v2596
        %v2641 = vpack.c.b16 %v2605, %v2601
        %v2642 = vpack.c.b16 %v2606, %v2602
        %v2643 = vpack.c.b16 %v2607, %v2603
        %v2644 = vpack.c.b16 %v2608, %v2604
        %v2645 = vpack.c.b16 %v2613, %v2609
        %v2646 = vpack.c.b16 %v2614, %v2610
        %v2647 = vpack.c.b16 %v2615, %v2611
        %v2648 = vpack.c.b16 %v2616, %v2612
        %2681 = vmatprep.subr.bf16.mxu0 %v2646
        %2682 = vmatpush1.bf16.msra.mxu0 %v2645
        %2683 = vmatprep.subr.bf16.mxu0 %v2642
        %2684 = vmatpush1.bf16.msra.mxu0 %v2641
        %2685 = vmatprep.subr.bf16.mxu0 %v2638
        %2686 = vmatpush1.bf16.msra.mxu0 %v2637
        %2687 = vmatprep.subr.bf16.mxu0 %v2634
        %2688 = vmatpush1.bf16.msra.mxu0 %v2633
        %2689 = vmatprep.subr.bf16.mxu0 %v2630
        %2690 = vmatpush1.bf16.msra.mxu0 %v2629
        %2691 = vmatprep.subr.bf16.mxu0 %v2626
        %2692 = vmatpush1.bf16.msra.mxu0 %v2625
        %2693 = vmatprep.subr.bf16.mxu0 %v2622
        %2694 = vmatpush1.bf16.msra.mxu0 %v2621
        %2695 = vmatprep.subr.bf16.mxu0 %v2618
        %2696 = vmatpush1.bf16.msra.mxu0 %v2617
        %2697 = vmatprep.subr.bf16.mxu0 0
        %2698 = vmatpush2.bf16.msra.mxu0 0
        %2699 = vmatprep.subr.bf16.mxu0 0
        %2700 = vmatpush2.bf16.msra.mxu0 0
        %2701 = vmatprep.subr.bf16.mxu0 0
        %2702 = vmatpush2.bf16.msra.mxu0 0
        %2703 = vmatprep.subr.bf16.mxu0 0
        %2704 = vmatpush2.bf16.msra.mxu0 0
        %2705 = vmatprep.subr.bf16.mxu0 0
        %2706 = vmatpush2.bf16.msra.mxu0 0
        %2707 = vmatprep.subr.bf16.mxu0 0
        %2708 = vmatpush2.bf16.msra.mxu0 0
        %2709 = vmatprep.subr.bf16.mxu0 0
        %2710 = vmatpush2.bf16.msra.mxu0 0
        %2711 = vmatprep.subr.bf16.mxu0 0
        %2712 = vmatpush2.bf16.msra.mxu0 0
        %2713 = vmatprep.mubr.bf16.mxu0 0
        %2714 = vmatmul.mubr.bf16.gmra.mxu0 %v2488
        %v2715 = vpop.f32.mrf.mxu0
        %v2716 = vadd.f32 0.0, %v2715
        %v2717 = vpop.f32.mrf.mxu0
        %v2718 = vadd.f32 0.0, %v2717
        %v2719 = vpop.f32.mrf.mxu0
        %v2720 = vpop.f32.mrf.mxu0
        %2721 = vdwg.mxu0
        %2722 = vmatprep.subr.bf16.mxu0 %v2648
        %2723 = vmatpush1.bf16.msra.mxu0 %v2647
        %2724 = vmatprep.subr.bf16.mxu0 %v2644
        %2725 = vmatpush1.bf16.msra.mxu0 %v2643
        %2726 = vmatprep.subr.bf16.mxu0 %v2640
        %2727 = vmatpush1.bf16.msra.mxu0 %v2639
        %2728 = vmatprep.subr.bf16.mxu0 %v2636
        %2729 = vmatpush1.bf16.msra.mxu0 %v2635
        %2730 = vmatprep.subr.bf16.mxu0 %v2632
        %2731 = vmatpush1.bf16.msra.mxu0 %v2631
        %2732 = vmatprep.subr.bf16.mxu0 %v2628
        %2733 = vmatpush1.bf16.msra.mxu0 %v2627
        %2734 = vmatprep.subr.bf16.mxu0 %v2624
        %2735 = vmatpush1.bf16.msra.mxu0 %v2623
        %2736 = vmatprep.subr.bf16.mxu0 %v2620
        %2737 = vmatpush1.bf16.msra.mxu0 %v2619
        %2738 = vmatprep.subr.bf16.mxu0 0
        %2739 = vmatpush2.bf16.msra.mxu0 0
        %2740 = vmatprep.subr.bf16.mxu0 0
        %2741 = vmatpush2.bf16.msra.mxu0 0
        %2742 = vmatprep.subr.bf16.mxu0 0
        %2743 = vmatpush2.bf16.msra.mxu0 0
        %2744 = vmatprep.subr.bf16.mxu0 0
        %2745 = vmatpush2.bf16.msra.mxu0 0
        %2746 = vmatprep.subr.bf16.mxu0 0
        %2747 = vmatpush2.bf16.msra.mxu0 0
        %2748 = vmatprep.subr.bf16.mxu0 0
        %2749 = vmatpush2.bf16.msra.mxu0 0
        %2750 = vmatprep.subr.bf16.mxu0 0
        %2751 = vmatpush2.bf16.msra.mxu0 0
        %2752 = vmatprep.subr.bf16.mxu0 0
        %2753 = vmatpush2.bf16.msra.mxu0 0
        %2754 = vmatprep.mubr.bf16.mxu0 0
        %2755 = vmatmul.mubr.bf16.gmra.mxu0 %v2488
        %v2756 = vpop.f32.mrf.mxu0
        %v2757 = vadd.f32 0.0, %v2756
        %v2758 = vpop.f32.mrf.mxu0
        %v2759 = vadd.f32 0.0, %v2758
        %v2760 = vpop.f32.mrf.mxu0
        %v2761 = vpop.f32.mrf.mxu0
        %2762 = vdwg.mxu0
        %v2763 = vld [vmem:[#allocation4] sm:$0xff]
        %v2764 = vpack.c.bf16 %v2763, %v2763
        %v2765 = vld [vmem:[#allocation14] sm:$0xff]
        %v2766 = vld [vmem:[#allocation14 + $0x8] sm:$0xff]
        %v2767 = vld [vmem:[#allocation14 + $0x10] sm:$0xff]
        %v2768 = vld [vmem:[#allocation14 + $0x18] sm:$0xff]
        %v2769 = vld [vmem:[#allocation14 + $0x20] sm:$0xff]
        %v2770 = vld [vmem:[#allocation14 + $0x28] sm:$0xff]
        %v2771 = vld [vmem:[#allocation14 + $0x30] sm:$0xff]
        %v2772 = vld [vmem:[#allocation14 + $0x38] sm:$0xff]
        %v2773 = vld [vmem:[#allocation14 + $0x40] sm:$0xff]
        %v2774 = vld [vmem:[#allocation14 + $0x48] sm:$0xff]
        %v2775 = vld [vmem:[#allocation14 + $0x50] sm:$0xff]
        %v2776 = vld [vmem:[#allocation14 + $0x58] sm:$0xff]
        %v2777 = vld [vmem:[#allocation14 + $0x60] sm:$0xff]
        %v2778 = vld [vmem:[#allocation14 + $0x68] sm:$0xff]
        %v2779 = vld [vmem:[#allocation14 + $0x70] sm:$0xff]
        %v2780 = vld [vmem:[#allocation14 + $0x78] sm:$0xff]
        %v2781 = vld [vmem:[#allocation14 + $0x80] sm:$0xff]
        %v2782 = vld [vmem:[#allocation14 + $0x88] sm:$0xff]
        %v2783 = vld [vmem:[#allocation14 + $0x90] sm:$0xff]
        %v2784 = vld [vmem:[#allocation14 + $0x98] sm:$0xff]
        %v2785 = vld [vmem:[#allocation14 + $0xa0] sm:$0xff]
        %v2786 = vld [vmem:[#allocation14 + $0xa8] sm:$0xff]
        %v2787 = vld [vmem:[#allocation14 + $0xb0] sm:$0xff]
        %v2788 = vld [vmem:[#allocation14 + $0xb8] sm:$0xff]
        %v2789 = vld [vmem:[#allocation14 + $0xc0] sm:$0xff]
        %v2790 = vld [vmem:[#allocation14 + $0xc8] sm:$0xff]
        %v2791 = vld [vmem:[#allocation14 + $0xd0] sm:$0xff]
        %v2792 = vld [vmem:[#allocation14 + $0xd8] sm:$0xff]
        %v2793 = vld [vmem:[#allocation14 + $0xe0] sm:$0xff]
        %v2794 = vld [vmem:[#allocation14 + $0xe8] sm:$0xff]
        %v2795 = vld [vmem:[#allocation14 + $0xf0] sm:$0xff]
        %v2796 = vld [vmem:[#allocation14 + $0xf8] sm:$0xff]
        %v2829 = vunpack.c.l.b16 %v2765
        %v2830 = vunpack.c.h.b16 %v2765
        %v2831 = vunpack.c.l.b16 %v2766
        %v2832 = vunpack.c.h.b16 %v2766
        %v2833 = vunpack.c.l.b16 %v2767
        %v2834 = vunpack.c.h.b16 %v2767
        %v2835 = vunpack.c.l.b16 %v2768
        %v2836 = vunpack.c.h.b16 %v2768
        %v2837 = vunpack.c.l.b16 %v2769
        %v2838 = vunpack.c.h.b16 %v2769
        %v2839 = vunpack.c.l.b16 %v2770
        %v2840 = vunpack.c.h.b16 %v2770
        %v2841 = vunpack.c.l.b16 %v2771
        %v2842 = vunpack.c.h.b16 %v2771
        %v2843 = vunpack.c.l.b16 %v2772
        %v2844 = vunpack.c.h.b16 %v2772
        %v2845 = vunpack.c.l.b16 %v2773
        %v2846 = vunpack.c.h.b16 %v2773
        %v2847 = vunpack.c.l.b16 %v2774
        %v2848 = vunpack.c.h.b16 %v2774
        %v2849 = vunpack.c.l.b16 %v2775
        %v2850 = vunpack.c.h.b16 %v2775
        %v2851 = vunpack.c.l.b16 %v2776
        %v2852 = vunpack.c.h.b16 %v2776
        %v2853 = vunpack.c.l.b16 %v2777
        %v2854 = vunpack.c.h.b16 %v2777
        %v2855 = vunpack.c.l.b16 %v2778
        %v2856 = vunpack.c.h.b16 %v2778
        %v2857 = vunpack.c.l.b16 %v2779
        %v2858 = vunpack.c.h.b16 %v2779
        %v2859 = vunpack.c.l.b16 %v2780
        %v2860 = vunpack.c.h.b16 %v2780
        %v2861 = vunpack.c.l.b16 %v2781
        %v2862 = vunpack.c.h.b16 %v2781
        %v2863 = vunpack.c.l.b16 %v2782
        %v2864 = vunpack.c.h.b16 %v2782
        %v2865 = vunpack.c.l.b16 %v2783
        %v2866 = vunpack.c.h.b16 %v2783
        %v2867 = vunpack.c.l.b16 %v2784
        %v2868 = vunpack.c.h.b16 %v2784
        %v2869 = vunpack.c.l.b16 %v2785
        %v2870 = vunpack.c.h.b16 %v2785
        %v2871 = vunpack.c.l.b16 %v2786
        %v2872 = vunpack.c.h.b16 %v2786
        %v2873 = vunpack.c.l.b16 %v2787
        %v2874 = vunpack.c.h.b16 %v2787
        %v2875 = vunpack.c.l.b16 %v2788
        %v2876 = vunpack.c.h.b16 %v2788
        %v2877 = vunpack.c.l.b16 %v2789
        %v2878 = vunpack.c.h.b16 %v2789
        %v2879 = vunpack.c.l.b16 %v2790
        %v2880 = vunpack.c.h.b16 %v2790
        %v2881 = vunpack.c.l.b16 %v2791
        %v2882 = vunpack.c.h.b16 %v2791
        %v2883 = vunpack.c.l.b16 %v2792
        %v2884 = vunpack.c.h.b16 %v2792
        %v2885 = vunpack.c.l.b16 %v2793
        %v2886 = vunpack.c.h.b16 %v2793
        %v2887 = vunpack.c.l.b16 %v2794
        %v2888 = vunpack.c.h.b16 %v2794
        %v2889 = vunpack.c.l.b16 %v2795
        %v2890 = vunpack.c.h.b16 %v2795
        %v2891 = vunpack.c.l.b16 %v2796
        %v2892 = vunpack.c.h.b16 %v2796
        %v2893 = vpack.c.b16 %v2833, %v2829
        %v2894 = vpack.c.b16 %v2834, %v2830
        %v2895 = vpack.c.b16 %v2835, %v2831
        %v2896 = vpack.c.b16 %v2836, %v2832
        %v2897 = vpack.c.b16 %v2841, %v2837
        %v2898 = vpack.c.b16 %v2842, %v2838
        %v2899 = vpack.c.b16 %v2843, %v2839
        %v2900 = vpack.c.b16 %v2844, %v2840
        %v2901 = vpack.c.b16 %v2849, %v2845
        %v2902 = vpack.c.b16 %v2850, %v2846
        %v2903 = vpack.c.b16 %v2851, %v2847
        %v2904 = vpack.c.b16 %v2852, %v2848
        %v2905 = vpack.c.b16 %v2857, %v2853
        %v2906 = vpack.c.b16 %v2858, %v2854
        %v2907 = vpack.c.b16 %v2859, %v2855
        %v2908 = vpack.c.b16 %v2860, %v2856
        %v2909 = vpack.c.b16 %v2865, %v2861
        %v2910 = vpack.c.b16 %v2866, %v2862
        %v2911 = vpack.c.b16 %v2867, %v2863
        %v2912 = vpack.c.b16 %v2868, %v2864
        %v2913 = vpack.c.b16 %v2873, %v2869
        %v2914 = vpack.c.b16 %v2874, %v2870
        %v2915 = vpack.c.b16 %v2875, %v2871
        %v2916 = vpack.c.b16 %v2876, %v2872
        %v2917 = vpack.c.b16 %v2881, %v2877
        %v2918 = vpack.c.b16 %v2882, %v2878
        %v2919 = vpack.c.b16 %v2883, %v2879
        %v2920 = vpack.c.b16 %v2884, %v2880
        %v2921 = vpack.c.b16 %v2889, %v2885
        %v2922 = vpack.c.b16 %v2890, %v2886
        %v2923 = vpack.c.b16 %v2891, %v2887
        %v2924 = vpack.c.b16 %v2892, %v2888
        %2957 = vmatprep.subr.bf16.mxu0 %v2922
        %2958 = vmatpush1.bf16.msra.mxu0 %v2921
        %2959 = vmatprep.subr.bf16.mxu0 %v2918
        %2960 = vmatpush1.bf16.msra.mxu0 %v2917
        %2961 = vmatprep.subr.bf16.mxu0 %v2914
        %2962 = vmatpush1.bf16.msra.mxu0 %v2913
        %2963 = vmatprep.subr.bf16.mxu0 %v2910
        %2964 = vmatpush1.bf16.msra.mxu0 %v2909
        %2965 = vmatprep.subr.bf16.mxu0 %v2906
        %2966 = vmatpush1.bf16.msra.mxu0 %v2905
        %2967 = vmatprep.subr.bf16.mxu0 %v2902
        %2968 = vmatpush1.bf16.msra.mxu0 %v2901
        %2969 = vmatprep.subr.bf16.mxu0 %v2898
        %2970 = vmatpush1.bf16.msra.mxu0 %v2897
        %2971 = vmatprep.subr.bf16.mxu0 %v2894
        %2972 = vmatpush1.bf16.msra.mxu0 %v2893
        %2973 = vmatprep.subr.bf16.mxu0 0
        %2974 = vmatpush2.bf16.msra.mxu0 0
        %2975 = vmatprep.subr.bf16.mxu0 0
        %2976 = vmatpush2.bf16.msra.mxu0 0
        %2977 = vmatprep.subr.bf16.mxu0 0
        %2978 = vmatpush2.bf16.msra.mxu0 0
        %2979 = vmatprep.subr.bf16.mxu0 0
        %2980 = vmatpush2.bf16.msra.mxu0 0
        %2981 = vmatprep.subr.bf16.mxu0 0
        %2982 = vmatpush2.bf16.msra.mxu0 0
        %2983 = vmatprep.subr.bf16.mxu0 0
        %2984 = vmatpush2.bf16.msra.mxu0 0
        %2985 = vmatprep.subr.bf16.mxu0 0
        %2986 = vmatpush2.bf16.msra.mxu0 0
        %2987 = vmatprep.subr.bf16.mxu0 0
        %2988 = vmatpush2.bf16.msra.mxu0 0
        %2989 = vmatprep.mubr.bf16.mxu0 0
        %2990 = vmatmul.mubr.bf16.gmra.mxu0 %v2764
        %v2991 = vpop.f32.mrf.mxu0
        %v2992 = vadd.f32 0.0, %v2991
        %v2993 = vpop.f32.mrf.mxu0
        %v2994 = vadd.f32 0.0, %v2993
        %v2995 = vpop.f32.mrf.mxu0
        %v2996 = vpop.f32.mrf.mxu0
        %2997 = vdwg.mxu0
        %2998 = vmatprep.subr.bf16.mxu0 %v2924
        %2999 = vmatpush1.bf16.msra.mxu0 %v2923
        %3000 = vmatprep.subr.bf16.mxu0 %v2920
        %3001 = vmatpush1.bf16.msra.mxu0 %v2919
        %3002 = vmatprep.subr.bf16.mxu0 %v2916
        %3003 = vmatpush1.bf16.msra.mxu0 %v2915
        %3004 = vmatprep.subr.bf16.mxu0 %v2912
        %3005 = vmatpush1.bf16.msra.mxu0 %v2911
        %3006 = vmatprep.subr.bf16.mxu0 %v2908
        %3007 = vmatpush1.bf16.msra.mxu0 %v2907
        %3008 = vmatprep.subr.bf16.mxu0 %v2904
        %3009 = vmatpush1.bf16.msra.mxu0 %v2903
        %3010 = vmatprep.subr.bf16.mxu0 %v2900
        %3011 = vmatpush1.bf16.msra.mxu0 %v2899
        %3012 = vmatprep.subr.bf16.mxu0 %v2896
        %3013 = vmatpush1.bf16.msra.mxu0 %v2895
        %3014 = vmatprep.subr.bf16.mxu0 0
        %3015 = vmatpush2.bf16.msra.mxu0 0
        %3016 = vmatprep.subr.bf16.mxu0 0
        %3017 = vmatpush2.bf16.msra.mxu0 0
        %3018 = vmatprep.subr.bf16.mxu0 0
        %3019 = vmatpush2.bf16.msra.mxu0 0
        %3020 = vmatprep.subr.bf16.mxu0 0
        %3021 = vmatpush2.bf16.msra.mxu0 0
        %3022 = vmatprep.subr.bf16.mxu0 0
        %3023 = vmatpush2.bf16.msra.mxu0 0
        %3024 = vmatprep.subr.bf16.mxu0 0
        %3025 = vmatpush2.bf16.msra.mxu0 0
        %3026 = vmatprep.subr.bf16.mxu0 0
        %3027 = vmatpush2.bf16.msra.mxu0 0
        %3028 = vmatprep.subr.bf16.mxu0 0
        %3029 = vmatpush2.bf16.msra.mxu0 0
        %3030 = vmatprep.mubr.bf16.mxu0 0
        %3031 = vmatmul.mubr.bf16.gmra.mxu0 %v2764
        %v3032 = vpop.f32.mrf.mxu0
        %v3033 = vadd.f32 0.0, %v3032
        %v3034 = vpop.f32.mrf.mxu0
        %v3035 = vadd.f32 0.0, %v3034
        %v3036 = vpop.f32.mrf.mxu0
        %v3037 = vpop.f32.mrf.mxu0
        %3038 = vdwg.mxu0
        %s3039 = scalar_lea.vmem %s347, 48 [#allocation8]
        %v3040 = vld [vmem:[%s3039] sm:$0xff]
        %v3041 = vld [vmem:[%s3039 + $0x8] sm:$0xff]
        %v3042 = vunpack.c.l.bf16 %v3040
        %v3043 = vunpack.c.h.bf16 %v3040
        %v3044 = vunpack.c.l.bf16 %v3041
        %v3045 = vunpack.c.h.bf16 %v3041
        %v3046 = vadd.f32 %v3042, %v2716
        %v3047 = vadd.f32 %v3043, %v2718
        %v3048 = vadd.f32 %v3044, %v2757
        %v3049 = vadd.f32 %v3045, %v2759
        %v3050 = vld [vmem:[%s356] sm:$0xff]
        %v3051 = vld [vmem:[%s356 + $0x8] sm:$0xff]
        %v3052 = vunpack.c.l.bf16 %v3050
        %v3053 = vunpack.c.h.bf16 %v3050
        %v3054 = vunpack.c.l.bf16 %v3051
        %v3055 = vunpack.c.h.bf16 %v3051
        %v3056 = vadd.f32 %v3052, %v2992
        %v3057 = vadd.f32 %v3053, %v2994
        %v3058 = vadd.f32 %v3054, %v3033
        %v3059 = vadd.f32 %v3055, %v3035
        %v3060 = vld [vmem:[#allocation3] sm:$0xff]
        %v3061 = vmul.f32 %v3046, 0.5
        %v3062 = vmul.f32 %v3047, 0.5
        %v3063 = vmul.f32 %v3048, 0.5
        %v3064 = vtanh.pop %v3061
        %v3065 = vtanh.pop %v3062
        %v3066 = vtanh.pop %v3063
        %v3067 = vmul.f32 %v3064, 0.5
        %v3068 = vmul.f32 %v3065, 0.5
        %v3069 = vmul.f32 %v3066, 0.5
        %v3070 = vadd.f32 %v3067, 0.5
        %v3071 = vadd.f32 %v3068, 0.5
        %v3072 = vadd.f32 %v3069, 0.5
        %v3073 = vtanh.pop %v3049
        %v3074 = vmul.f32 %v3071, %v3060
        %v3075 = vmul.f32 %v3070, %v3073
        %v3076 = vadd.f32 %v3074, %v3075
        %v3077 = vtanh.pop %v3076
        %v3078 = vmul.f32 %v3072, %v3077
        %v3079 = vld [vmem:[#allocation5] sm:$0xff]
        %v3080 = vmul.f32 %v3056, 0.5
        %v3081 = vmul.f32 %v3057, 0.5
        %v3082 = vmul.f32 %v3058, 0.5
        %v3083 = vtanh.pop %v3080
        %v3084 = vtanh.pop %v3081
        %v3085 = vtanh.pop %v3082
        %v3086 = vmul.f32 %v3083, 0.5
        %v3087 = vmul.f32 %v3084, 0.5
        %v3088 = vmul.f32 %v3085, 0.5
        %v3089 = vadd.f32 %v3086, 0.5
        %v3090 = vadd.f32 %v3087, 0.5
        %v3091 = vadd.f32 %v3088, 0.5
        %v3092 = vtanh.pop %v3059
        %v3093 = vmul.f32 %v3090, %v3079
        %v3094 = vmul.f32 %v3089, %v3092
        %v3095 = vadd.f32 %v3093, %v3094
        %v3096 = vtanh.pop %v3095
        %v3097 = vmul.f32 %v3091, %v3096
        %v3098 = vstv %s2486
        %vm3099 = vcmp.lt.s32.totalorder %v3098, %v424
        %v3100 = vsel %vm3099, 1, 0
        %v3101 = vcvt.s32.f32 %v3100
        %v3102 = vstv %s427
        %vm3103 = vcmp.lt.s32.totalorder %v3102, %v424
        %v3104 = vsel %vm3103, 1, 0
        %v3105 = vcvt.s32.f32 %v3104
        %3107 = vset.pattern.permute.xlu0 0
        %3108 = vperm.xlu0 %3107, %v3101
        %v3109 = vpop.permute.xlu0 %3108
        %v3111 = vmul.f32 %v3109, %v3078
        %v3112 = vsub.f32 1.0, %v3101
        %3114 = vset.pattern.permute.xlu0 0
        %3115 = vperm.xlu0 %3114, %v3112
        %v3116 = vpop.permute.xlu0 %3115
        %v3118 = vmul.f32 %v3116, %v2487
        %v3119 = vadd.f32 %v3111, %v3118
        %3120 = vst [vmem:[#allocation2] sm:$0xff] %v3119
        %v3121 = vmul.f32 %v3109, %v3076
        %v3122 = vld [vmem:[#allocation3] sm:$0xff]
        %v3123 = vmul.f32 %v3116, %v3122
        %v3124 = vadd.f32 %v3121, %v3123
        %3125 = vst [vmem:[#allocation3] sm:$0xff] %v3124
        %3127 = vset.pattern.permute.xlu0 0
        %3128 = vperm.xlu0 %3127, %v3105
        %v3129 = vpop.permute.xlu0 %3128
        %v3131 = vmul.f32 %v3129, %v3097
        %v3132 = vsub.f32 1.0, %v3105
        %v3133 = vld [vmem:[#allocation4] sm:$0xff]
        %3135 = vset.pattern.permute.xlu0 0
        %3136 = vperm.xlu0 %3135, %v3132
        %v3137 = vpop.permute.xlu0 %3136
        %v3139 = vmul.f32 %v3137, %v3133
        %v3140 = vadd.f32 %v3131, %v3139
        %3141 = vst [vmem:[#allocation4] sm:$0xff] %v3140
        %v3142 = vmul.f32 %v3129, %v3095
        %v3143 = vld [vmem:[#allocation5] sm:$0xff]
        %v3144 = vmul.f32 %v3137, %v3143
        %v3145 = vadd.f32 %v3142, %v3144
        %3146 = vst [vmem:[#allocation5] sm:$0xff] %v3145
        %s3147 = scalar_lea.vmem %s395, 24 [#allocation16]
        %3148 = vst [vmem:[%s3147] sm:$0xff] %v3111
        %3149 = vst [vmem:[%s402] sm:$0xff] %v3131
        %v3150 = vld [vmem:[#allocation6] sm:$0xff]
        %vm3151 = vcmp.gt.f32.partialorder %v3101, 0.0
        %v3152 = vsel %vm3151, 1, 0
        %3153 = vset.pattern.permute.xlu0 0
        %3154 = vperm.xlu0 %3153, %v3152
        %v3155 = vpop.permute.xlu0 %3154
        %vm3156 = vcmp.eq.s32.totalorder %v3155, 1
        %v3157 = vsel %vm3156, %v3078, -100.0
        %v3158 = vmax.f32 %v3150, %v3157
        %3159 = vst [vmem:[#allocation6] sm:$0xff] %v3158
        %v3160 = vld [vmem:[#allocation7] sm:$0xff]
        %vm3161 = vcmp.gt.f32.partialorder %v3105, 0.0
        %v3162 = vsel %vm3161, 1, 0
        %3163 = vset.pattern.permute.xlu0 0
        %3164 = vperm.xlu0 %3163, %v3162
        %v3165 = vpop.permute.xlu0 %3164
        %vm3166 = vcmp.eq.s32.totalorder %v3165, 1
        %v3167 = vsel %vm3166, %v3097, -100.0
        %v3168 = vmax.f32 %v3160, %v3167
        %3169 = vst [vmem:[#allocation7] sm:$0xff] %v3168
        %p3170 = scmp.eq.s32.totalorder %s34, 1
        // Predicated region
        $region61: #{tpu_custom_call.1} parent=39 // pred_check
          %p3171 = pneg %p3170
        $region62: #{tpu_custom_call.1} parent=39 // pred_check_branch
          %3173 = sbr.rel (%p3171) target = $region64
        $region63: #{tpu_custom_call.1} parent=39 // pred_region
          %v3174 = vld [vmem:[#allocation6] sm:$0xff]
          %3175 = vst [vmem:[#allocation19] sm:$0xff] %v3174
          %v3176 = vld [vmem:[#allocation7] sm:$0xff]
          %3177 = vst [vmem:[#allocation20] sm:$0xff] %v3176
        $region64: #{tpu_custom_call.1} parent=39 // pred_fallthru
          _
        %s3178 = sand.u32 %s159, 1
        %s3179 = scalar_lea.sflag [#allocation10], %s3178
        %s3180 = sand.u32 %s159, 1
        %s3181 = smul.addr %s3180, 32
        %s3182 = scalar_lea.vmem [#allocation16], %s3181
        %s3183 = sand.u32 %s34, 1
        %s3184 = scalar_lea.sflag [#allocation18], %s3183
        %s3185 = sand.u32 %s187, 1
        %s3186 = smul.addr %s3185, 32
        %s3187 = scalar_lea.vmem [#allocation17], %s3186
        // Predicated region
        $region65: #{tpu_custom_call.1} parent=39 // pred_check
          %p3188 = pneg %p169
        $region66: #{tpu_custom_call.1} parent=39 // pred_check_branch
          %3190 = sbr.rel (%p3188) target = $region68
        $region67: #{tpu_custom_call.1} parent=39 // pred_region
          %s3191 = smul.u32 4, %s34
          %s3193 = ssub.s32 512, 512
          %3194 = vsyncadd %s3179, %s3193
          %s3195 = smul.addr %s3191, 128
          %s3196 = scalar_lea.hbm %s5, %s3195
          %s3197 = sshll.u32 %s3182, 4
          %s3198 = int_to_ptr.vmem [resolvable:$true] %s3197
          %3203 = dma.vmem_to_hbm [thread:$0]  %s3198, 512, %s3196, %s3179, 128, 128, 8
        $region68: #{tpu_custom_call.1} parent=39 // pred_fallthru
          _
        // Predicated region
        $region69: #{tpu_custom_call.1} parent=39 // pred_check
          %p3204 = pneg %p197
        $region70: #{tpu_custom_call.1} parent=39 // pred_check_branch
          %3206 = sbr.rel (%p3204) target = $region72
        $region71: #{tpu_custom_call.1} parent=39 // pred_region
          %s3207 = ssub.s32 1, %s34
          %s3208 = smul.u32 4, %s3207
          %s3210 = ssub.s32 512, 512
          %3211 = vsyncadd %s3184, %s3210
          %s3212 = smul.addr %s3208, 128
          %s3213 = scalar_lea.hbm %s6, %s3212
          %s3214 = sshll.u32 %s3187, 4
          %s3215 = int_to_ptr.vmem [resolvable:$true] %s3214
          %3220 = dma.vmem_to_hbm [thread:$0]  %s3215, 512, %s3213, %s3184, 128, 128, 8
        $region72: #{tpu_custom_call.1} parent=39 // pred_fallthru
          _
        // Predicated region
        $region73: #{tpu_custom_call.1} parent=39 // pred_check
          %p3221 = pneg %p218
        $region74: #{tpu_custom_call.1} parent=39 // pred_check_branch
          %3223 = sbr.rel (%p3221) target = $region76
        $region75: #{tpu_custom_call.1} parent=39 // pred_region
          %s3225 = ssub.s32 128, 128
          %3226 = vsyncadd [#allocation18], %s3225
          %s3228 = sshll.u32 [#allocation19], 4
          %s3229 = int_to_ptr.vmem [resolvable:$true] %s3228
          %3231 = dma.vmem_to_hbm [thread:$0]  %s3229, 128, %s7, [#allocation18]
        $region76: #{tpu_custom_call.1} parent=39 // pred_fallthru
          _
        // Predicated region
        $region77: #{tpu_custom_call.1} parent=39 // pred_check
          %p3232 = pneg %p239
        $region78: #{tpu_custom_call.1} parent=39 // pred_check_branch
          %3234 = sbr.rel (%p3232) target = $region80
        $region79: #{tpu_custom_call.1} parent=39 // pred_region
          %s3236 = ssub.s32 128, 128
          %3237 = vsyncadd [#allocation21], %s3236
          %s3239 = sshll.u32 [#allocation20], 4
          %s3240 = int_to_ptr.vmem [resolvable:$true] %s3239
          %3242 = dma.vmem_to_hbm [thread:$0]  %s3240, 128, %s8, [#allocation21]
        $region80: #{tpu_custom_call.1} parent=39 // pred_fallthru
          _
        // Predicated region
        $region81: #{tpu_custom_call.1} parent=39 // pred_check
          %p3243 = pneg %p218
        $region82: #{tpu_custom_call.1} parent=39 // pred_check_branch
          %3245 = sbr.rel (%p3243) target = $region84
        $region83: #{tpu_custom_call.1} parent=39 // pred_region
          %3246 = dma.done [#allocation18], 128
        $region84: #{tpu_custom_call.1} parent=39 // pred_fallthru
          _
        // Predicated region
        $region85: #{tpu_custom_call.1} parent=39 // pred_check
          %p3247 = pneg %p239
        $region86: #{tpu_custom_call.1} parent=39 // pred_check_branch
          %3249 = sbr.rel (%p3247) target = $region88
        $region87: #{tpu_custom_call.1} parent=39 // pred_region
          %3250 = dma.done [#allocation21], 128
        $region88: #{tpu_custom_call.1} parent=39 // pred_fallthru
          _
      $region40: #{tpu_custom_call.1} parent=5 // pred_fallthru
        _
      %p3251 = scmp.le.s32.totalorder 2, %s29
      // Predicated region
      $region89: #{tpu_custom_call.1} parent=5 // pred_check
        %p3252 = pneg %p3251
      $region90: #{tpu_custom_call.1} parent=5 // pred_check_branch
        %3254 = sbr.rel (%p3252) target = $region92
      $region91: #{tpu_custom_call.1} parent=5 // pred_region
        %s3255 = ssub.s32 %s29, 2
        // Predicated region
        $region93: #{tpu_custom_call.1} parent=91 // pred_check
          %p3256 = pneg %p175
        $region94: #{tpu_custom_call.1} parent=91 // pred_check_branch
          %3258 = sbr.rel (%p3256) target = $region96
        $region95: #{tpu_custom_call.1} parent=91 // pred_region
          %s3259 = sand.u32 %s160, 1
          %s3260 = scalar_lea.sflag [#allocation10], %s3259
          %s3261 = sand.u32 %s160, 1
          %s3262 = smul.addr %s3261, 32
          %s3263 = scalar_lea.vmem [#allocation16], %s3262
          %3264 = dma.done %s3260, 512
        $region96: #{tpu_custom_call.1} parent=91 // pred_fallthru
          _
        // Predicated region
        $region97: #{tpu_custom_call.1} parent=91 // pred_check
          %p3265 = pneg %p203
        $region98: #{tpu_custom_call.1} parent=91 // pred_check_branch
          %3267 = sbr.rel (%p3265) target = $region100
        $region99: #{tpu_custom_call.1} parent=91 // pred_region
          %s3268 = sand.u32 %s35, 1
          %s3269 = scalar_lea.sflag [#allocation18], %s3268
          %s3270 = sand.u32 %s188, 1
          %s3271 = smul.addr %s3270, 32
          %s3272 = scalar_lea.vmem [#allocation17], %s3271
          %3273 = dma.done %s3269, 512
        $region100: #{tpu_custom_call.1} parent=91 // pred_fallthru
          _
      $region92: #{tpu_custom_call.1} parent=5 // pred_fallthru
        _
    $region6: #{tpu_custom_call.1} parent=1 // loop_footer
      %s33 = sadd.s32 1, %s29
    $region7: #{tpu_custom_call.1} parent=1 // loop_footer_branch
      %28 = sbr.rel target = $region3
    $region8: #{tpu_custom_call.1} parent=1 // loop_exit
      _
    %3274 = vsyncpa [#allocation9], 1
    %s3275 = scalar_lea.sflag [#allocation9], 1
    %3276 = vsyncpa %s3275, 1
    %3277 = vsyncpa [#allocation12], 1
    %s3278 = scalar_lea.sflag [#allocation12], 1
    %3279 = vsyncpa %s3278, 1
    %3280 = vsyncpa [#allocation15], 1
    %3281 = vsyncpa [#allocation10], 1
    %s3282 = scalar_lea.sflag [#allocation10], 1
    %3283 = vsyncpa %s3282, 1
    %3284 = vsyncpa [#allocation18], 1
    %s3285 = scalar_lea.sflag [#allocation18], 1
    %3286 = vsyncpa %s3285, 1
    %3287 = vsyncpa [#allocation21], 1

</llo_original>
